<compile_context>
chip_gen: v7x
topology: tpu7x:2x2x1
jax: 0.10.0
libtpu: 0.0.40
codegen_flags: <defaults>
</compile_context>

<pallas_src>
import math
import functools
import numpy as np
import jax
import jax.numpy as jnp
from jax.experimental import pallas as pl
from jax.experimental.pallas import tpu as pltpu

_ACT = jnp.tanh  # LinearAct default activation assumption


# ----------------------------------------------------------------------------
# Pallas kernel: one grid step per batch *tile*; everything fits in VMEM.
# ----------------------------------------------------------------------------
def _dyn_attn_kernel(query_ref, src_ref, trg_ref,
                     wq_ref, bq_ref,
                     wsrc_ref, bsrc_ref,
                     wtrg_ref, btrg_ref,
                     woq_ref, wos_ref, wot_ref, bo_ref,
                     tile_s_ref, rep_t_ref, sel_s_ref, sel_t_ref,
                     out_ref, *, hid_dim):
    f32 = jnp.float32
    bt, l, h = query_ref.shape
    _, s, f = src_ref.shape
    _, t, _ = trg_ref.shape
    hid = hid_dim

    # ---- fused projections over the whole batch tile (big GEMMs) ----
    query = query_ref[...].astype(f32)                         # (bt, l, h)
    query_flat = query.reshape(bt * l, h)
    src_flat = src_ref[...].astype(f32).reshape(bt * s, f)
    trg_flat = trg_ref[...].astype(f32).reshape(bt * t, f)

    scale = 0.5 / math.sqrt(hid)  # fold the (./2) and 1/sqrt(hid) into q
    q_proj = _ACT(jnp.dot(query_flat, wq_ref[...], preferred_element_type=f32)
                  + bq_ref[...]) * scale                       # (bt*l, hid)
    src_proj = _ACT(jnp.dot(src_flat, wsrc_ref[...], preferred_element_type=f32)
                    + bsrc_ref[...])                           # (bt*s, 2*hid) = [key|value]
    trg_proj = _ACT(jnp.dot(trg_flat, wtrg_ref[...], preferred_element_type=f32)
                    + btrg_ref[...])                           # (bt*t, 2*hid) = [key|value]

    qb = q_proj.reshape(bt, l, hid)
    sk = src_proj[:, :hid].reshape(bt, s, hid)
    sv = src_proj[:, hid:].reshape(bt, s, hid)
    tk = trg_proj[:, :hid].reshape(bt, t, hid)
    tv = trg_proj[:, hid:].reshape(bt, t, hid)

    # ---- additive scores; softmax statistics are separable ----
    a_sc = jnp.einsum('bld,bsd->bls', qb, sk, preferred_element_type=f32)   # (bt, l, s)
    b_sc = jnp.einsum('bld,btd->blt', qb, tk, preferred_element_type=f32)   # (bt, l, t)

    e_a = jnp.exp(a_sc - jnp.max(a_sc, axis=-1, keepdims=True))             # (bt, l, s)
    e_b = jnp.exp(b_sc - jnp.max(b_sc, axis=-1, keepdims=True))             # (bt, l, t)
    # softmax denominator factorizes:  sum_p exp(score[p]) = (sum e_a) * (sum e_b)
    z = (jnp.sum(e_a, axis=-1, keepdims=True) *
         jnp.sum(e_b, axis=-1, keepdims=True))                              # (bt, l, 1)

    # raw flat order p = tt*s + ss (torch einsum output layout before .view)
    #   tile_s: (s, s*t), tile_s[ss, p] = 1 iff p %  s == ss
    #   rep_t : (t, s*t), rep_t [tt, p] = 1 iff p // s == tt
    e_a2 = e_a.reshape(bt * l, s)
    e_b2 = e_b.reshape(bt * l, t)
    e_flat = (jnp.dot(e_a2, tile_s_ref[...], preferred_element_type=f32) *
              jnp.dot(e_b2, rep_t_ref[...], preferred_element_type=f32))    # (bt*l, s*t)

    # regroup the flat axis with the *viewed* (s, t) coordinates (torch .view scramble)
    #   sel_s: (s*t, s), sel_s[p, j] = 1 iff p // t == j   -> sum over viewed t
    #   sel_t: (s*t, t), sel_t[p, j] = 1 iff p %  t == j   -> sum over viewed s
    e_s = jnp.dot(e_flat, sel_s_ref[...], preferred_element_type=f32).reshape(bt, l, s)
    e_t = jnp.dot(e_flat, sel_t_ref[...], preferred_element_type=f32).reshape(bt, l, t)

    # exact division (per-row scalar; approx reciprocal buys nothing here and
    # risks the 2e-4 tolerance).  Normalize the small marginals before the
    # context GEMMs (bt*l*(s+t) muls instead of 2*bt*l*hid).
    inv_z = 1.0 / z                                            # (bt, l, 1)
    w_s = e_s * inv_z
    w_t = e_t * inv_z
    s_ctx = jnp.einsum('bls,bsh->blh', w_s, sv, preferred_element_type=f32)
    t_ctx = jnp.einsum('blt,bth->blh', w_t, tv, preferred_element_type=f32)

    # ---- out = relu(concat(query, s_ctx, t_ctx) @ Wo + bo), Wo split row-wise ----
    x = (jnp.dot(query_flat, woq_ref[...], preferred_element_type=f32) +
         jnp.dot(s_ctx.reshape(bt * l, hid), wos_ref[...], preferred_element_type=f32) +
         jnp.dot(t_ctx.reshape(bt * l, hid), wot_ref[...], preferred_element_type=f32) +
         bo_ref[...])
    out = jnp.maximum(x, 0.0)
    out_ref[...] = out.reshape(bt, l, -1).astype(out_ref.dtype)


def dynamic_attention5(query, src, trg, params, block_b=None):
    b, l, h = query.shape
    _, s, f = src.shape
    _, t, _ = trg.shape
    hid = params["wq"].shape[1]
    out_dim = params["bo"].shape[-1]
    P = s * t

    # Batch tile: aim for >=~256 projection rows per grid step at large b.
    if block_b is None:
        block_b = max(1, min(b, max(1, 256 // max(l, 1))))
    n_blocks = -(-b // block_b)
    b_pad = n_blocks * block_b
    if b_pad != b:
        pad = ((0, b_pad - b), (0, 0), (0, 0))
        query = jnp.pad(query, pad)
        src = jnp.pad(src, pad)
        trg = jnp.pad(trg, pad)

    # Fused key|value weights: one GEMM per input stream, sliced in-kernel.
    w_src = jnp.concatenate([params["ws"], params["wsv"]], axis=1)   # (f, 2*hid)
    b_src = jnp.concatenate([params["bs"], params["bsv"]], axis=1)   # (1, 2*hid)
    w_trg = jnp.concatenate([params["wt"], params["wtv"]], axis=1)
    b_trg = jnp.concatenate([params["bt"], params["btv"]], axis=1)

    # Constant 0/1 selector matrices (glue for the torch .view scramble).
    p_idx = np.arange(P)
    tile_s = (p_idx[None, :] % s == np.arange(s)[:, None]).astype(np.float32)   # (s, P)
    rep_t = (p_idx[None, :] // s == np.arange(t)[:, None]).astype(np.float32)   # (t, P)
    sel_s = (p_idx[:, None] // t == np.arange(s)[None, :]).astype(np.float32)   # (P, s)
    sel_t = (p_idx[:, None] % t == np.arange(t)[None, :]).astype(np.float32)    # (P, t)
    tile_s, rep_t, sel_s, sel_t = map(jnp.asarray, (tile_s, rep_t, sel_s, sel_t))

    operands = (query, src, trg,
                params["wq"], params["bq"], w_src, b_src, w_trg, b_trg,
                params["woq"], params["wos"], params["wot"], params["bo"],
                tile_s, rep_t, sel_s, sel_t)

    def batch_spec(d1, d2):
        return pl.BlockSpec((block_b, d1, d2), lambda i: (i, 0, 0))

    def full_spec(arr):
        # full-array block, constant index map -> DMA'd once, resident in VMEM
        return pl.BlockSpec(arr.shape, lambda i: (0, 0))

    in_specs = [batch_spec(l, h), batch_spec(s, f), batch_spec(t, f)]
    in_specs += [full_spec(a) for a in operands[3:]]

    # Rough cost estimate (scheduling hint only).
    flops = 2 * b_pad * (l * h * hid + (s + t) * f * 2 * hid
                         + l * hid * (s + t) + 2 * l * P * (s + t)
                         + l * (s + t) * hid + l * (h + 2 * hid) * out_dim)
    transc = b_pad * (l * hid + 2 * hid * (s + t) + l * (s + t))
    bytes_acc = 4 * (query.size + src.size + trg.size + b_pad * l * out_dim
                     + sum(int(np.prod(a.shape)) for a in operands[3:]))

    kernel = functools.partial(_dyn_attn_kernel, hid_dim=hid)

    out = pl.pallas_call(
        kernel,
        out_shape=jax.ShapeDtypeStruct((b_pad, l, out_dim), jnp.float32),
        grid=(n_blocks,),
        in_specs=in_specs,
        out_specs=pl.BlockSpec((block_b, l, out_dim), lambda i: (i, 0, 0)),
        compiler_params=pltpu.CompilerParams(
            dimension_semantics=("parallel",)),   # batch blocks are independent (v7x 2 TCs)
        cost_estimate=pl.CostEstimate(flops=int(flops),
                                      transcendentals=int(transc),
                                      bytes_accessed=int(bytes_acc)),
    )(*operands)
    return out[:b]


# ----------------------------------------------------------------------------
# Pure-JAX reference replicating the PyTorch forward exactly (for checking)
# ----------------------------------------------------------------------------
def reference_forward(query, src, trg, params, hid):
    lin = lambda x, w, bias: _ACT(x @ w + bias)
    q = lin(query, params["wq"], params["bq"])
    sk = lin(src, params["ws"], params["bs"])
    tk = lin(trg, params["wt"], params["bt"])
    rel = (sk[:, None, :, :] + tk[:, :, None, :]) / 2.0          # (b, t, s, hid)
    weight = jnp.einsum('ijk,istk->ijst', q, rel) / math.sqrt(hid)
    b, l = q.shape[0], q.shape[1]
    s, t = src.shape[1], trg.shape[1]
    weight = jax.nn.softmax(weight.reshape(b, l, -1), axis=-1).reshape(b, l, s, t)
    sv = lin(src, params["wsv"], params["bsv"])
    tv = lin(trg, params["wtv"], params["btv"])
    s_ctx = jnp.einsum('ijst,isf->ijf', weight, sv)
    t_ctx = jnp.einsum('ijst,itf->ijf', weight, tv)
    x = jnp.concatenate([query, s_ctx, t_ctx], axis=-1)
    wo = jnp.concatenate([params["woq"], params["wos"], params["wot"]], axis=0)
    return jax.nn.relu(x @ wo + params["bo"])


if __name__ == "__main__":
    # Small, forward-consistent shapes (b=6 with block_b=4 exercises batch tiling,
    # batch padding, and a multi-step grid with resident weights).
    b, l = 6, 4
    query_dim, feat_dim, hid_dim = 16, 12, 32
    out_dim = hid_dim
    s_len, t_len = 8, 6

    key = jax.random.PRNGKey(0)
    keys = jax.random.split(key, 20)
    sc = 0.1

    params = {
        "wq":  sc * jax.random.normal(keys[0], (query_dim, hid_dim), jnp.float32),
        "bq":  sc * jax.random.normal(keys[1], (1, hid_dim), jnp.float32),
        "ws":  sc * jax.random.normal(keys[2], (feat_dim, hid_dim), jnp.float32),
        "bs":  sc * jax.random.normal(keys[3], (1, hid_dim), jnp.float32),
        "wt":  sc * jax.random.normal(keys[4], (feat_dim, hid_dim), jnp.float32),
        "bt":  sc * jax.random.normal(keys[5], (1, hid_dim), jnp.float32),
        "wsv": sc * jax.random.normal(keys[6], (feat_dim, hid_dim), jnp.float32),
        "bsv": sc * jax.random.normal(keys[7], (1, hid_dim), jnp.float32),
        "wtv": sc * jax.random.normal(keys[8], (feat_dim, hid_dim), jnp.float32),
        "btv": sc * jax.random.normal(keys[9], (1, hid_dim), jnp.float32),
        # out_linear weight split row-wise to match concat(query, s_ctx, t_ctx)
        "woq": sc * jax.random.normal(keys[10], (query_dim, out_dim), jnp.float32),
        "wos": sc * jax.random.normal(keys[11], (hid_dim, out_dim), jnp.float32),
        "wot": sc * jax.random.normal(keys[12], (hid_dim, out_dim), jnp.float32),
        "bo":  sc * jax.random.normal(keys[13], (1, out_dim), jnp.float32),
    }

    query = jax.random.normal(keys[14], (b, l, query_dim), jnp.float32)
    src = jax.random.normal(keys[15], (b, s_len, feat_dim), jnp.float32)
    trg = jax.random.normal(keys[16], (b, t_len, feat_dim), jnp.float32)

    out = dynamic_attention5(query, src, trg, params, block_b=4)
    out = jax.block_until_ready(out)

    ref = reference_forward(query, src, trg, params, hid_dim)
    np.testing.assert_allclose(np.asarray(out), np.asarray(ref), rtol=2e-4, atol=2e-5)

    print("KERNEL_OK")
</pallas_src>

<mosaic_0001>
module attributes {stable_mosaic.version = 11 : i64} {
  func.func @_dyn_attn_kernel(%arg0: i32, %arg1: memref<4x4x16xf32, #tpu.memory_space<vmem>>, %arg2: memref<4x8x12xf32, #tpu.memory_space<vmem>>, %arg3: memref<4x6x12xf32, #tpu.memory_space<vmem>>, %arg4: memref<16x32xf32, #tpu.memory_space<vmem>>, %arg5: memref<1x32xf32, #tpu.memory_space<vmem>>, %arg6: memref<12x64xf32, #tpu.memory_space<vmem>>, %arg7: memref<1x64xf32, #tpu.memory_space<vmem>>, %arg8: memref<12x64xf32, #tpu.memory_space<vmem>>, %arg9: memref<1x64xf32, #tpu.memory_space<vmem>>, %arg10: memref<16x32xf32, #tpu.memory_space<vmem>>, %arg11: memref<32x32xf32, #tpu.memory_space<vmem>>, %arg12: memref<32x32xf32, #tpu.memory_space<vmem>>, %arg13: memref<1x32xf32, #tpu.memory_space<vmem>>, %arg14: memref<8x48xf32, #tpu.memory_space<vmem>>, %arg15: memref<6x48xf32, #tpu.memory_space<vmem>>, %arg16: memref<48x8xf32, #tpu.memory_space<vmem>>, %arg17: memref<48x6xf32, #tpu.memory_space<vmem>>, %arg18: memref<4x4x32xf32, #tpu.memory_space<vmem>>) attributes {dimension_semantics = [#tpu.dimension_semantics<parallel>], iteration_bounds = array<i64: 2>, scalar_prefetch = 0 : i64, scratch_operands = 0 : i64, tpu.core_type = #tpu.core_type<tc>, window_params = [{transform_indices = @transform_0, window_bounds = array<i64: 4, 4, 16>}, {transform_indices = @transform_1, window_bounds = array<i64: 4, 8, 12>}, {transform_indices = @transform_2, window_bounds = array<i64: 4, 6, 12>}, {pipeline_mode = #tpu.pipeline_mode<synchronous>, transform_indices = @transform_3, window_bounds = array<i64: 16, 32>}, {pipeline_mode = #tpu.pipeline_mode<synchronous>, transform_indices = @transform_4, window_bounds = array<i64: 1, 32>}, {pipeline_mode = #tpu.pipeline_mode<synchronous>, transform_indices = @transform_5, window_bounds = array<i64: 12, 64>}, {pipeline_mode = #tpu.pipeline_mode<synchronous>, transform_indices = @transform_6, window_bounds = array<i64: 1, 64>}, {pipeline_mode = #tpu.pipeline_mode<synchronous>, transform_indices = @transform_7, window_bounds = array<i64: 12, 64>}, {pipeline_mode = #tpu.pipeline_mode<synchronous>, transform_indices = @transform_8, window_bounds = array<i64: 1, 64>}, {pipeline_mode = #tpu.pipeline_mode<synchronous>, transform_indices = @transform_9, window_bounds = array<i64: 16, 32>}, {pipeline_mode = #tpu.pipeline_mode<synchronous>, transform_indices = @transform_10, window_bounds = array<i64: 32, 32>}, {pipeline_mode = #tpu.pipeline_mode<synchronous>, transform_indices = @transform_11, window_bounds = array<i64: 32, 32>}, {pipeline_mode = #tpu.pipeline_mode<synchronous>, transform_indices = @transform_12, window_bounds = array<i64: 1, 32>}, {pipeline_mode = #tpu.pipeline_mode<synchronous>, transform_indices = @transform_13, window_bounds = array<i64: 8, 48>}, {pipeline_mode = #tpu.pipeline_mode<synchronous>, transform_indices = @transform_14, window_bounds = array<i64: 6, 48>}, {pipeline_mode = #tpu.pipeline_mode<synchronous>, transform_indices = @transform_15, window_bounds = array<i64: 48, 8>}, {pipeline_mode = #tpu.pipeline_mode<synchronous>, transform_indices = @transform_16, window_bounds = array<i64: 48, 6>}, {transform_indices = @transform_17, window_bounds = array<i64: 4, 4, 32>}]} {
    %c0 = arith.constant 0 : index
    %c0_0 = arith.constant 0 : index
    %c0_1 = arith.constant 0 : index
    %0 = vector.load %arg1[%c0, %c0_0, %c0_1] : memref<4x4x16xf32, #tpu.memory_space<vmem>>, vector<4x4x16xf32>
    %1 = vector.shape_cast %0 : vector<4x4x16xf32> to vector<16x16xf32>
    %c0_2 = arith.constant 0 : index
    %c0_3 = arith.constant 0 : index
    %c0_4 = arith.constant 0 : index
    %2 = vector.load %arg2[%c0_2, %c0_3, %c0_4] : memref<4x8x12xf32, #tpu.memory_space<vmem>>, vector<4x8x12xf32>
    %3 = vector.shape_cast %2 : vector<4x8x12xf32> to vector<32x12xf32>
    %c0_5 = arith.constant 0 : index
    %c0_6 = arith.constant 0 : index
    %c0_7 = arith.constant 0 : index
    %4 = vector.load %arg3[%c0_5, %c0_6, %c0_7] : memref<4x6x12xf32, #tpu.memory_space<vmem>>, vector<4x6x12xf32>
    %5 = vector.shape_cast %4 : vector<4x6x12xf32> to vector<24x12xf32>
    %c0_8 = arith.constant 0 : index
    %c0_9 = arith.constant 0 : index
    %6 = vector.load %arg4[%c0_8, %c0_9] : memref<16x32xf32, #tpu.memory_space<vmem>>, vector<16x32xf32>
    %cst = arith.constant dense<0.000000e+00> : vector<16x32xf32>
    %7 = tpu.matmul %1, %6, %cst {dimension_numbers = #tpu.dot_dimension_numbers<[1], [0], [0], [1], [0, 0, 1, 1], [], []>} : vector<16x16xf32>, vector<16x32xf32>, vector<16x32xf32> -> vector<16x32xf32>
    %c0_10 = arith.constant 0 : index
    %c0_11 = arith.constant 0 : index
    %8 = vector.load %arg5[%c0_10, %c0_11] : memref<1x32xf32, #tpu.memory_space<vmem>>, vector<1x32xf32>
    %9 = vector.broadcast %8 : vector<1x32xf32> to vector<16x32xf32>
    %10 = arith.addf %7, %9 : vector<16x32xf32>
    %11 = math.tanh %10 : vector<16x32xf32>
    %cst_12 = arith.constant 0.0883883461 : f32
    %12 = vector.broadcast %cst_12 : f32 to vector<16x32xf32>
    %13 = arith.mulf %11, %12 : vector<16x32xf32>
    %c0_13 = arith.constant 0 : index
    %c0_14 = arith.constant 0 : index
    %14 = vector.load %arg6[%c0_13, %c0_14] : memref<12x64xf32, #tpu.memory_space<vmem>>, vector<12x64xf32>
    %cst_15 = arith.constant dense<0.000000e+00> : vector<32x64xf32>
    %15 = tpu.matmul %3, %14, %cst_15 {dimension_numbers = #tpu.dot_dimension_numbers<[1], [0], [0], [1], [0, 0, 1, 1], [], []>} : vector<32x12xf32>, vector<12x64xf32>, vector<32x64xf32> -> vector<32x64xf32>
    %c0_16 = arith.constant 0 : index
    %c0_17 = arith.constant 0 : index
    %16 = vector.load %arg7[%c0_16, %c0_17] : memref<1x64xf32, #tpu.memory_space<vmem>>, vector<1x64xf32>
    %17 = vector.broadcast %16 : vector<1x64xf32> to vector<32x64xf32>
    %18 = arith.addf %15, %17 : vector<32x64xf32>
    %19 = math.tanh %18 : vector<32x64xf32>
    %c0_18 = arith.constant 0 : index
    %c0_19 = arith.constant 0 : index
    %20 = vector.load %arg8[%c0_18, %c0_19] : memref<12x64xf32, #tpu.memory_space<vmem>>, vector<12x64xf32>
    %cst_20 = arith.constant dense<0.000000e+00> : vector<24x64xf32>
    %21 = tpu.matmul %5, %20, %cst_20 {dimension_numbers = #tpu.dot_dimension_numbers<[1], [0], [0], [1], [0, 0, 1, 1], [], []>} : vector<24x12xf32>, vector<12x64xf32>, vector<24x64xf32> -> vector<24x64xf32>
    %c0_21 = arith.constant 0 : index
    %c0_22 = arith.constant 0 : index
    %22 = vector.load %arg9[%c0_21, %c0_22] : memref<1x64xf32, #tpu.memory_space<vmem>>, vector<1x64xf32>
    %23 = vector.broadcast %22 : vector<1x64xf32> to vector<24x64xf32>
    %24 = arith.addf %21, %23 : vector<24x64xf32>
    %25 = math.tanh %24 : vector<24x64xf32>
    %26 = vector.shape_cast %13 : vector<16x32xf32> to vector<4x4x32xf32>
    %27 = vector.extract_strided_slice %19 {offsets = [0, 0], sizes = [32, 32], strides = [1, 1]} : vector<32x64xf32> to vector<32x32xf32>
    %28 = vector.shape_cast %27 : vector<32x32xf32> to vector<4x8x32xf32>
    %29 = vector.extract_strided_slice %19 {offsets = [0, 32], sizes = [32, 32], strides = [1, 1]} : vector<32x64xf32> to vector<32x32xf32>
    %30 = vector.shape_cast %29 : vector<32x32xf32> to vector<4x8x32xf32>
    %31 = vector.extract_strided_slice %25 {offsets = [0, 0], sizes = [24, 32], strides = [1, 1]} : vector<24x64xf32> to vector<24x32xf32>
    %32 = vector.shape_cast %31 : vector<24x32xf32> to vector<4x6x32xf32>
    %33 = vector.extract_strided_slice %25 {offsets = [0, 32], sizes = [24, 32], strides = [1, 1]} : vector<24x64xf32> to vector<24x32xf32>
    %34 = vector.shape_cast %33 : vector<24x32xf32> to vector<4x6x32xf32>
    "tpu.trace_start"() <{level = 10 : i32, message = "bld,bsd->bls"}> : () -> ()
    %cst_23 = arith.constant dense<0.000000e+00> : vector<4x4x8xf32>
    %35 = tpu.matmul %26, %28, %cst_23 {dimension_numbers = #tpu.dot_dimension_numbers<[2], [2], [1], [1], [0, 0, 0, 1, 1, 1], [0], [0]>} : vector<4x4x32xf32>, vector<4x8x32xf32>, vector<4x4x8xf32> -> vector<4x4x8xf32>
    "tpu.trace_stop"() : () -> ()
    "tpu.trace_start"() <{level = 10 : i32, message = "bld,btd->blt"}> : () -> ()
    %cst_24 = arith.constant dense<0.000000e+00> : vector<4x4x6xf32>
    %36 = tpu.matmul %26, %32, %cst_24 {dimension_numbers = #tpu.dot_dimension_numbers<[2], [2], [1], [1], [0, 0, 0, 1, 1, 1], [0], [0]>} : vector<4x4x32xf32>, vector<4x6x32xf32>, vector<4x4x6xf32> -> vector<4x4x6xf32>
    "tpu.trace_stop"() : () -> ()
    %cst_25 = arith.constant dense<0xFF800000> : vector<4x4xf32>
    %37 = vector.multi_reduction <maximumf>, %35, %cst_25 [2] : vector<4x4x8xf32> to vector<4x4xf32>
    %38 = vector.shape_cast %37 : vector<4x4xf32> to vector<4x4x1xf32>
    %39 = vector.broadcast %38 : vector<4x4x1xf32> to vector<4x4x8xf32>
    %40 = arith.subf %35, %39 : vector<4x4x8xf32>
    %41 = math.exp %40 : vector<4x4x8xf32>
    %cst_26 = arith.constant dense<0xFF800000> : vector<4x4xf32>
    %42 = vector.multi_reduction <maximumf>, %36, %cst_26 [2] : vector<4x4x6xf32> to vector<4x4xf32>
    %43 = vector.shape_cast %42 : vector<4x4xf32> to vector<4x4x1xf32>
    %44 = vector.broadcast %43 : vector<4x4x1xf32> to vector<4x4x6xf32>
    %45 = arith.subf %36, %44 : vector<4x4x6xf32>
    %46 = math.exp %45 : vector<4x4x6xf32>
    %cst_27 = arith.constant dense<0.000000e+00> : vector<4x4xf32>
    %47 = vector.multi_reduction <add>, %41, %cst_27 [2] : vector<4x4x8xf32> to vector<4x4xf32>
    %48 = vector.shape_cast %47 : vector<4x4xf32> to vector<4x4x1xf32>
    %cst_28 = arith.constant dense<0.000000e+00> : vector<4x4xf32>
    %49 = vector.multi_reduction <add>, %46, %cst_28 [2] : vector<4x4x6xf32> to vector<4x4xf32>
    %50 = vector.shape_cast %49 : vector<4x4xf32> to vector<4x4x1xf32>
    %51 = arith.mulf %48, %50 : vector<4x4x1xf32>
    %52 = vector.shape_cast %41 : vector<4x4x8xf32> to vector<16x8xf32>
    %53 = vector.shape_cast %46 : vector<4x4x6xf32> to vector<16x6xf32>
    %c0_29 = arith.constant 0 : index
    %c0_30 = arith.constant 0 : index
    %54 = vector.load %arg14[%c0_29, %c0_30] : memref<8x48xf32, #tpu.memory_space<vmem>>, vector<8x48xf32>
    %cst_31 = arith.constant dense<0.000000e+00> : vector<16x48xf32>
    %55 = tpu.matmul %52, %54, %cst_31 {dimension_numbers = #tpu.dot_dimension_numbers<[1], [0], [0], [1], [0, 0, 1, 1], [], []>} : vector<16x8xf32>, vector<8x48xf32>, vector<16x48xf32> -> vector<16x48xf32>
    %c0_32 = arith.constant 0 : index
    %c0_33 = arith.constant 0 : index
    %56 = vector.load %arg15[%c0_32, %c0_33] : memref<6x48xf32, #tpu.memory_space<vmem>>, vector<6x48xf32>
    %cst_34 = arith.constant dense<0.000000e+00> : vector<16x48xf32>
    %57 = tpu.matmul %53, %56, %cst_34 {dimension_numbers = #tpu.dot_dimension_numbers<[1], [0], [0], [1], [0, 0, 1, 1], [], []>} : vector<16x6xf32>, vector<6x48xf32>, vector<16x48xf32> -> vector<16x48xf32>
    %58 = arith.mulf %55, %57 : vector<16x48xf32>
    %c0_35 = arith.constant 0 : index
    %c0_36 = arith.constant 0 : index
    %59 = vector.load %arg16[%c0_35, %c0_36] : memref<48x8xf32, #tpu.memory_space<vmem>>, vector<48x8xf32>
    %cst_37 = arith.constant dense<0.000000e+00> : vector<16x8xf32>
    %60 = tpu.matmul %58, %59, %cst_37 {dimension_numbers = #tpu.dot_dimension_numbers<[1], [0], [0], [1], [0, 0, 1, 1], [], []>} : vector<16x48xf32>, vector<48x8xf32>, vector<16x8xf32> -> vector<16x8xf32>
    %61 = vector.shape_cast %60 : vector<16x8xf32> to vector<4x4x8xf32>
    %c0_38 = arith.constant 0 : index
    %c0_39 = arith.constant 0 : index
    %62 = vector.load %arg17[%c0_38, %c0_39] : memref<48x6xf32, #tpu.memory_space<vmem>>, vector<48x6xf32>
    %cst_40 = arith.constant dense<0.000000e+00> : vector<16x6xf32>
    %63 = tpu.matmul %58, %62, %cst_40 {dimension_numbers = #tpu.dot_dimension_numbers<[1], [0], [0], [1], [0, 0, 1, 1], [], []>} : vector<16x48xf32>, vector<48x6xf32>, vector<16x6xf32> -> vector<16x6xf32>
    %64 = vector.shape_cast %63 : vector<16x6xf32> to vector<4x4x6xf32>
    %cst_41 = arith.constant 1.000000e+00 : f32
    %65 = vector.broadcast %cst_41 : f32 to vector<4x4x1xf32>
    %66 = arith.divf %65, %51 : vector<4x4x1xf32>
    %67 = vector.broadcast %66 : vector<4x4x1xf32> to vector<4x4x8xf32>
    %68 = arith.mulf %61, %67 : vector<4x4x8xf32>
    %69 = vector.broadcast %66 : vector<4x4x1xf32> to vector<4x4x6xf32>
    %70 = arith.mulf %64, %69 : vector<4x4x6xf32>
    "tpu.trace_start"() <{level = 10 : i32, message = "bls,bsh->blh"}> : () -> ()
    %cst_42 = arith.constant dense<0.000000e+00> : vector<4x4x32xf32>
    %71 = tpu.matmul %68, %30, %cst_42 {dimension_numbers = #tpu.dot_dimension_numbers<[2], [1], [1], [2], [0, 0, 0, 1, 1, 2], [0], [0]>} : vector<4x4x8xf32>, vector<4x8x32xf32>, vector<4x4x32xf32> -> vector<4x4x32xf32>
    "tpu.trace_stop"() : () -> ()
    "tpu.trace_start"() <{level = 10 : i32, message = "blt,bth->blh"}> : () -> ()
    %cst_43 = arith.constant dense<0.000000e+00> : vector<4x4x32xf32>
    %72 = tpu.matmul %70, %34, %cst_43 {dimension_numbers = #tpu.dot_dimension_numbers<[2], [1], [1], [2], [0, 0, 0, 1, 1, 2], [0], [0]>} : vector<4x4x6xf32>, vector<4x6x32xf32>, vector<4x4x32xf32> -> vector<4x4x32xf32>
    "tpu.trace_stop"() : () -> ()
    %c0_44 = arith.constant 0 : index
    %c0_45 = arith.constant 0 : index
    %73 = vector.load %arg10[%c0_44, %c0_45] : memref<16x32xf32, #tpu.memory_space<vmem>>, vector<16x32xf32>
    %cst_46 = arith.constant dense<0.000000e+00> : vector<16x32xf32>
    %74 = tpu.matmul %1, %73, %cst_46 {dimension_numbers = #tpu.dot_dimension_numbers<[1], [0], [0], [1], [0, 0, 1, 1], [], []>} : vector<16x16xf32>, vector<16x32xf32>, vector<16x32xf32> -> vector<16x32xf32>
    %75 = vector.shape_cast %71 : vector<4x4x32xf32> to vector<16x32xf32>
    %c0_47 = arith.constant 0 : index
    %c0_48 = arith.constant 0 : index
    %76 = vector.load %arg11[%c0_47, %c0_48] : memref<32x32xf32, #tpu.memory_space<vmem>>, vector<32x32xf32>
    %cst_49 = arith.constant dense<0.000000e+00> : vector<16x32xf32>
    %77 = tpu.matmul %75, %76, %cst_49 {dimension_numbers = #tpu.dot_dimension_numbers<[1], [0], [0], [1], [0, 0, 1, 1], [], []>} : vector<16x32xf32>, vector<32x32xf32>, vector<16x32xf32> -> vector<16x32xf32>
    %78 = arith.addf %74, %77 : vector<16x32xf32>
    %79 = vector.shape_cast %72 : vector<4x4x32xf32> to vector<16x32xf32>
    %c0_50 = arith.constant 0 : index
    %c0_51 = arith.constant 0 : index
    %80 = vector.load %arg12[%c0_50, %c0_51] : memref<32x32xf32, #tpu.memory_space<vmem>>, vector<32x32xf32>
    %cst_52 = arith.constant dense<0.000000e+00> : vector<16x32xf32>
    %81 = tpu.matmul %79, %80, %cst_52 {dimension_numbers = #tpu.dot_dimension_numbers<[1], [0], [0], [1], [0, 0, 1, 1], [], []>} : vector<16x32xf32>, vector<32x32xf32>, vector<16x32xf32> -> vector<16x32xf32>
    %82 = arith.addf %78, %81 : vector<16x32xf32>
    %c0_53 = arith.constant 0 : index
    %c0_54 = arith.constant 0 : index
    %83 = vector.load %arg13[%c0_53, %c0_54] : memref<1x32xf32, #tpu.memory_space<vmem>>, vector<1x32xf32>
    %84 = vector.broadcast %83 : vector<1x32xf32> to vector<16x32xf32>
    %85 = arith.addf %82, %84 : vector<16x32xf32>
    %cst_55 = arith.constant 0.000000e+00 : f32
    %86 = vector.broadcast %cst_55 : f32 to vector<16x32xf32>
    %87 = arith.maximumf %85, %86 : vector<16x32xf32>
    %88 = vector.shape_cast %87 : vector<16x32xf32> to vector<4x4x32xf32>
    %c0_56 = arith.constant 0 : index
    %c0_57 = arith.constant 0 : index
    %c0_58 = arith.constant 0 : index
    %89 = vector.load %arg18[%c0_56, %c0_57, %c0_58] : memref<4x4x32xf32, #tpu.memory_space<vmem>>, vector<4x4x32xf32>
    tpu.vector_store %arg18[%c0_56, %c0_57, %c0_58], %88 {strides = array<i32>} : memref<4x4x32xf32, #tpu.memory_space<vmem>>, vector<4x4x32xf32>,
    return
  }
  func.func @transform_0(%arg0: i32) -> (i32, i32, i32) {
    %c0_i32 = arith.constant 0 : i32
    %c0_i32_0 = arith.constant 0 : i32
    %c0_i32_1 = arith.constant 0 : i32
    return %arg0, %c0_i32, %c0_i32_0 : i32, i32, i32
  }
  func.func @transform_1(%arg0: i32) -> (i32, i32, i32) {
    %c0_i32 = arith.constant 0 : i32
    %c0_i32_0 = arith.constant 0 : i32
    %c0_i32_1 = arith.constant 0 : i32
    return %arg0, %c0_i32, %c0_i32_0 : i32, i32, i32
  }
  func.func @transform_2(%arg0: i32) -> (i32, i32, i32) {
    %c0_i32 = arith.constant 0 : i32
    %c0_i32_0 = arith.constant 0 : i32
    %c0_i32_1 = arith.constant 0 : i32
    return %arg0, %c0_i32, %c0_i32_0 : i32, i32, i32
  }
  func.func @transform_3(%arg0: i32) -> (i32, i32) {
    %c0_i32 = arith.constant 0 : i32
    %c0_i32_0 = arith.constant 0 : i32
    %c0_i32_1 = arith.constant 0 : i32
    return %c0_i32, %c0_i32_0 : i32, i32
  }
  func.func @transform_4(%arg0: i32) -> (i32, i32) {
    %c0_i32 = arith.constant 0 : i32
    %c0_i32_0 = arith.constant 0 : i32
    %c0_i32_1 = arith.constant 0 : i32
    return %c0_i32, %c0_i32_0 : i32, i32
  }
  func.func @transform_5(%arg0: i32) -> (i32, i32) {
    %c0_i32 = arith.constant 0 : i32
    %c0_i32_0 = arith.constant 0 : i32
    %c0_i32_1 = arith.constant 0 : i32
    return %c0_i32, %c0_i32_0 : i32, i32
  }
  func.func @transform_6(%arg0: i32) -> (i32, i32) {
    %c0_i32 = arith.constant 0 : i32
    %c0_i32_0 = arith.constant 0 : i32
    %c0_i32_1 = arith.constant 0 : i32
    return %c0_i32, %c0_i32_0 : i32, i32
  }
  func.func @transform_7(%arg0: i32) -> (i32, i32) {
    %c0_i32 = arith.constant 0 : i32
    %c0_i32_0 = arith.constant 0 : i32
    %c0_i32_1 = arith.constant 0 : i32
    return %c0_i32, %c0_i32_0 : i32, i32
  }
  func.func @transform_8(%arg0: i32) -> (i32, i32) {
    %c0_i32 = arith.constant 0 : i32
    %c0_i32_0 = arith.constant 0 : i32
    %c0_i32_1 = arith.constant 0 : i32
    return %c0_i32, %c0_i32_0 : i32, i32
  }
  func.func @transform_9(%arg0: i32) -> (i32, i32) {
    %c0_i32 = arith.constant 0 : i32
    %c0_i32_0 = arith.constant 0 : i32
    %c0_i32_1 = arith.constant 0 : i32
    return %c0_i32, %c0_i32_0 : i32, i32
  }
  func.func @transform_10(%arg0: i32) -> (i32, i32) {
    %c0_i32 = arith.constant 0 : i32
    %c0_i32_0 = arith.constant 0 : i32
    %c0_i32_1 = arith.constant 0 : i32
    return %c0_i32, %c0_i32_0 : i32, i32
  }
  func.func @transform_11(%arg0: i32) -> (i32, i32) {
    %c0_i32 = arith.constant 0 : i32
    %c0_i32_0 = arith.constant 0 : i32
    %c0_i32_1 = arith.constant 0 : i32
    return %c0_i32, %c0_i32_0 : i32, i32
  }
  func.func @transform_12(%arg0: i32) -> (i32, i32) {
    %c0_i32 = arith.constant 0 : i32
    %c0_i32_0 = arith.constant 0 : i32
    %c0_i32_1 = arith.constant 0 : i32
    return %c0_i32, %c0_i32_0 : i32, i32
  }
  func.func @transform_13(%arg0: i32) -> (i32, i32) {
    %c0_i32 = arith.constant 0 : i32
    %c0_i32_0 = arith.constant 0 : i32
    %c0_i32_1 = arith.constant 0 : i32
    return %c0_i32, %c0_i32_0 : i32, i32
  }
  func.func @transform_14(%arg0: i32) -> (i32, i32) {
    %c0_i32 = arith.constant 0 : i32
    %c0_i32_0 = arith.constant 0 : i32
    %c0_i32_1 = arith.constant 0 : i32
    return %c0_i32, %c0_i32_0 : i32, i32
  }
  func.func @transform_15(%arg0: i32) -> (i32, i32) {
    %c0_i32 = arith.constant 0 : i32
    %c0_i32_0 = arith.constant 0 : i32
    %c0_i32_1 = arith.constant 0 : i32
    return %c0_i32, %c0_i32_0 : i32, i32
  }
  func.func @transform_16(%arg0: i32) -> (i32, i32) {
    %c0_i32 = arith.constant 0 : i32
    %c0_i32_0 = arith.constant 0 : i32
    %c0_i32_1 = arith.constant 0 : i32
    return %c0_i32, %c0_i32_0 : i32, i32
  }
  func.func @transform_17(%arg0: i32) -> (i32, i32, i32) {
    %c0_i32 = arith.constant 0 : i32
    %c0_i32_0 = arith.constant 0 : i32
    %c0_i32_1 = arith.constant 0 : i32
    return %arg0, %c0_i32, %c0_i32_0 : i32, i32, i32
  }
}

</mosaic_0001>

<llo_original>
// kernel: tpu_custom_call.1
$region0: #{tpu_custom_call.1}
  #allocation0 [shape = 'u32[]', space=smem, size = 0x4, offset = 0x4, fixed_abs, tag = 'smem constant byte address 0x4 - core index']
  #allocation1 [shape = 'u32[144,128]{1,0:T(1,128)}', space=vmem, size = 0x12000, scoped, tag = 'internal scratch']
  %s0 = inlined_call_operand.vmem [shape: f32[8,4,16], index: 0, kind: input, shape index: {}]
  %s1 = inlined_call_operand.vmem [shape: f32[8,8,12], index: 1, kind: input, shape index: {}]
  %s2 = inlined_call_operand.vmem [shape: f32[8,6,12], index: 2, kind: input, shape index: {}]
  %s3 = inlined_call_operand.vmem [shape: f32[16,32], index: 3, kind: input, shape index: {}]
  %s4 = inlined_call_operand.hbm [shape: f32[1,32], index: 4, kind: input, shape index: {}]
  %s5 = inlined_call_operand.vmem [shape: f32[12,64], index: 5, kind: input, shape index: {}]
  %s6 = inlined_call_operand.hbm [shape: f32[1,64], index: 6, kind: input, shape index: {}]
  %s7 = inlined_call_operand.hbm [shape: f32[12,64], index: 7, kind: input, shape index: {}]
  %s8 = inlined_call_operand.hbm [shape: f32[1,64], index: 8, kind: input, shape index: {}]
  %s9 = inlined_call_operand.vmem [shape: f32[16,32], index: 9, kind: input, shape index: {}]
  %s10 = inlined_call_operand.vmem [shape: f32[32,32], index: 10, kind: input, shape index: {}]
  %s11 = inlined_call_operand.vmem [shape: f32[32,32], index: 11, kind: input, shape index: {}]
  %s12 = inlined_call_operand.hbm [shape: f32[1,32], index: 12, kind: input, shape index: {}]
  %s13 = inlined_call_operand.vmem [shape: f32[8,48], index: 13, kind: input, shape index: {}]
  %s14 = inlined_call_operand.vmem [shape: f32[6,48], index: 14, kind: input, shape index: {}]
  %s15 = inlined_call_operand.vmem [shape: f32[48,8], index: 15, kind: input, shape index: {}]
  %s16 = inlined_call_operand.vmem [shape: f32[48,6], index: 16, kind: input, shape index: {}]
  %s17 = inlined_call_operand.hbm [shape: f32[8,4,32], index: 17, kind: output, shape index: {}]
  %s18 = sld [smem:[#allocation0]]
  $region121: #{tpu_custom_call.1} parent=0
    _
  %s20 = ssub.s32 1, %s18
  %s21 = scalar_select 0, %s20, %s18
  $region1: #{tpu_custom_call.1} parent=0
    #allocation2 [shape = 'u8[512]{0}', space=vmem, size = 0x400, scoped, tag = 'input window, operand 4, single buffered']
    #allocation3 [shape = 's32[2]{0}', space=sflag, size = 0x8, scoped, tag = 'scoped memory for tpu_custom_call.1']
    #allocation4 [shape = 's32[2]{0}', space=sflag, size = 0x8, scoped, tag = 'scoped memory for tpu_custom_call.1']
    #allocation5 [shape = 'u8[512]{0}', space=vmem, size = 0x400, scoped, tag = 'input window, operand 6, single buffered']
    #allocation6 [shape = 's32[1]{0}', space=sflag, size = 0x4, scoped, tag = 'scoped memory for tpu_custom_call.1']
    #allocation7 [shape = 'u8[8192]{0}', space=vmem, size = 0x2000, scoped, tag = 'input window, operand 7, single buffered']
    #allocation8 [shape = 'u8[512]{0}', space=vmem, size = 0x400, scoped, tag = 'input window, operand 8, single buffered']
    #allocation9 [shape = 's32[1]{0}', space=sflag, size = 0x4, scoped, tag = 'scoped memory for tpu_custom_call.1']
    #allocation10 [shape = 'u8[512]{0}', space=vmem, size = 0x400, scoped, tag = 'input window, operand 12, single buffered']
    #allocation11 [shape = 'u8[16384]{0}', space=vmem, size = 0x4000, scoped, tag = 'output window, operand 0']
    %22 = vsyncpa [#allocation3], 0
    %23 = vsyncpa [#allocation6], 0
    %24 = vsyncpa [#allocation9], 0
    %25 = vsyncpa [#allocation4], 0
    %s26 = scalar_lea.sflag [#allocation4], 1
    %27 = vsyncpa %s26, 0
    loop: start=0, step=1, limit=4
    $region2: #{tpu_custom_call.1} parent=1 // loop_pre_header
      _
    $region3: #{tpu_custom_call.1} parent=1 // loop_header
      %s29 = sphi 0, %s33
      %p30 = scmp.ge.s32.totalorder %s29, 4
      %s39 = sphi 0, %s41
      %s42 = sphi 0, %s39
      %s43 = sphi 0, %s42
      %s59 = sphi 0, %s43
      %s65 = sphi 0, %s67
      %s68 = sphi 0, %s65
      %s69 = sphi 0, %s68
      %s85 = sphi 0, %s69
      %s91 = sphi 0, %s93
      %s94 = sphi 0, %s91
      %s95 = sphi 0, %s94
      %s111 = sphi 0, %s95
      %s115 = sphi 0, %s115
      %s117 = sphi 0, %s115
      %s118 = sphi 0, %s117
      %s132 = sphi 0, %s118
      %s136 = sphi 0, %s136
      %s138 = sphi 0, %s136
      %s139 = sphi 0, %s138
      %s153 = sphi 0, %s139
      %s157 = sphi 0, %s157
      %s159 = sphi 0, %s157
      %s160 = sphi 0, %s159
      %s174 = sphi 0, %s160
      %s178 = sphi 0, %s178
      %s180 = sphi 0, %s178
      %s181 = sphi 0, %s180
      %s195 = sphi 0, %s181
      %s199 = sphi 0, %s199
      %s201 = sphi 0, %s199
      %s202 = sphi 0, %s201
      %s216 = sphi 0, %s202
      %s220 = sphi 0, %s220
      %s222 = sphi 0, %s220
      %s223 = sphi 0, %s222
      %s237 = sphi 0, %s223
      %s241 = sphi 0, %s241
      %s243 = sphi 0, %s241
      %s244 = sphi 0, %s243
      %s258 = sphi 0, %s244
      %s262 = sphi 0, %s262
      %s264 = sphi 0, %s262
      %s265 = sphi 0, %s264
      %s279 = sphi 0, %s265
      %s283 = sphi 0, %s283
      %s285 = sphi 0, %s283
      %s286 = sphi 0, %s285
      %s300 = sphi 0, %s286
      %s304 = sphi 0, %s304
      %s306 = sphi 0, %s304
      %s307 = sphi 0, %s306
      %s321 = sphi 0, %s307
      %s325 = sphi 0, %s325
      %s327 = sphi 0, %s325
      %s328 = sphi 0, %s327
      %s342 = sphi 0, %s328
      %s346 = sphi 0, %s346
      %s348 = sphi 0, %s346
      %s349 = sphi 0, %s348
      %s363 = sphi 0, %s349
      %s367 = sphi 0, %s367
      %s369 = sphi 0, %s367
      %s370 = sphi 0, %s369
      %s384 = sphi 0, %s370
      %s388 = sphi 0, %s388
      %s390 = sphi 0, %s388
      %s391 = sphi 0, %s390
      %s405 = sphi 0, %s391
      %s411 = sphi 0, %s413
      %s414 = sphi 0, %s411
      %s415 = sphi 0, %s414
      %s431 = sphi 0, %s415
    $region4: #{tpu_custom_call.1} parent=1 // loop_header_branch
      %32 = sbr.rel (%p30) target = $region8
    $region5: #{tpu_custom_call.1} parent=1 // loop_body
      %s34 = ssub.s32 %s29, 1
      %s35 = ssub.s32 %s29, 2
      %s36 = sadd.s32 %s29, 1
      %s37 = ssub.s32 %s29, %s36
      %p38 = scmp.eq.s32.totalorder %s37, 0
      %s40 = sadd.s32 %s39, 1
      %s41 = scalar_select %p38, %s39, %s40
      %p44 = pneg %p38
      %p45 = scmp.eq.s32.totalorder %s29, 1
      %p46 = por %p44, %p45
      %p47 = scmp.ne.s32.totalorder %s39, %s42
      %p48 = scmp.eq.s32.totalorder %s29, 0
      %p49 = por %p47, %p48
      %p50 = scmp.ne.s32.totalorder %s39, %s42
      %p51 = scmp.eq.s32.totalorder %s34, 1
      %p52 = por %p50, %p51
      %p53 = scmp.ne.s32.totalorder %s42, %s43
      %p54 = scmp.eq.s32.totalorder %s34, 0
      %p55 = por %p53, %p54
      %p56 = scmp.ne.s32.totalorder %s42, %s43
      %p57 = scmp.eq.s32.totalorder %s35, 1
      %p58 = por %p56, %p57
      %p60 = scmp.ne.s32.totalorder %s43, %s59
      %p61 = scmp.eq.s32.totalorder %s35, 0
      %p62 = por %p60, %p61
      %s63 = ssub.s32 %s29, %s36
      %p64 = scmp.eq.s32.totalorder %s63, 0
      %s66 = sadd.s32 %s65, 1
      %s67 = scalar_select %p64, %s65, %s66
      %p70 = pneg %p64
      %p71 = scmp.eq.s32.totalorder %s29, 1
      %p72 = por %p70, %p71
      %p73 = scmp.ne.s32.totalorder %s65, %s68
      %p74 = scmp.eq.s32.totalorder %s29, 0
      %p75 = por %p73, %p74
      %p76 = scmp.ne.s32.totalorder %s65, %s68
      %p77 = scmp.eq.s32.totalorder %s34, 1
      %p78 = por %p76, %p77
      %p79 = scmp.ne.s32.totalorder %s68, %s69
      %p80 = scmp.eq.s32.totalorder %s34, 0
      %p81 = por %p79, %p80
      %p82 = scmp.ne.s32.totalorder %s68, %s69
      %p83 = scmp.eq.s32.totalorder %s35, 1
      %p84 = por %p82, %p83
      %p86 = scmp.ne.s32.totalorder %s69, %s85
      %p87 = scmp.eq.s32.totalorder %s35, 0
      %p88 = por %p86, %p87
      %s89 = ssub.s32 %s29, %s36
      %p90 = scmp.eq.s32.totalorder %s89, 0
      %s92 = sadd.s32 %s91, 1
      %s93 = scalar_select %p90, %s91, %s92
      %p96 = pneg %p90
      %p97 = scmp.eq.s32.totalorder %s29, 1
      %p98 = por %p96, %p97
      %p99 = scmp.ne.s32.totalorder %s91, %s94
      %p100 = scmp.eq.s32.totalorder %s29, 0
      %p101 = por %p99, %p100
      %p102 = scmp.ne.s32.totalorder %s91, %s94
      %p103 = scmp.eq.s32.totalorder %s34, 1
      %p104 = por %p102, %p103
      %p105 = scmp.ne.s32.totalorder %s94, %s95
      %p106 = scmp.eq.s32.totalorder %s34, 0
      %p107 = por %p105, %p106
      %p108 = scmp.ne.s32.totalorder %s94, %s95
      %p109 = scmp.eq.s32.totalorder %s35, 1
      %p110 = por %p108, %p109
      %p112 = scmp.ne.s32.totalorder %s95, %s111
      %p113 = scmp.eq.s32.totalorder %s35, 0
      %p114 = por %p112, %p113
      %s116 = sadd.s32 %s115, 1
      %p119 = scmp.eq.s32.totalorder %s29, 1
      %p120 = scmp.ne.s32.totalorder %s115, %s117
      %p121 = scmp.eq.s32.totalorder %s29, 0
      %p122 = por %p120, %p121
      %p123 = scmp.ne.s32.totalorder %s115, %s117
      %p124 = scmp.eq.s32.totalorder %s34, 1
      %p125 = por %p123, %p124
      %p126 = scmp.ne.s32.totalorder %s117, %s118
      %p127 = scmp.eq.s32.totalorder %s34, 0
      %p128 = por %p126, %p127
      %p129 = scmp.ne.s32.totalorder %s117, %s118
      %p130 = scmp.eq.s32.totalorder %s35, 1
      %p131 = por %p129, %p130
      %p133 = scmp.ne.s32.totalorder %s118, %s132
      %p134 = scmp.eq.s32.totalorder %s35, 0
      %p135 = por %p133, %p134
      %s137 = sadd.s32 %s136, 1
      %p140 = scmp.eq.s32.totalorder %s29, 1
      %p141 = scmp.ne.s32.totalorder %s136, %s138
      %p142 = scmp.eq.s32.totalorder %s29, 0
      %p143 = por %p141, %p142
      %p144 = scmp.ne.s32.totalorder %s136, %s138
      %p145 = scmp.eq.s32.totalorder %s34, 1
      %p146 = por %p144, %p145
      %p147 = scmp.ne.s32.totalorder %s138, %s139
      %p148 = scmp.eq.s32.totalorder %s34, 0
      %p149 = por %p147, %p148
      %p150 = scmp.ne.s32.totalorder %s138, %s139
      %p151 = scmp.eq.s32.totalorder %s35, 1
      %p152 = por %p150, %p151
      %p154 = scmp.ne.s32.totalorder %s139, %s153
      %p155 = scmp.eq.s32.totalorder %s35, 0
      %p156 = por %p154, %p155
      %s158 = sadd.s32 %s157, 1
      %p161 = scmp.eq.s32.totalorder %s29, 1
      %p162 = scmp.ne.s32.totalorder %s157, %s159
      %p163 = scmp.eq.s32.totalorder %s29, 0
      %p164 = por %p162, %p163
      %p165 = scmp.ne.s32.totalorder %s157, %s159
      %p166 = scmp.eq.s32.totalorder %s34, 1
      %p167 = por %p165, %p166
      %p168 = scmp.ne.s32.totalorder %s159, %s160
      %p169 = scmp.eq.s32.totalorder %s34, 0
      %p170 = por %p168, %p169
      %p171 = scmp.ne.s32.totalorder %s159, %s160
      %p172 = scmp.eq.s32.totalorder %s35, 1
      %p173 = por %p171, %p172
      %p175 = scmp.ne.s32.totalorder %s160, %s174
      %p176 = scmp.eq.s32.totalorder %s35, 0
      %p177 = por %p175, %p176
      %s179 = sadd.s32 %s178, 1
      %p182 = scmp.eq.s32.totalorder %s29, 1
      %p183 = scmp.ne.s32.totalorder %s178, %s180
      %p184 = scmp.eq.s32.totalorder %s29, 0
      %p185 = por %p183, %p184
      %p186 = scmp.ne.s32.totalorder %s178, %s180
      %p187 = scmp.eq.s32.totalorder %s34, 1
      %p188 = por %p186, %p187
      %p189 = scmp.ne.s32.totalorder %s180, %s181
      %p190 = scmp.eq.s32.totalorder %s34, 0
      %p191 = por %p189, %p190
      %p192 = scmp.ne.s32.totalorder %s180, %s181
      %p193 = scmp.eq.s32.totalorder %s35, 1
      %p194 = por %p192, %p193
      %p196 = scmp.ne.s32.totalorder %s181, %s195
      %p197 = scmp.eq.s32.totalorder %s35, 0
      %p198 = por %p196, %p197
      %s200 = sadd.s32 %s199, 1
      %p203 = scmp.eq.s32.totalorder %s29, 1
      %p204 = scmp.ne.s32.totalorder %s199, %s201
      %p205 = scmp.eq.s32.totalorder %s29, 0
      %p206 = por %p204, %p205
      %p207 = scmp.ne.s32.totalorder %s199, %s201
      %p208 = scmp.eq.s32.totalorder %s34, 1
      %p209 = por %p207, %p208
      %p210 = scmp.ne.s32.totalorder %s201, %s202
      %p211 = scmp.eq.s32.totalorder %s34, 0
      %p212 = por %p210, %p211
      %p213 = scmp.ne.s32.totalorder %s201, %s202
      %p214 = scmp.eq.s32.totalorder %s35, 1
      %p215 = por %p213, %p214
      %p217 = scmp.ne.s32.totalorder %s202, %s216
      %p218 = scmp.eq.s32.totalorder %s35, 0
      %p219 = por %p217, %p218
      %s221 = sadd.s32 %s220, 1
      %p224 = scmp.eq.s32.totalorder %s29, 1
      %p225 = scmp.ne.s32.totalorder %s220, %s222
      %p226 = scmp.eq.s32.totalorder %s29, 0
      %p227 = por %p225, %p226
      %p228 = scmp.ne.s32.totalorder %s220, %s222
      %p229 = scmp.eq.s32.totalorder %s34, 1
      %p230 = por %p228, %p229
      %p231 = scmp.ne.s32.totalorder %s222, %s223
      %p232 = scmp.eq.s32.totalorder %s34, 0
      %p233 = por %p231, %p232
      %p234 = scmp.ne.s32.totalorder %s222, %s223
      %p235 = scmp.eq.s32.totalorder %s35, 1
      %p236 = por %p234, %p235
      %p238 = scmp.ne.s32.totalorder %s223, %s237
      %p239 = scmp.eq.s32.totalorder %s35, 0
      %p240 = por %p238, %p239
      %s242 = sadd.s32 %s241, 1
      %p245 = scmp.eq.s32.totalorder %s29, 1
      %p246 = scmp.ne.s32.totalorder %s241, %s243
      %p247 = scmp.eq.s32.totalorder %s29, 0
      %p248 = por %p246, %p247
      %p249 = scmp.ne.s32.totalorder %s241, %s243
      %p250 = scmp.eq.s32.totalorder %s34, 1
      %p251 = por %p249, %p250
      %p252 = scmp.ne.s32.totalorder %s243, %s244
      %p253 = scmp.eq.s32.totalorder %s34, 0
      %p254 = por %p252, %p253
      %p255 = scmp.ne.s32.totalorder %s243, %s244
      %p256 = scmp.eq.s32.totalorder %s35, 1
      %p257 = por %p255, %p256
      %p259 = scmp.ne.s32.totalorder %s244, %s258
      %p260 = scmp.eq.s32.totalorder %s35, 0
      %p261 = por %p259, %p260
      %s263 = sadd.s32 %s262, 1
      %p266 = scmp.eq.s32.totalorder %s29, 1
      %p267 = scmp.ne.s32.totalorder %s262, %s264
      %p268 = scmp.eq.s32.totalorder %s29, 0
      %p269 = por %p267, %p268
      %p270 = scmp.ne.s32.totalorder %s262, %s264
      %p271 = scmp.eq.s32.totalorder %s34, 1
      %p272 = por %p270, %p271
      %p273 = scmp.ne.s32.totalorder %s264, %s265
      %p274 = scmp.eq.s32.totalorder %s34, 0
      %p275 = por %p273, %p274
      %p276 = scmp.ne.s32.totalorder %s264, %s265
      %p277 = scmp.eq.s32.totalorder %s35, 1
      %p278 = por %p276, %p277
      %p280 = scmp.ne.s32.totalorder %s265, %s279
      %p281 = scmp.eq.s32.totalorder %s35, 0
      %p282 = por %p280, %p281
      %s284 = sadd.s32 %s283, 1
      %p287 = scmp.eq.s32.totalorder %s29, 1
      %p288 = scmp.ne.s32.totalorder %s283, %s285
      %p289 = scmp.eq.s32.totalorder %s29, 0
      %p290 = por %p288, %p289
      %p291 = scmp.ne.s32.totalorder %s283, %s285
      %p292 = scmp.eq.s32.totalorder %s34, 1
      %p293 = por %p291, %p292
      %p294 = scmp.ne.s32.totalorder %s285, %s286
      %p295 = scmp.eq.s32.totalorder %s34, 0
      %p296 = por %p294, %p295
      %p297 = scmp.ne.s32.totalorder %s285, %s286
      %p298 = scmp.eq.s32.totalorder %s35, 1
      %p299 = por %p297, %p298
      %p301 = scmp.ne.s32.totalorder %s286, %s300
      %p302 = scmp.eq.s32.totalorder %s35, 0
      %p303 = por %p301, %p302
      %s305 = sadd.s32 %s304, 1
      %p308 = scmp.eq.s32.totalorder %s29, 1
      %p309 = scmp.ne.s32.totalorder %s304, %s306
      %p310 = scmp.eq.s32.totalorder %s29, 0
      %p311 = por %p309, %p310
      %p312 = scmp.ne.s32.totalorder %s304, %s306
      %p313 = scmp.eq.s32.totalorder %s34, 1
      %p314 = por %p312, %p313
      %p315 = scmp.ne.s32.totalorder %s306, %s307
      %p316 = scmp.eq.s32.totalorder %s34, 0
      %p317 = por %p315, %p316
      %p318 = scmp.ne.s32.totalorder %s306, %s307
      %p319 = scmp.eq.s32.totalorder %s35, 1
      %p320 = por %p318, %p319
      %p322 = scmp.ne.s32.totalorder %s307, %s321
      %p323 = scmp.eq.s32.totalorder %s35, 0
      %p324 = por %p322, %p323
      %s326 = sadd.s32 %s325, 1
      %p329 = scmp.eq.s32.totalorder %s29, 1
      %p330 = scmp.ne.s32.totalorder %s325, %s327
      %p331 = scmp.eq.s32.totalorder %s29, 0
      %p332 = por %p330, %p331
      %p333 = scmp.ne.s32.totalorder %s325, %s327
      %p334 = scmp.eq.s32.totalorder %s34, 1
      %p335 = por %p333, %p334
      %p336 = scmp.ne.s32.totalorder %s327, %s328
      %p337 = scmp.eq.s32.totalorder %s34, 0
      %p338 = por %p336, %p337
      %p339 = scmp.ne.s32.totalorder %s327, %s328
      %p340 = scmp.eq.s32.totalorder %s35, 1
      %p341 = por %p339, %p340
      %p343 = scmp.ne.s32.totalorder %s328, %s342
      %p344 = scmp.eq.s32.totalorder %s35, 0
      %p345 = por %p343, %p344
      %s347 = sadd.s32 %s346, 1
      %p350 = scmp.eq.s32.totalorder %s29, 1
      %p351 = scmp.ne.s32.totalorder %s346, %s348
      %p352 = scmp.eq.s32.totalorder %s29, 0
      %p353 = por %p351, %p352
      %p354 = scmp.ne.s32.totalorder %s346, %s348
      %p355 = scmp.eq.s32.totalorder %s34, 1
      %p356 = por %p354, %p355
      %p357 = scmp.ne.s32.totalorder %s348, %s349
      %p358 = scmp.eq.s32.totalorder %s34, 0
      %p359 = por %p357, %p358
      %p360 = scmp.ne.s32.totalorder %s348, %s349
      %p361 = scmp.eq.s32.totalorder %s35, 1
      %p362 = por %p360, %p361
      %p364 = scmp.ne.s32.totalorder %s349, %s363
      %p365 = scmp.eq.s32.totalorder %s35, 0
      %p366 = por %p364, %p365
      %s368 = sadd.s32 %s367, 1
      %p371 = scmp.eq.s32.totalorder %s29, 1
      %p372 = scmp.ne.s32.totalorder %s367, %s369
      %p373 = scmp.eq.s32.totalorder %s29, 0
      %p374 = por %p372, %p373
      %p375 = scmp.ne.s32.totalorder %s367, %s369
      %p376 = scmp.eq.s32.totalorder %s34, 1
      %p377 = por %p375, %p376
      %p378 = scmp.ne.s32.totalorder %s369, %s370
      %p379 = scmp.eq.s32.totalorder %s34, 0
      %p380 = por %p378, %p379
      %p381 = scmp.ne.s32.totalorder %s369, %s370
      %p382 = scmp.eq.s32.totalorder %s35, 1
      %p383 = por %p381, %p382
      %p385 = scmp.ne.s32.totalorder %s370, %s384
      %p386 = scmp.eq.s32.totalorder %s35, 0
      %p387 = por %p385, %p386
      %s389 = sadd.s32 %s388, 1
      %p392 = scmp.eq.s32.totalorder %s29, 1
      %p393 = scmp.ne.s32.totalorder %s388, %s390
      %p394 = scmp.eq.s32.totalorder %s29, 0
      %p395 = por %p393, %p394
      %p396 = scmp.ne.s32.totalorder %s388, %s390
      %p397 = scmp.eq.s32.totalorder %s34, 1
      %p398 = por %p396, %p397
      %p399 = scmp.ne.s32.totalorder %s390, %s391
      %p400 = scmp.eq.s32.totalorder %s34, 0
      %p401 = por %p399, %p400
      %p402 = scmp.ne.s32.totalorder %s390, %s391
      %p403 = scmp.eq.s32.totalorder %s35, 1
      %p404 = por %p402, %p403
      %p406 = scmp.ne.s32.totalorder %s391, %s405
      %p407 = scmp.eq.s32.totalorder %s35, 0
      %p408 = por %p406, %p407
      %s409 = ssub.s32 %s29, %s36
      %p410 = scmp.eq.s32.totalorder %s409, 0
      %s412 = sadd.s32 %s411, 1
      %s413 = scalar_select %p410, %s411, %s412
      %p416 = pneg %p410
      %p417 = scmp.eq.s32.totalorder %s29, 1
      %p418 = por %p416, %p417
      %p419 = scmp.ne.s32.totalorder %s411, %s414
      %p420 = scmp.eq.s32.totalorder %s29, 0
      %p421 = por %p419, %p420
      %p422 = scmp.ne.s32.totalorder %s411, %s414
      %p423 = scmp.eq.s32.totalorder %s34, 1
      %p424 = por %p422, %p423
      %p425 = scmp.ne.s32.totalorder %s414, %s415
      %p426 = scmp.eq.s32.totalorder %s34, 0
      %p427 = por %p425, %p426
      %p428 = scmp.ne.s32.totalorder %s414, %s415
      %p429 = scmp.eq.s32.totalorder %s35, 1
      %p430 = por %p428, %p429
      %p432 = scmp.ne.s32.totalorder %s415, %s431
      %p433 = scmp.eq.s32.totalorder %s35, 0
      %p434 = por %p432, %p433
      %p435 = scmp.le.s32.totalorder 1, %s29
      %p436 = scmp.lt.s32.totalorder %s29, 3
      %p437 = pnand %p435, %p436
      %p438 = pneg %p437
      // Predicated region
      $region9: #{tpu_custom_call.1} parent=5 // pred_check
        _
      $region10: #{tpu_custom_call.1} parent=5 // pred_check_branch
        %440 = sbr.rel (%p437) target = $region12
      $region11: #{tpu_custom_call.1} parent=5 // pred_region
        %s441 = ssub.s32 %s29, 1
        // Predicated region
        $region13: #{tpu_custom_call.1} parent=11 // pred_check
          %p442 = pneg %p128
        $region14: #{tpu_custom_call.1} parent=11 // pred_check_branch
          %444 = sbr.rel (%p442) target = $region16
        $region15: #{tpu_custom_call.1} parent=11 // pred_region
          _
        $region16: #{tpu_custom_call.1} parent=11 // pred_fallthru
          _
        // Predicated region
        $region17: #{tpu_custom_call.1} parent=11 // pred_check
          %p445 = pneg %p149
        $region18: #{tpu_custom_call.1} parent=11 // pred_check_branch
          %447 = sbr.rel (%p445) target = $region20
        $region19: #{tpu_custom_call.1} parent=11 // pred_region
          %s449 = ssub.s32 16, 16
          %450 = vsyncadd [#allocation3], %s449
          %s452 = sshll.u32 [#allocation2], 4
          %s453 = int_to_ptr.vmem [resolvable:$true] %s452
          %455 = dma.hbm_to_vmem [thread:$0]  %s4, 16, %s453, [#allocation3]
        $region20: #{tpu_custom_call.1} parent=11 // pred_fallthru
          _
        // Predicated region
        $region21: #{tpu_custom_call.1} parent=11 // pred_check
          %p456 = pneg %p170
        $region22: #{tpu_custom_call.1} parent=11 // pred_check_branch
          %458 = sbr.rel (%p456) target = $region24
        $region23: #{tpu_custom_call.1} parent=11 // pred_region
          _
        $region24: #{tpu_custom_call.1} parent=11 // pred_fallthru
          _
        // Predicated region
        $region25: #{tpu_custom_call.1} parent=11 // pred_check
          %p459 = pneg %p191
        $region26: #{tpu_custom_call.1} parent=11 // pred_check_branch
          %461 = sbr.rel (%p459) target = $region28
        $region27: #{tpu_custom_call.1} parent=11 // pred_region
          %s463 = ssub.s32 16, 16
          %464 = vsyncadd [#allocation6], %s463
          %s466 = sshll.u32 [#allocation5], 4
          %s467 = int_to_ptr.vmem [resolvable:$true] %s466
          %469 = dma.hbm_to_vmem [thread:$0]  %s6, 16, %s467, [#allocation6]
        $region28: #{tpu_custom_call.1} parent=11 // pred_fallthru
          _
        // Predicated region
        $region29: #{tpu_custom_call.1} parent=11 // pred_check
          %p470 = pneg %p212
        $region30: #{tpu_custom_call.1} parent=11 // pred_check_branch
          %472 = sbr.rel (%p470) target = $region32
        $region31: #{tpu_custom_call.1} parent=11 // pred_region
          %s474 = ssub.s32 256, 256
          %475 = vsyncadd [#allocation6], %s474
          %s476 = sshll.u32 [#allocation7], 4
          %s477 = int_to_ptr.vmem [resolvable:$true] %s476
          %482 = dma.hbm_to_vmem [thread:$0]  %s7, 256, %s477, [#allocation6], 128, 128, 8
        $region32: #{tpu_custom_call.1} parent=11 // pred_fallthru
          _
        // Predicated region
        $region33: #{tpu_custom_call.1} parent=11 // pred_check
          %p483 = pneg %p233
        $region34: #{tpu_custom_call.1} parent=11 // pred_check_branch
          %485 = sbr.rel (%p483) target = $region36
        $region35: #{tpu_custom_call.1} parent=11 // pred_region
          %s487 = ssub.s32 16, 16
          %488 = vsyncadd [#allocation9], %s487
          %s490 = sshll.u32 [#allocation8], 4
          %s491 = int_to_ptr.vmem [resolvable:$true] %s490
          %493 = dma.hbm_to_vmem [thread:$0]  %s8, 16, %s491, [#allocation9]
        $region36: #{tpu_custom_call.1} parent=11 // pred_fallthru
          _
        // Predicated region
        $region37: #{tpu_custom_call.1} parent=11 // pred_check
          %p494 = pneg %p254
        $region38: #{tpu_custom_call.1} parent=11 // pred_check_branch
          %496 = sbr.rel (%p494) target = $region40
        $region39: #{tpu_custom_call.1} parent=11 // pred_region
          _
        $region40: #{tpu_custom_call.1} parent=11 // pred_fallthru
          _
        // Predicated region
        $region41: #{tpu_custom_call.1} parent=11 // pred_check
          %p497 = pneg %p275
        $region42: #{tpu_custom_call.1} parent=11 // pred_check_branch
          %499 = sbr.rel (%p497) target = $region44
        $region43: #{tpu_custom_call.1} parent=11 // pred_region
          _
        $region44: #{tpu_custom_call.1} parent=11 // pred_fallthru
          _
        // Predicated region
        $region45: #{tpu_custom_call.1} parent=11 // pred_check
          %p500 = pneg %p296
        $region46: #{tpu_custom_call.1} parent=11 // pred_check_branch
          %502 = sbr.rel (%p500) target = $region48
        $region47: #{tpu_custom_call.1} parent=11 // pred_region
          _
        $region48: #{tpu_custom_call.1} parent=11 // pred_fallthru
          _
        // Predicated region
        $region49: #{tpu_custom_call.1} parent=11 // pred_check
          %p503 = pneg %p317
        $region50: #{tpu_custom_call.1} parent=11 // pred_check_branch
          %505 = sbr.rel (%p503) target = $region52
        $region51: #{tpu_custom_call.1} parent=11 // pred_region
          %s507 = ssub.s32 16, 16
          %508 = vsyncadd [#allocation9], %s507
          %s510 = sshll.u32 [#allocation10], 4
          %s511 = int_to_ptr.vmem [resolvable:$true] %s510
          %513 = dma.hbm_to_vmem [thread:$0]  %s12, 16, %s511, [#allocation9]
        $region52: #{tpu_custom_call.1} parent=11 // pred_fallthru
          _
        // Predicated region
        $region53: #{tpu_custom_call.1} parent=11 // pred_check
          %p514 = pneg %p338
        $region54: #{tpu_custom_call.1} parent=11 // pred_check_branch
          %516 = sbr.rel (%p514) target = $region56
        $region55: #{tpu_custom_call.1} parent=11 // pred_region
          _
        $region56: #{tpu_custom_call.1} parent=11 // pred_fallthru
          _
        // Predicated region
        $region57: #{tpu_custom_call.1} parent=11 // pred_check
          %p517 = pneg %p359
        $region58: #{tpu_custom_call.1} parent=11 // pred_check_branch
          %519 = sbr.rel (%p517) target = $region60
        $region59: #{tpu_custom_call.1} parent=11 // pred_region
          _
        $region60: #{tpu_custom_call.1} parent=11 // pred_fallthru
          _
        // Predicated region
        $region61: #{tpu_custom_call.1} parent=11 // pred_check
          %p520 = pneg %p380
        $region62: #{tpu_custom_call.1} parent=11 // pred_check_branch
          %522 = sbr.rel (%p520) target = $region64
        $region63: #{tpu_custom_call.1} parent=11 // pred_region
          _
        $region64: #{tpu_custom_call.1} parent=11 // pred_fallthru
          _
        // Predicated region
        $region65: #{tpu_custom_call.1} parent=11 // pred_check
          %p523 = pneg %p401
        $region66: #{tpu_custom_call.1} parent=11 // pred_check_branch
          %525 = sbr.rel (%p523) target = $region68
        $region67: #{tpu_custom_call.1} parent=11 // pred_region
          _
        $region68: #{tpu_custom_call.1} parent=11 // pred_fallthru
          _
      $region12: #{tpu_custom_call.1} parent=5 // pred_fallthru
        _
      %p526 = scmp.lt.s32.totalorder %s29, 2
      // Predicated region
      $region69: #{tpu_custom_call.1} parent=5 // pred_check
        %p527 = pneg %p526
      $region70: #{tpu_custom_call.1} parent=5 // pred_check_branch
        %529 = sbr.rel (%p527) target = $region72
      $region71: #{tpu_custom_call.1} parent=5 // pred_region
        // Predicated region
        $region73: #{tpu_custom_call.1} parent=71 // pred_check
          %p530 = pneg %p49
        $region74: #{tpu_custom_call.1} parent=71 // pred_check_branch
          %532 = sbr.rel (%p530) target = $region76
        $region75: #{tpu_custom_call.1} parent=71 // pred_region
          %s533 = smul.u32 4, %s29
          %p534 = scmp.lt.s32.totalorder %s533, 7
          %s535 = scalar_select %p534, %s533, 7
          %s536 = smul.addr %s535, 4
          %s537 = scalar_lea.vmem %s0, %s536
          %s538 = smul.u32 4, %s29
        $region76: #{tpu_custom_call.1} parent=71 // pred_fallthru
          _
        // Predicated region
        $region77: #{tpu_custom_call.1} parent=71 // pred_check
          %p539 = pneg %p75
        $region78: #{tpu_custom_call.1} parent=71 // pred_check_branch
          %541 = sbr.rel (%p539) target = $region80
        $region79: #{tpu_custom_call.1} parent=71 // pred_region
          %s542 = smul.u32 4, %s29
          %p543 = scmp.lt.s32.totalorder %s542, 7
          %s544 = scalar_select %p543, %s542, 7
          %s545 = smul.addr %s544, 8
          %s546 = scalar_lea.vmem %s1, %s545
          %s547 = smul.u32 4, %s29
        $region80: #{tpu_custom_call.1} parent=71 // pred_fallthru
          _
        // Predicated region
        $region81: #{tpu_custom_call.1} parent=71 // pred_check
          %p548 = pneg %p101
        $region82: #{tpu_custom_call.1} parent=71 // pred_check_branch
          %550 = sbr.rel (%p548) target = $region84
        $region83: #{tpu_custom_call.1} parent=71 // pred_region
          %s551 = smul.u32 4, %s29
          %p552 = scmp.lt.s32.totalorder %s551, 7
          %s553 = scalar_select %p552, %s551, 7
          %s554 = smul.addr %s553, 8
          %s555 = scalar_lea.vmem %s2, %s554
          %s556 = smul.u32 4, %s29
        $region84: #{tpu_custom_call.1} parent=71 // pred_fallthru
          _
      $region72: #{tpu_custom_call.1} parent=5 // pred_fallthru
        _
      %p557 = scmp.le.s32.totalorder 1, %s29
      %p558 = scmp.lt.s32.totalorder %s29, 3
      %p559 = pnand %p557, %p558
      %p560 = pneg %p559
      // Predicated region
      $region85: #{tpu_custom_call.1} parent=5 // pred_check
        _
      $region86: #{tpu_custom_call.1} parent=5 // pred_check_branch
        %562 = sbr.rel (%p559) target = $region88
      $region87: #{tpu_custom_call.1} parent=5 // pred_region
        %s563 = ssub.s32 %s29, 1
        // Predicated region
        $region89: #{tpu_custom_call.1} parent=87 // pred_check
          %p564 = pneg %p149
        $region90: #{tpu_custom_call.1} parent=87 // pred_check_branch
          %566 = sbr.rel (%p564) target = $region92
        $region91: #{tpu_custom_call.1} parent=87 // pred_region
          %567 = dma.done [#allocation3], 16
        $region92: #{tpu_custom_call.1} parent=87 // pred_fallthru
          _
        // Predicated region
        $region93: #{tpu_custom_call.1} parent=87 // pred_check
          %p568 = pneg %p191
        $region94: #{tpu_custom_call.1} parent=87 // pred_check_branch
          %570 = sbr.rel (%p568) target = $region96
        $region95: #{tpu_custom_call.1} parent=87 // pred_region
          %571 = dma.done [#allocation6], 16
        $region96: #{tpu_custom_call.1} parent=87 // pred_fallthru
          _
        // Predicated region
        $region97: #{tpu_custom_call.1} parent=87 // pred_check
          %p572 = pneg %p212
        $region98: #{tpu_custom_call.1} parent=87 // pred_check_branch
          %574 = sbr.rel (%p572) target = $region100
        $region99: #{tpu_custom_call.1} parent=87 // pred_region
          %575 = dma.done [#allocation6], 256
        $region100: #{tpu_custom_call.1} parent=87 // pred_fallthru
          _
        // Predicated region
        $region101: #{tpu_custom_call.1} parent=87 // pred_check
          %p576 = pneg %p233
        $region102: #{tpu_custom_call.1} parent=87 // pred_check_branch
          %578 = sbr.rel (%p576) target = $region104
        $region103: #{tpu_custom_call.1} parent=87 // pred_region
          %579 = dma.done [#allocation9], 16
        $region104: #{tpu_custom_call.1} parent=87 // pred_fallthru
          _
        // Predicated region
        $region105: #{tpu_custom_call.1} parent=87 // pred_check
          %p580 = pneg %p317
        $region106: #{tpu_custom_call.1} parent=87 // pred_check_branch
          %582 = sbr.rel (%p580) target = $region108
        $region107: #{tpu_custom_call.1} parent=87 // pred_region
          %583 = dma.done [#allocation9], 16
        $region108: #{tpu_custom_call.1} parent=87 // pred_fallthru
          _
        %s584 = smul.u32 4, %s34
        %p585 = scmp.lt.s32.totalorder %s584, 7
        %s586 = scalar_select %p585, %s584, 7
        %s587 = smul.addr %s586, 4
        %s588 = scalar_lea.vmem %s0, %s587
        %p589 = pneg %p55
        %p590 = pneg %p52
        %s591 = smul.u32 4, %s34
        %p592 = scmp.lt.s32.totalorder %s591, 7
        %s593 = scalar_select %p592, %s591, 7
        %s594 = smul.addr %s593, 8
        %s595 = scalar_lea.vmem %s1, %s594
        %p596 = pneg %p81
        %p597 = pneg %p78
        %s598 = smul.u32 4, %s34
        %p599 = scmp.lt.s32.totalorder %s598, 7
        %s600 = scalar_select %p599, %s598, 7
        %s601 = smul.addr %s600, 8
        %s602 = scalar_lea.vmem %s2, %s601
        %p603 = pneg %p107
        %p604 = pneg %p104
        %p605 = pneg %p128
        %p606 = pneg %p125
        %p607 = pneg %p149
        %p608 = pneg %p146
        %p609 = pneg %p170
        %p610 = pneg %p167
        %p611 = pneg %p191
        %p612 = pneg %p188
        %p613 = pneg %p212
        %p614 = pneg %p209
        %p615 = pneg %p233
        %p616 = pneg %p230
        %p617 = pneg %p254
        %p618 = pneg %p251
        %p619 = pneg %p275
        %p620 = pneg %p272
        %p621 = pneg %p296
        %p622 = pneg %p293
        %p623 = pneg %p317
        %p624 = pneg %p314
        %p625 = pneg %p338
        %p626 = pneg %p335
        %p627 = pneg %p359
        %p628 = pneg %p356
        %p629 = pneg %p380
        %p630 = pneg %p377
        %p631 = pneg %p401
        %p632 = pneg %p398
        %p633 = pneg %p427
        %p634 = pneg %p424
        %s635 = sand.u32 %s414, 1
        %s636 = scalar_lea.sflag [#allocation4], %s635
        %s637 = sand.u32 %s414, 1
        %s638 = smul.addr %s637, 16
        %s639 = scalar_lea.vmem [#allocation11], %s638
        %s640 = smul.u32 4, %s34
        %p641 = scmp.lt.s32.totalorder %s640, 7
        %s642 = scalar_select %p641, %s640, 7
        %s643 = smul.addr %s642, 4
        %s644 = scalar_lea.vmem %s0, %s643
        %s645 = smul.u32 4, %s34
        %s646 = smul.u32 4, %s34
        %p647 = scmp.lt.s32.totalorder %s646, 7
        %s648 = scalar_select %p647, %s646, 7
        %s649 = smul.addr %s648, 8
        %s650 = scalar_lea.vmem %s1, %s649
        %s651 = smul.u32 4, %s34
        %s652 = smul.u32 4, %s34
        %p653 = scmp.lt.s32.totalorder %s652, 7
        %s654 = scalar_select %p653, %s652, 7
        %s655 = smul.addr %s654, 8
        %s656 = scalar_lea.vmem %s2, %s655
        %s657 = smul.u32 4, %s34
        %s658 = smul.u32 4, %s34
        %v659 = vld [vmem:[%s644] sm:$0xf]
        %v660 = vld [vmem:[%s644 + $0x4] sm:$0xf]
        %v661 = vld [vmem:[%s644 + $0x8] sm:$0xf]
        %v662 = vld [vmem:[%s644 + $0xc] sm:$0xf]
        %v663 = vld [vmem:[%s650] sm:$0xff]
        %v664 = vld [vmem:[%s650 + $0x8] sm:$0xff]
        %v665 = vld [vmem:[%s650 + $0x10] sm:$0xff]
        %v666 = vld [vmem:[%s650 + $0x18] sm:$0xff]
        %v667 = vld [vmem:[%s656] sm:$0x3f]
        %v668 = vld [vmem:[%s656 + $0x8] sm:$0x3f]
        %v669 = vld [vmem:[%s656 + $0x10] sm:$0x3f]
        %v670 = vld [vmem:[%s656 + $0x18] sm:$0x3f]
        %v675 = vcombine.high %v667, %v667
        %v677 = vunpack.c.l.s4 1983009808
        %v678 = vunpack.c.0.s8 %v677
        %v679 = vlaneseq
        %v680 = vshrl.u32 %v679, 7
        %v681 = vsub.s32 %v678, %v680
        %v682 = vrot.slane %v667, %v681
        %v684 = vunpack.c.l.s4 1983009808
        %v685 = vunpack.c.0.s8 %v684
        %v686 = vlaneseq
        %v687 = vshrl.u32 %v686, 7
        %v688 = vsub.s32 %v685, %v687
        %v689 = vrot.slane %v675, %v688
        %v690 = vcombine.high %v682, %v682
        %v691 = vcombine.high %v668, %v668
        %v693 = vunpack.c.l.s4 1983009808
        %v694 = vunpack.c.0.s8 %v693
        %v695 = vlaneseq
        %v696 = vshrl.u32 %v695, 7
        %v697 = vsub.s32 %v694, %v696
        %v698 = vrot.slane %v668, %v697
        %v700 = vunpack.c.l.s4 1983009808
        %v701 = vunpack.c.0.s8 %v700
        %v702 = vlaneseq
        %v703 = vshrl.u32 %v702, 7
        %v704 = vsub.s32 %v701, %v703
        %v705 = vrot.slane %v691, %v704
        %v706 = vcombine.high %v698, %v698
        %v707 = vcombine.high %v669, %v669
        %v709 = vunpack.c.l.s4 1983009808
        %v710 = vunpack.c.0.s8 %v709
        %v711 = vlaneseq
        %v712 = vshrl.u32 %v711, 7
        %v713 = vsub.s32 %v710, %v712
        %v714 = vrot.slane %v669, %v713
        %v716 = vunpack.c.l.s4 1983009808
        %v717 = vunpack.c.0.s8 %v716
        %v718 = vlaneseq
        %v719 = vshrl.u32 %v718, 7
        %v720 = vsub.s32 %v717, %v719
        %v721 = vrot.slane %v707, %v720
        %v722 = vcombine.high %v714, %v714
        %v723 = vcombine.high %v670, %v670
        %v725 = vunpack.c.l.s4 1983009808
        %v726 = vunpack.c.0.s8 %v725
        %v727 = vlaneseq
        %v728 = vshrl.u32 %v727, 7
        %v729 = vsub.s32 %v726, %v728
        %v730 = vrot.slane %v670, %v729
        %v732 = vunpack.c.l.s4 1983009808
        %v733 = vunpack.c.0.s8 %v732
        %v734 = vlaneseq
        %v735 = vshrl.u32 %v734, 7
        %v736 = vsub.s32 %v733, %v735
        %v737 = vrot.slane %v723, %v736
        %v738 = vcombine.high %v730, %v730
        %v739 = vld [vmem:[%s3] sm:$0xff]
        %v740 = vld [vmem:[%s3 + $0x8] sm:$0xff]
        %v741 = vld [vmem:[#allocation2] sm:$0x1]
        %v743 = vlaneseq
        %v744 = vshrl.u32 %v743, 7
        %v745 = vsub.s32 0, %v744
        %v746 = vrot.slane %v741, %v745
        %v752 = vcombine.low %v659, %v660
        %v753 = vcombine.low %v661, %v662
        %vm754 = vcmask 130048
        %v755 = vsel %vm754, %v752, 0
        %v757 = vsel %vm754, %v753, 0
        %759 = vmatprep.subr.mxu0 0.0
        %760 = vmatpush1.msra.mxu0 %v739
        %761 = vmatprep.subr.mxu0 0.0
        %762 = vmatpush1.msra.mxu0 %v740
        %763 = vmatprep.subr.mxu0 0.0
        %764 = vmatpush1.msra.mxu0 0.0
        %765 = vmatprep.subr.mxu0 0.0
        %766 = vmatpush1.msra.mxu0 0.0
        %767 = vmatprep.subr.mxu0 0.0
        %768 = vmatpush1.msra.mxu0 0.0
        %769 = vmatprep.subr.mxu0 0.0
        %770 = vmatpush1.msra.mxu0 0.0
        %771 = vmatprep.subr.mxu0 0.0
        %772 = vmatpush1.msra.mxu0 0.0
        %773 = vmatprep.subr.mxu0 0.0
        %774 = vmatpush1.msra.mxu0 0.0
        %775 = vmatprep.subr.mxu0 0.0
        %776 = vmatpush1.msra.mxu0 0.0
        %777 = vmatprep.subr.mxu0 0.0
        %778 = vmatpush1.msra.mxu0 0.0
        %779 = vmatprep.subr.mxu0 0.0
        %780 = vmatpush1.msra.mxu0 0.0
        %781 = vmatprep.subr.mxu0 0.0
        %782 = vmatpush1.msra.mxu0 0.0
        %783 = vmatprep.subr.mxu0 0.0
        %784 = vmatpush1.msra.mxu0 0.0
        %785 = vmatprep.subr.mxu0 0.0
        %786 = vmatpush1.msra.mxu0 0.0
        %787 = vmatprep.subr.mxu0 0.0
        %788 = vmatpush1.msra.mxu0 0.0
        %789 = vmatprep.subr.mxu0 0.0
        %790 = vmatpush1.msra.mxu0 0.0
        %791 = vmatprep.subr.mxu0 0.0
        %792 = vmatpush1.msra.mxu0 0.0
        %793 = vmatprep.subr.mxu0 0.0
        %794 = vmatpush1.msra.mxu0 0.0
        %795 = vmatprep.subr.mxu0 0.0
        %796 = vmatpush1.msra.mxu0 0.0
        %797 = vmatprep.subr.mxu0 0.0
        %798 = vmatpush1.msra.mxu0 0.0
        %799 = vmatprep.subr.mxu0 0.0
        %800 = vmatpush1.msra.mxu0 0.0
        %801 = vmatprep.subr.mxu0 0.0
        %802 = vmatpush1.msra.mxu0 0.0
        %803 = vmatprep.subr.mxu0 0.0
        %804 = vmatpush1.msra.mxu0 0.0
        %805 = vmatprep.subr.mxu0 0.0
        %806 = vmatpush1.msra.mxu0 0.0
        %807 = vmatprep.subr.mxu0 0.0
        %808 = vmatpush1.msra.mxu0 0.0
        %809 = vmatprep.subr.mxu0 0.0
        %810 = vmatpush1.msra.mxu0 0.0
        %811 = vmatprep.subr.mxu0 0.0
        %812 = vmatpush1.msra.mxu0 0.0
        %813 = vmatprep.subr.mxu0 0.0
        %814 = vmatpush1.msra.mxu0 0.0
        %815 = vmatprep.subr.mxu0 0.0
        %816 = vmatpush1.msra.mxu0 0.0
        %817 = vmatprep.subr.mxu0 0.0
        %818 = vmatpush1.msra.mxu0 0.0
        %819 = vmatprep.subr.mxu0 0.0
        %820 = vmatpush1.msra.mxu0 0.0
        %821 = vmatprep.subr.mxu0 0.0
        %822 = vmatpush1.msra.mxu0 0.0
        %823 = vmatprep.mubr.f32.mxu0 0.0
        %824 = vmatmul.mubr.f32.gmra.mrb[0].mxu0 %v755
        %v825 = vpop.f32.mrb[0].mxu0
        %v826 = vadd.f32 %v746, %v825
        %v827 = vpop.f32.mrb[0].mxu0
        %828 = vmatprep.mubr.f32.mxu0 0.0
        %829 = vmatmul.mubr.f32.gmra.mrb[0].mxu0 %v757
        %v830 = vpop.f32.mrb[0].mxu0
        %v831 = vadd.f32 %v746, %v830
        %v832 = vpop.f32.mrb[0].mxu0
        %833 = vdwg.mxu0
        %v834 = vtanh.pop %v826
        %v835 = vtanh.pop %v831
        %v836 = vmul.f32 %v834, 0.088388346
        %v837 = vmul.f32 %v835, 0.088388346
        %v838 = vld [vmem:[%s5] sm:$0xff]
        %v839 = vld [vmem:[%s5 + $0x8] sm:$0xf]
        %v840 = vld [vmem:[#allocation5] sm:$0x1]
        %v842 = vlaneseq
        %v843 = vshrl.u32 %v842, 7
        %v844 = vsub.s32 0, %v843
        %v845 = vrot.slane %v840, %v844
        %vm847 = vcmask 97280
        %v849 = vsel %vm847, %v663, 0
        %v852 = vsel %vm847, %v664, 0
        %v855 = vsel %vm847, %v665, 0
        %v858 = vsel %vm847, %v666, 0
        %vm860 = vcmask 1043456
        %v862 = vsel %vm860, %v839, 0
        %864 = vmatprep.subr.mxu0 0.0
        %865 = vmatpush1.msra.mxu0 %v838
        %866 = vmatprep.subr.mxu0 0.0
        %867 = vmatpush1.msra.mxu0 %v862
        %868 = vmatprep.subr.mxu0 0.0
        %869 = vmatpush1.msra.mxu0 0.0
        %870 = vmatprep.subr.mxu0 0.0
        %871 = vmatpush1.msra.mxu0 0.0
        %872 = vmatprep.subr.mxu0 0.0
        %873 = vmatpush1.msra.mxu0 0.0
        %874 = vmatprep.subr.mxu0 0.0
        %875 = vmatpush1.msra.mxu0 0.0
        %876 = vmatprep.subr.mxu0 0.0
        %877 = vmatpush1.msra.mxu0 0.0
        %878 = vmatprep.subr.mxu0 0.0
        %879 = vmatpush1.msra.mxu0 0.0
        %880 = vmatprep.subr.mxu0 0.0
        %881 = vmatpush1.msra.mxu0 0.0
        %882 = vmatprep.subr.mxu0 0.0
        %883 = vmatpush1.msra.mxu0 0.0
        %884 = vmatprep.subr.mxu0 0.0
        %885 = vmatpush1.msra.mxu0 0.0
        %886 = vmatprep.subr.mxu0 0.0
        %887 = vmatpush1.msra.mxu0 0.0
        %888 = vmatprep.subr.mxu0 0.0
        %889 = vmatpush1.msra.mxu0 0.0
        %890 = vmatprep.subr.mxu0 0.0
        %891 = vmatpush1.msra.mxu0 0.0
        %892 = vmatprep.subr.mxu0 0.0
        %893 = vmatpush1.msra.mxu0 0.0
        %894 = vmatprep.subr.mxu0 0.0
        %895 = vmatpush1.msra.mxu0 0.0
        %896 = vmatprep.subr.mxu0 0.0
        %897 = vmatpush1.msra.mxu0 0.0
        %898 = vmatprep.subr.mxu0 0.0
        %899 = vmatpush1.msra.mxu0 0.0
        %900 = vmatprep.subr.mxu0 0.0
        %901 = vmatpush1.msra.mxu0 0.0
        %902 = vmatprep.subr.mxu0 0.0
        %903 = vmatpush1.msra.mxu0 0.0
        %904 = vmatprep.subr.mxu0 0.0
        %905 = vmatpush1.msra.mxu0 0.0
        %906 = vmatprep.subr.mxu0 0.0
        %907 = vmatpush1.msra.mxu0 0.0
        %908 = vmatprep.subr.mxu0 0.0
        %909 = vmatpush1.msra.mxu0 0.0
        %910 = vmatprep.subr.mxu0 0.0
        %911 = vmatpush1.msra.mxu0 0.0
        %912 = vmatprep.subr.mxu0 0.0
        %913 = vmatpush1.msra.mxu0 0.0
        %914 = vmatprep.subr.mxu0 0.0
        %915 = vmatpush1.msra.mxu0 0.0
        %916 = vmatprep.subr.mxu0 0.0
        %917 = vmatpush1.msra.mxu0 0.0
        %918 = vmatprep.subr.mxu0 0.0
        %919 = vmatpush1.msra.mxu0 0.0
        %920 = vmatprep.subr.mxu0 0.0
        %921 = vmatpush1.msra.mxu0 0.0
        %922 = vmatprep.subr.mxu0 0.0
        %923 = vmatpush1.msra.mxu0 0.0
        %924 = vmatprep.subr.mxu0 0.0
        %925 = vmatpush1.msra.mxu0 0.0
        %926 = vmatprep.subr.mxu0 0.0
        %927 = vmatpush1.msra.mxu0 0.0
        %928 = vmatprep.mubr.f32.mxu0 0.0
        %929 = vmatmul.mubr.f32.gmra.mrb[0].mxu0 %v849
        %v930 = vpop.f32.mrb[0].mxu0
        %v931 = vadd.f32 %v845, %v930
        %v932 = vpop.f32.mrb[0].mxu0
        %933 = vmatprep.mubr.f32.mxu0 0.0
        %934 = vmatmul.mubr.f32.gmra.mrb[0].mxu0 %v852
        %v935 = vpop.f32.mrb[0].mxu0
        %v936 = vadd.f32 %v845, %v935
        %v937 = vpop.f32.mrb[0].mxu0
        %938 = vmatprep.mubr.f32.mxu0 0.0
        %939 = vmatmul.mubr.f32.gmra.mrb[0].mxu0 %v855
        %v940 = vpop.f32.mrb[0].mxu0
        %v941 = vadd.f32 %v845, %v940
        %v942 = vpop.f32.mrb[0].mxu0
        %943 = vmatprep.mubr.f32.mxu0 0.0
        %944 = vmatmul.mubr.f32.gmra.mrb[0].mxu0 %v858
        %v945 = vpop.f32.mrb[0].mxu0
        %v946 = vadd.f32 %v845, %v945
        %v947 = vpop.f32.mrb[0].mxu0
        %948 = vdwg.mxu0
        %v949 = vtanh.pop %v931
        %v950 = vtanh.pop %v936
        %v951 = vtanh.pop %v941
        %v952 = vtanh.pop %v946
        %v953 = vld [vmem:[#allocation7] sm:$0xff]
        %v954 = vld [vmem:[#allocation7 + $0x8] sm:$0xf]
        %v955 = vld [vmem:[#allocation8] sm:$0x1]
        %v957 = vlaneseq
        %v958 = vshrl.u32 %v957, 7
        %v959 = vsub.s32 0, %v958
        %v960 = vrot.slane %v955, %v959
        %v962 = vcombine.low %v682, %v690
        %v963 = vcombine.low %v689, %v698
        %v965 = vunpack.c.l.s4 1983009808
        %v966 = vunpack.c.0.s8 %v965
        %v967 = vlaneseq
        %v968 = vshrl.u32 %v967, 7
        %v969 = vsub.s32 %v966, %v968
        %v970 = vrot.slane %v962, %v969
        %v972 = vunpack.c.l.s4 1983009808
        %v973 = vunpack.c.0.s8 %v972
        %v974 = vlaneseq
        %v975 = vshrl.u32 %v974, 7
        %v976 = vsub.s32 %v973, %v975
        %v977 = vrot.slane %v963, %v976
        %v978 = vcombine.low %v970, %v977
        %v979 = vcombine.low %v706, %v705
        %v980 = vcombine.low %v714, %v722
        %v982 = vunpack.c.l.s4 1983009808
        %v983 = vunpack.c.0.s8 %v982
        %v984 = vlaneseq
        %v985 = vshrl.u32 %v984, 7
        %v986 = vsub.s32 %v983, %v985
        %v987 = vrot.slane %v979, %v986
        %v989 = vunpack.c.l.s4 1983009808
        %v990 = vunpack.c.0.s8 %v989
        %v991 = vlaneseq
        %v992 = vshrl.u32 %v991, 7
        %v993 = vsub.s32 %v990, %v992
        %v994 = vrot.slane %v980, %v993
        %v995 = vcombine.low %v987, %v994
        %v996 = vcombine.low %v721, %v730
        %v997 = vcombine.low %v738, %v737
        %v999 = vunpack.c.l.s4 1983009808
        %v1000 = vunpack.c.0.s8 %v999
        %v1001 = vlaneseq
        %v1002 = vshrl.u32 %v1001, 7
        %v1003 = vsub.s32 %v1000, %v1002
        %v1004 = vrot.slane %v996, %v1003
        %v1006 = vunpack.c.l.s4 1983009808
        %v1007 = vunpack.c.0.s8 %v1006
        %v1008 = vlaneseq
        %v1009 = vshrl.u32 %v1008, 7
        %v1010 = vsub.s32 %v1007, %v1009
        %v1011 = vrot.slane %v997, %v1010
        %v1012 = vcombine.low %v1004, %v1011
        %v1013 = vsel %vm847, %v978, 0
        %v1015 = vsel %vm847, %v995, 0
        %v1017 = vsel %vm847, %v1012, 0
        %v1020 = vsel %vm860, %v954, 0
        %1022 = vmatprep.subr.mxu0 0.0
        %1023 = vmatpush1.msra.mxu0 %v953
        %1024 = vmatprep.subr.mxu0 0.0
        %1025 = vmatpush1.msra.mxu0 %v1020
        %1026 = vmatprep.subr.mxu0 0.0
        %1027 = vmatpush1.msra.mxu0 0.0
        %1028 = vmatprep.subr.mxu0 0.0
        %1029 = vmatpush1.msra.mxu0 0.0
        %1030 = vmatprep.subr.mxu0 0.0
        %1031 = vmatpush1.msra.mxu0 0.0
        %1032 = vmatprep.subr.mxu0 0.0
        %1033 = vmatpush1.msra.mxu0 0.0
        %1034 = vmatprep.subr.mxu0 0.0
        %1035 = vmatpush1.msra.mxu0 0.0
        %1036 = vmatprep.subr.mxu0 0.0
        %1037 = vmatpush1.msra.mxu0 0.0
        %1038 = vmatprep.subr.mxu0 0.0
        %1039 = vmatpush1.msra.mxu0 0.0
        %1040 = vmatprep.subr.mxu0 0.0
        %1041 = vmatpush1.msra.mxu0 0.0
        %1042 = vmatprep.subr.mxu0 0.0
        %1043 = vmatpush1.msra.mxu0 0.0
        %1044 = vmatprep.subr.mxu0 0.0
        %1045 = vmatpush1.msra.mxu0 0.0
        %1046 = vmatprep.subr.mxu0 0.0
        %1047 = vmatpush1.msra.mxu0 0.0
        %1048 = vmatprep.subr.mxu0 0.0
        %1049 = vmatpush1.msra.mxu0 0.0
        %1050 = vmatprep.subr.mxu0 0.0
        %1051 = vmatpush1.msra.mxu0 0.0
        %1052 = vmatprep.subr.mxu0 0.0
        %1053 = vmatpush1.msra.mxu0 0.0
        %1054 = vmatprep.subr.mxu0 0.0
        %1055 = vmatpush1.msra.mxu0 0.0
        %1056 = vmatprep.subr.mxu0 0.0
        %1057 = vmatpush1.msra.mxu0 0.0
        %1058 = vmatprep.subr.mxu0 0.0
        %1059 = vmatpush1.msra.mxu0 0.0
        %1060 = vmatprep.subr.mxu0 0.0
        %1061 = vmatpush1.msra.mxu0 0.0
        %1062 = vmatprep.subr.mxu0 0.0
        %1063 = vmatpush1.msra.mxu0 0.0
        %1064 = vmatprep.subr.mxu0 0.0
        %1065 = vmatpush1.msra.mxu0 0.0
        %1066 = vmatprep.subr.mxu0 0.0
        %1067 = vmatpush1.msra.mxu0 0.0
        %1068 = vmatprep.subr.mxu0 0.0
        %1069 = vmatpush1.msra.mxu0 0.0
        %1070 = vmatprep.subr.mxu0 0.0
        %1071 = vmatpush1.msra.mxu0 0.0
        %1072 = vmatprep.subr.mxu0 0.0
        %1073 = vmatpush1.msra.mxu0 0.0
        %1074 = vmatprep.subr.mxu0 0.0
        %1075 = vmatpush1.msra.mxu0 0.0
        %1076 = vmatprep.subr.mxu0 0.0
        %1077 = vmatpush1.msra.mxu0 0.0
        %1078 = vmatprep.subr.mxu0 0.0
        %1079 = vmatpush1.msra.mxu0 0.0
        %1080 = vmatprep.subr.mxu0 0.0
        %1081 = vmatpush1.msra.mxu0 0.0
        %1082 = vmatprep.subr.mxu0 0.0
        %1083 = vmatpush1.msra.mxu0 0.0
        %1084 = vmatprep.subr.mxu0 0.0
        %1085 = vmatpush1.msra.mxu0 0.0
        %1086 = vmatprep.mubr.f32.mxu0 0.0
        %1087 = vmatmul.mubr.f32.gmra.mrb[0].mxu0 %v1013
        %v1088 = vpop.f32.mrb[0].mxu0
        %v1089 = vadd.f32 %v960, %v1088
        %v1090 = vpop.f32.mrb[0].mxu0
        %1091 = vmatprep.mubr.f32.mxu0 0.0
        %1092 = vmatmul.mubr.f32.gmra.mrb[0].mxu0 %v1015
        %v1093 = vpop.f32.mrb[0].mxu0
        %v1094 = vadd.f32 %v960, %v1093
        %v1095 = vpop.f32.mrb[0].mxu0
        %1096 = vmatprep.mubr.f32.mxu0 0.0
        %1097 = vmatmul.mubr.f32.gmra.mrb[0].mxu0 %v1017
        %v1098 = vpop.f32.mrb[0].mxu0
        %v1099 = vadd.f32 %v960, %v1098
        %v1100 = vpop.f32.mrb[0].mxu0
        %1101 = vdwg.mxu0
        %v1102 = vtanh.pop %v1089
        %v1103 = vtanh.pop %v1094
        %v1104 = vtanh.pop %v1099
        %v1107 = vcombine.high %v836, %v836
        %v1108 = vcombine.high %v837, %v837
        %v1112 = vcombine.high %v1102, %v1102
        %v1114 = vunpack.c.l.s4 1983009808
        %v1115 = vunpack.c.0.s8 %v1114
        %v1116 = vlaneseq
        %v1117 = vshrl.u32 %v1116, 7
        %v1118 = vsub.s32 %v1115, %v1117
        %v1119 = vrot.slane %v1102, %v1118
        %v1121 = vunpack.c.l.s4 1983009808
        %v1122 = vunpack.c.0.s8 %v1121
        %v1123 = vlaneseq
        %v1124 = vshrl.u32 %v1123, 7
        %v1125 = vsub.s32 %v1122, %v1124
        %v1126 = vrot.slane %v1112, %v1125
        %v1127 = vcombine.high %v1119, %v1119
        %v1128 = vcombine.high %v1126, %v1126
        %v1129 = vcombine.high %v1103, %v1103
        %v1131 = vunpack.c.l.s4 1983009808
        %v1132 = vunpack.c.0.s8 %v1131
        %v1133 = vlaneseq
        %v1134 = vshrl.u32 %v1133, 7
        %v1135 = vsub.s32 %v1132, %v1134
        %v1136 = vrot.slane %v1103, %v1135
        %v1138 = vunpack.c.l.s4 1983009808
        %v1139 = vunpack.c.0.s8 %v1138
        %v1140 = vlaneseq
        %v1141 = vshrl.u32 %v1140, 7
        %v1142 = vsub.s32 %v1139, %v1141
        %v1143 = vrot.slane %v1129, %v1142
        %v1144 = vcombine.high %v1136, %v1136
        %v1145 = vcombine.high %v1143, %v1143
        %v1146 = vcombine.high %v1104, %v1104
        %v1148 = vunpack.c.l.s4 1983009808
        %v1149 = vunpack.c.0.s8 %v1148
        %v1150 = vlaneseq
        %v1151 = vshrl.u32 %v1150, 7
        %v1152 = vsub.s32 %v1149, %v1151
        %v1153 = vrot.slane %v1104, %v1152
        %v1155 = vunpack.c.l.s4 1983009808
        %v1156 = vunpack.c.0.s8 %v1155
        %v1157 = vlaneseq
        %v1158 = vshrl.u32 %v1157, 7
        %v1159 = vsub.s32 %v1156, %v1158
        %v1160 = vrot.slane %v1146, %v1159
        %v1161 = vcombine.high %v1153, %v1153
        %v1162 = vcombine.high %v1160, %v1160
        %vm1163 = vcmask 261120
        %v1164 = vsel %vm1163, %v836, 0
        %v1167 = vsel %vm1163, %v949, 0
        %1169 = vmatprep.subr.mxu0 0.0
        %1170 = vmatpush1.xpose.msra.mxu0 %v1167
        %1171 = vmatprep.subr.mxu0 0.0
        %1172 = vmatpush1.xpose.msra.mxu0 0.0
        %1173 = vmatprep.subr.mxu0 0.0
        %1174 = vmatpush1.xpose.msra.mxu0 0.0
        %1175 = vmatprep.subr.mxu0 0.0
        %1176 = vmatpush1.xpose.msra.mxu0 0.0
        %1177 = vmatprep.subr.mxu0 0.0
        %1178 = vmatpush1.xpose.msra.mxu0 0.0
        %1179 = vmatprep.subr.mxu0 0.0
        %1180 = vmatpush1.xpose.msra.mxu0 0.0
        %1181 = vmatprep.subr.mxu0 0.0
        %1182 = vmatpush1.xpose.msra.mxu0 0.0
        %1183 = vmatprep.subr.mxu0 0.0
        %1184 = vmatpush1.xpose.msra.mxu0 0.0
        %1185 = vmatprep.subr.mxu0 0.0
        %1186 = vmatpush1.xpose.msra.mxu0 0.0
        %1187 = vmatprep.subr.mxu0 0.0
        %1188 = vmatpush1.xpose.msra.mxu0 0.0
        %1189 = vmatprep.subr.mxu0 0.0
        %1190 = vmatpush1.xpose.msra.mxu0 0.0
        %1191 = vmatprep.subr.mxu0 0.0
        %1192 = vmatpush1.xpose.msra.mxu0 0.0
        %1193 = vmatprep.subr.mxu0 0.0
        %1194 = vmatpush1.xpose.msra.mxu0 0.0
        %1195 = vmatprep.subr.mxu0 0.0
        %1196 = vmatpush1.xpose.msra.mxu0 0.0
        %1197 = vmatprep.subr.mxu0 0.0
        %1198 = vmatpush1.xpose.msra.mxu0 0.0
        %1199 = vmatprep.subr.mxu0 0.0
        %1200 = vmatpush1.xpose.msra.mxu0 0.0
        %1201 = vmatprep.subr.mxu0 0.0
        %1202 = vmatpush1.xpose.msra.mxu0 0.0
        %1203 = vmatprep.subr.mxu0 0.0
        %1204 = vmatpush1.xpose.msra.mxu0 0.0
        %1205 = vmatprep.subr.mxu0 0.0
        %1206 = vmatpush1.xpose.msra.mxu0 0.0
        %1207 = vmatprep.subr.mxu0 0.0
        %1208 = vmatpush1.xpose.msra.mxu0 0.0
        %1209 = vmatprep.subr.mxu0 0.0
        %1210 = vmatpush1.xpose.msra.mxu0 0.0
        %1211 = vmatprep.subr.mxu0 0.0
        %1212 = vmatpush1.xpose.msra.mxu0 0.0
        %1213 = vmatprep.subr.mxu0 0.0
        %1214 = vmatpush1.xpose.msra.mxu0 0.0
        %1215 = vmatprep.subr.mxu0 0.0
        %1216 = vmatpush1.xpose.msra.mxu0 0.0
        %1217 = vmatprep.subr.mxu0 0.0
        %1218 = vmatpush1.xpose.msra.mxu0 0.0
        %1219 = vmatprep.subr.mxu0 0.0
        %1220 = vmatpush1.xpose.msra.mxu0 0.0
        %1221 = vmatprep.subr.mxu0 0.0
        %1222 = vmatpush1.xpose.msra.mxu0 0.0
        %1223 = vmatprep.subr.mxu0 0.0
        %1224 = vmatpush1.xpose.msra.mxu0 0.0
        %1225 = vmatprep.subr.mxu0 0.0
        %1226 = vmatpush1.xpose.msra.mxu0 0.0
        %1227 = vmatprep.subr.mxu0 0.0
        %1228 = vmatpush1.xpose.msra.mxu0 0.0
        %1229 = vmatprep.subr.mxu0 0.0
        %1230 = vmatpush1.xpose.msra.mxu0 0.0
        %1231 = vmatprep.subr.mxu0 0.0
        %1232 = vmatpush1.xpose.msra.mxu0 0.0
        %1233 = vmatprep.mubr.f32.mxu0 0.0
        %1234 = vmatmul.mubr.f32.gmra.mrb[0].mxu0 %v1164
        %v1235 = vpop.f32.mrb[0].mxu0
        %v1236 = vadd.f32 0.0, %v1235
        %v1237 = vpop.f32.mrb[0].mxu0
        %1238 = vdwg.mxu0
        %v1239 = vsel %vm1163, %v1107, 0
        %v1242 = vsel %vm1163, %v950, 0
        %1244 = vmatprep.subr.mxu0 0.0
        %1245 = vmatpush1.xpose.msra.mxu0 %v1242
        %1246 = vmatprep.subr.mxu0 0.0
        %1247 = vmatpush1.xpose.msra.mxu0 0.0
        %1248 = vmatprep.subr.mxu0 0.0
        %1249 = vmatpush1.xpose.msra.mxu0 0.0
        %1250 = vmatprep.subr.mxu0 0.0
        %1251 = vmatpush1.xpose.msra.mxu0 0.0
        %1252 = vmatprep.subr.mxu0 0.0
        %1253 = vmatpush1.xpose.msra.mxu0 0.0
        %1254 = vmatprep.subr.mxu0 0.0
        %1255 = vmatpush1.xpose.msra.mxu0 0.0
        %1256 = vmatprep.subr.mxu0 0.0
        %1257 = vmatpush1.xpose.msra.mxu0 0.0
        %1258 = vmatprep.subr.mxu0 0.0
        %1259 = vmatpush1.xpose.msra.mxu0 0.0
        %1260 = vmatprep.subr.mxu0 0.0
        %1261 = vmatpush1.xpose.msra.mxu0 0.0
        %1262 = vmatprep.subr.mxu0 0.0
        %1263 = vmatpush1.xpose.msra.mxu0 0.0
        %1264 = vmatprep.subr.mxu0 0.0
        %1265 = vmatpush1.xpose.msra.mxu0 0.0
        %1266 = vmatprep.subr.mxu0 0.0
        %1267 = vmatpush1.xpose.msra.mxu0 0.0
        %1268 = vmatprep.subr.mxu0 0.0
        %1269 = vmatpush1.xpose.msra.mxu0 0.0
        %1270 = vmatprep.subr.mxu0 0.0
        %1271 = vmatpush1.xpose.msra.mxu0 0.0
        %1272 = vmatprep.subr.mxu0 0.0
        %1273 = vmatpush1.xpose.msra.mxu0 0.0
        %1274 = vmatprep.subr.mxu0 0.0
        %1275 = vmatpush1.xpose.msra.mxu0 0.0
        %1276 = vmatprep.subr.mxu0 0.0
        %1277 = vmatpush1.xpose.msra.mxu0 0.0
        %1278 = vmatprep.subr.mxu0 0.0
        %1279 = vmatpush1.xpose.msra.mxu0 0.0
        %1280 = vmatprep.subr.mxu0 0.0
        %1281 = vmatpush1.xpose.msra.mxu0 0.0
        %1282 = vmatprep.subr.mxu0 0.0
        %1283 = vmatpush1.xpose.msra.mxu0 0.0
        %1284 = vmatprep.subr.mxu0 0.0
        %1285 = vmatpush1.xpose.msra.mxu0 0.0
        %1286 = vmatprep.subr.mxu0 0.0
        %1287 = vmatpush1.xpose.msra.mxu0 0.0
        %1288 = vmatprep.subr.mxu0 0.0
        %1289 = vmatpush1.xpose.msra.mxu0 0.0
        %1290 = vmatprep.subr.mxu0 0.0
        %1291 = vmatpush1.xpose.msra.mxu0 0.0
        %1292 = vmatprep.subr.mxu0 0.0
        %1293 = vmatpush1.xpose.msra.mxu0 0.0
        %1294 = vmatprep.subr.mxu0 0.0
        %1295 = vmatpush1.xpose.msra.mxu0 0.0
        %1296 = vmatprep.subr.mxu0 0.0
        %1297 = vmatpush1.xpose.msra.mxu0 0.0
        %1298 = vmatprep.subr.mxu0 0.0
        %1299 = vmatpush1.xpose.msra.mxu0 0.0
        %1300 = vmatprep.subr.mxu0 0.0
        %1301 = vmatpush1.xpose.msra.mxu0 0.0
        %1302 = vmatprep.subr.mxu0 0.0
        %1303 = vmatpush1.xpose.msra.mxu0 0.0
        %1304 = vmatprep.subr.mxu0 0.0
        %1305 = vmatpush1.xpose.msra.mxu0 0.0
        %1306 = vmatprep.subr.mxu0 0.0
        %1307 = vmatpush1.xpose.msra.mxu0 0.0
        %1308 = vmatprep.mubr.f32.mxu0 0.0
        %1309 = vmatmul.mubr.f32.gmra.mrb[0].mxu0 %v1239
        %v1310 = vpop.f32.mrb[0].mxu0
        %v1311 = vadd.f32 0.0, %v1310
        %v1312 = vpop.f32.mrb[0].mxu0
        %1313 = vdwg.mxu0
        %v1314 = vsel %vm1163, %v837, 0
        %v1317 = vsel %vm1163, %v951, 0
        %1319 = vmatprep.subr.mxu0 0.0
        %1320 = vmatpush1.xpose.msra.mxu0 %v1317
        %1321 = vmatprep.subr.mxu0 0.0
        %1322 = vmatpush1.xpose.msra.mxu0 0.0
        %1323 = vmatprep.subr.mxu0 0.0
        %1324 = vmatpush1.xpose.msra.mxu0 0.0
        %1325 = vmatprep.subr.mxu0 0.0
        %1326 = vmatpush1.xpose.msra.mxu0 0.0
        %1327 = vmatprep.subr.mxu0 0.0
        %1328 = vmatpush1.xpose.msra.mxu0 0.0
        %1329 = vmatprep.subr.mxu0 0.0
        %1330 = vmatpush1.xpose.msra.mxu0 0.0
        %1331 = vmatprep.subr.mxu0 0.0
        %1332 = vmatpush1.xpose.msra.mxu0 0.0
        %1333 = vmatprep.subr.mxu0 0.0
        %1334 = vmatpush1.xpose.msra.mxu0 0.0
        %1335 = vmatprep.subr.mxu0 0.0
        %1336 = vmatpush1.xpose.msra.mxu0 0.0
        %1337 = vmatprep.subr.mxu0 0.0
        %1338 = vmatpush1.xpose.msra.mxu0 0.0
        %1339 = vmatprep.subr.mxu0 0.0
        %1340 = vmatpush1.xpose.msra.mxu0 0.0
        %1341 = vmatprep.subr.mxu0 0.0
        %1342 = vmatpush1.xpose.msra.mxu0 0.0
        %1343 = vmatprep.subr.mxu0 0.0
        %1344 = vmatpush1.xpose.msra.mxu0 0.0
        %1345 = vmatprep.subr.mxu0 0.0
        %1346 = vmatpush1.xpose.msra.mxu0 0.0
        %1347 = vmatprep.subr.mxu0 0.0
        %1348 = vmatpush1.xpose.msra.mxu0 0.0
        %1349 = vmatprep.subr.mxu0 0.0
        %1350 = vmatpush1.xpose.msra.mxu0 0.0
        %1351 = vmatprep.subr.mxu0 0.0
        %1352 = vmatpush1.xpose.msra.mxu0 0.0
        %1353 = vmatprep.subr.mxu0 0.0
        %1354 = vmatpush1.xpose.msra.mxu0 0.0
        %1355 = vmatprep.subr.mxu0 0.0
        %1356 = vmatpush1.xpose.msra.mxu0 0.0
        %1357 = vmatprep.subr.mxu0 0.0
        %1358 = vmatpush1.xpose.msra.mxu0 0.0
        %1359 = vmatprep.subr.mxu0 0.0
        %1360 = vmatpush1.xpose.msra.mxu0 0.0
        %1361 = vmatprep.subr.mxu0 0.0
        %1362 = vmatpush1.xpose.msra.mxu0 0.0
        %1363 = vmatprep.subr.mxu0 0.0
        %1364 = vmatpush1.xpose.msra.mxu0 0.0
        %1365 = vmatprep.subr.mxu0 0.0
        %1366 = vmatpush1.xpose.msra.mxu0 0.0
        %1367 = vmatprep.subr.mxu0 0.0
        %1368 = vmatpush1.xpose.msra.mxu0 0.0
        %1369 = vmatprep.subr.mxu0 0.0
        %1370 = vmatpush1.xpose.msra.mxu0 0.0
        %1371 = vmatprep.subr.mxu0 0.0
        %1372 = vmatpush1.xpose.msra.mxu0 0.0
        %1373 = vmatprep.subr.mxu0 0.0
        %1374 = vmatpush1.xpose.msra.mxu0 0.0
        %1375 = vmatprep.subr.mxu0 0.0
        %1376 = vmatpush1.xpose.msra.mxu0 0.0
        %1377 = vmatprep.subr.mxu0 0.0
        %1378 = vmatpush1.xpose.msra.mxu0 0.0
        %1379 = vmatprep.subr.mxu0 0.0
        %1380 = vmatpush1.xpose.msra.mxu0 0.0
        %1381 = vmatprep.subr.mxu0 0.0
        %1382 = vmatpush1.xpose.msra.mxu0 0.0
        %1383 = vmatprep.mubr.f32.mxu0 0.0
        %1384 = vmatmul.mubr.f32.gmra.mrb[0].mxu0 %v1314
        %v1385 = vpop.f32.mrb[0].mxu0
        %v1386 = vadd.f32 0.0, %v1385
        %v1387 = vpop.f32.mrb[0].mxu0
        %1388 = vdwg.mxu0
        %v1389 = vsel %vm1163, %v1108, 0
        %v1392 = vsel %vm1163, %v952, 0
        %1394 = vmatprep.subr.mxu0 0.0
        %1395 = vmatpush1.xpose.msra.mxu0 %v1392
        %1396 = vmatprep.subr.mxu0 0.0
        %1397 = vmatpush1.xpose.msra.mxu0 0.0
        %1398 = vmatprep.subr.mxu0 0.0
        %1399 = vmatpush1.xpose.msra.mxu0 0.0
        %1400 = vmatprep.subr.mxu0 0.0
        %1401 = vmatpush1.xpose.msra.mxu0 0.0
        %1402 = vmatprep.subr.mxu0 0.0
        %1403 = vmatpush1.xpose.msra.mxu0 0.0
        %1404 = vmatprep.subr.mxu0 0.0
        %1405 = vmatpush1.xpose.msra.mxu0 0.0
        %1406 = vmatprep.subr.mxu0 0.0
        %1407 = vmatpush1.xpose.msra.mxu0 0.0
        %1408 = vmatprep.subr.mxu0 0.0
        %1409 = vmatpush1.xpose.msra.mxu0 0.0
        %1410 = vmatprep.subr.mxu0 0.0
        %1411 = vmatpush1.xpose.msra.mxu0 0.0
        %1412 = vmatprep.subr.mxu0 0.0
        %1413 = vmatpush1.xpose.msra.mxu0 0.0
        %1414 = vmatprep.subr.mxu0 0.0
        %1415 = vmatpush1.xpose.msra.mxu0 0.0
        %1416 = vmatprep.subr.mxu0 0.0
        %1417 = vmatpush1.xpose.msra.mxu0 0.0
        %1418 = vmatprep.subr.mxu0 0.0
        %1419 = vmatpush1.xpose.msra.mxu0 0.0
        %1420 = vmatprep.subr.mxu0 0.0
        %1421 = vmatpush1.xpose.msra.mxu0 0.0
        %1422 = vmatprep.subr.mxu0 0.0
        %1423 = vmatpush1.xpose.msra.mxu0 0.0
        %1424 = vmatprep.subr.mxu0 0.0
        %1425 = vmatpush1.xpose.msra.mxu0 0.0
        %1426 = vmatprep.subr.mxu0 0.0
        %1427 = vmatpush1.xpose.msra.mxu0 0.0
        %1428 = vmatprep.subr.mxu0 0.0
        %1429 = vmatpush1.xpose.msra.mxu0 0.0
        %1430 = vmatprep.subr.mxu0 0.0
        %1431 = vmatpush1.xpose.msra.mxu0 0.0
        %1432 = vmatprep.subr.mxu0 0.0
        %1433 = vmatpush1.xpose.msra.mxu0 0.0
        %1434 = vmatprep.subr.mxu0 0.0
        %1435 = vmatpush1.xpose.msra.mxu0 0.0
        %1436 = vmatprep.subr.mxu0 0.0
        %1437 = vmatpush1.xpose.msra.mxu0 0.0
        %1438 = vmatprep.subr.mxu0 0.0
        %1439 = vmatpush1.xpose.msra.mxu0 0.0
        %1440 = vmatprep.subr.mxu0 0.0
        %1441 = vmatpush1.xpose.msra.mxu0 0.0
        %1442 = vmatprep.subr.mxu0 0.0
        %1443 = vmatpush1.xpose.msra.mxu0 0.0
        %1444 = vmatprep.subr.mxu0 0.0
        %1445 = vmatpush1.xpose.msra.mxu0 0.0
        %1446 = vmatprep.subr.mxu0 0.0
        %1447 = vmatpush1.xpose.msra.mxu0 0.0
        %1448 = vmatprep.subr.mxu0 0.0
        %1449 = vmatpush1.xpose.msra.mxu0 0.0
        %1450 = vmatprep.subr.mxu0 0.0
        %1451 = vmatpush1.xpose.msra.mxu0 0.0
        %1452 = vmatprep.subr.mxu0 0.0
        %1453 = vmatpush1.xpose.msra.mxu0 0.0
        %1454 = vmatprep.subr.mxu0 0.0
        %1455 = vmatpush1.xpose.msra.mxu0 0.0
        %1456 = vmatprep.subr.mxu0 0.0
        %1457 = vmatpush1.xpose.msra.mxu0 0.0
        %1458 = vmatprep.mubr.f32.mxu0 0.0
        %1459 = vmatmul.mubr.f32.gmra.mrb[0].mxu0 %v1389
        %v1460 = vpop.f32.mrb[0].mxu0
        %v1461 = vadd.f32 0.0, %v1460
        %v1462 = vpop.f32.mrb[0].mxu0
        %1463 = vdwg.mxu0
        %v1464 = vcombine.low %v1119, %v1127
        %v1466 = vunpack.c.l.s4 1983009808
        %v1467 = vunpack.c.0.s8 %v1466
        %v1468 = vlaneseq
        %v1469 = vshrl.u32 %v1468, 7
        %v1470 = vsub.s32 %v1467, %v1469
        %v1471 = vrot.slane %v1464, %v1470
        %v1473 = vunpack.c.l.s4 1983009808
        %v1474 = vunpack.c.0.s8 %v1473
        %v1475 = vlaneseq
        %v1476 = vshrl.u32 %v1475, 7
        %v1477 = vsub.s32 %v1474, %v1476
        %v1478 = vrot.slane %v1126, %v1477
        %v1479 = vcombine.low %v1471, %v1478
        %v1480 = vsel %vm1163, %v1479, 0
        %1482 = vmatprep.subr.mxu0 0.0
        %1483 = vmatpush1.xpose.msra.mxu0 %v1480
        %1484 = vmatprep.subr.mxu0 0.0
        %1485 = vmatpush1.xpose.msra.mxu0 0.0
        %1486 = vmatprep.subr.mxu0 0.0
        %1487 = vmatpush1.xpose.msra.mxu0 0.0
        %1488 = vmatprep.subr.mxu0 0.0
        %1489 = vmatpush1.xpose.msra.mxu0 0.0
        %1490 = vmatprep.subr.mxu0 0.0
        %1491 = vmatpush1.xpose.msra.mxu0 0.0
        %1492 = vmatprep.subr.mxu0 0.0
        %1493 = vmatpush1.xpose.msra.mxu0 0.0
        %1494 = vmatprep.subr.mxu0 0.0
        %1495 = vmatpush1.xpose.msra.mxu0 0.0
        %1496 = vmatprep.subr.mxu0 0.0
        %1497 = vmatpush1.xpose.msra.mxu0 0.0
        %1498 = vmatprep.subr.mxu0 0.0
        %1499 = vmatpush1.xpose.msra.mxu0 0.0
        %1500 = vmatprep.subr.mxu0 0.0
        %1501 = vmatpush1.xpose.msra.mxu0 0.0
        %1502 = vmatprep.subr.mxu0 0.0
        %1503 = vmatpush1.xpose.msra.mxu0 0.0
        %1504 = vmatprep.subr.mxu0 0.0
        %1505 = vmatpush1.xpose.msra.mxu0 0.0
        %1506 = vmatprep.subr.mxu0 0.0
        %1507 = vmatpush1.xpose.msra.mxu0 0.0
        %1508 = vmatprep.subr.mxu0 0.0
        %1509 = vmatpush1.xpose.msra.mxu0 0.0
        %1510 = vmatprep.subr.mxu0 0.0
        %1511 = vmatpush1.xpose.msra.mxu0 0.0
        %1512 = vmatprep.subr.mxu0 0.0
        %1513 = vmatpush1.xpose.msra.mxu0 0.0
        %1514 = vmatprep.subr.mxu0 0.0
        %1515 = vmatpush1.xpose.msra.mxu0 0.0
        %1516 = vmatprep.subr.mxu0 0.0
        %1517 = vmatpush1.xpose.msra.mxu0 0.0
        %1518 = vmatprep.subr.mxu0 0.0
        %1519 = vmatpush1.xpose.msra.mxu0 0.0
        %1520 = vmatprep.subr.mxu0 0.0
        %1521 = vmatpush1.xpose.msra.mxu0 0.0
        %1522 = vmatprep.subr.mxu0 0.0
        %1523 = vmatpush1.xpose.msra.mxu0 0.0
        %1524 = vmatprep.subr.mxu0 0.0
        %1525 = vmatpush1.xpose.msra.mxu0 0.0
        %1526 = vmatprep.subr.mxu0 0.0
        %1527 = vmatpush1.xpose.msra.mxu0 0.0
        %1528 = vmatprep.subr.mxu0 0.0
        %1529 = vmatpush1.xpose.msra.mxu0 0.0
        %1530 = vmatprep.subr.mxu0 0.0
        %1531 = vmatpush1.xpose.msra.mxu0 0.0
        %1532 = vmatprep.subr.mxu0 0.0
        %1533 = vmatpush1.xpose.msra.mxu0 0.0
        %1534 = vmatprep.subr.mxu0 0.0
        %1535 = vmatpush1.xpose.msra.mxu0 0.0
        %1536 = vmatprep.subr.mxu0 0.0
        %1537 = vmatpush1.xpose.msra.mxu0 0.0
        %1538 = vmatprep.subr.mxu0 0.0
        %1539 = vmatpush1.xpose.msra.mxu0 0.0
        %1540 = vmatprep.subr.mxu0 0.0
        %1541 = vmatpush1.xpose.msra.mxu0 0.0
        %1542 = vmatprep.subr.mxu0 0.0
        %1543 = vmatpush1.xpose.msra.mxu0 0.0
        %1544 = vmatprep.subr.mxu0 0.0
        %1545 = vmatpush1.xpose.msra.mxu0 0.0
        %1546 = vmatprep.mubr.f32.mxu0 0.0
        %1547 = vmatmul.mubr.f32.gmra.mrb[0].mxu0 %v1164
        %v1548 = vpop.f32.mrb[0].mxu0
        %v1549 = vadd.f32 0.0, %v1548
        %v1550 = vpop.f32.mrb[0].mxu0
        %1551 = vdwg.mxu0
        %v1552 = vcombine.low %v1128, %v1136
        %v1554 = vunpack.c.l.s4 1983009808
        %v1555 = vunpack.c.0.s8 %v1554
        %v1556 = vlaneseq
        %v1557 = vshrl.u32 %v1556, 7
        %v1558 = vsub.s32 %v1555, %v1557
        %v1559 = vrot.slane %v1552, %v1558
        %v1561 = vunpack.c.l.s4 1983009808
        %v1562 = vunpack.c.0.s8 %v1561
        %v1563 = vlaneseq
        %v1564 = vshrl.u32 %v1563, 7
        %v1565 = vsub.s32 %v1562, %v1564
        %v1566 = vrot.slane %v1144, %v1565
        %v1567 = vcombine.low %v1559, %v1566
        %v1568 = vsel %vm1163, %v1567, 0
        %1570 = vmatprep.subr.mxu0 0.0
        %1571 = vmatpush1.xpose.msra.mxu0 %v1568
        %1572 = vmatprep.subr.mxu0 0.0
        %1573 = vmatpush1.xpose.msra.mxu0 0.0
        %1574 = vmatprep.subr.mxu0 0.0
        %1575 = vmatpush1.xpose.msra.mxu0 0.0
        %1576 = vmatprep.subr.mxu0 0.0
        %1577 = vmatpush1.xpose.msra.mxu0 0.0
        %1578 = vmatprep.subr.mxu0 0.0
        %1579 = vmatpush1.xpose.msra.mxu0 0.0
        %1580 = vmatprep.subr.mxu0 0.0
        %1581 = vmatpush1.xpose.msra.mxu0 0.0
        %1582 = vmatprep.subr.mxu0 0.0
        %1583 = vmatpush1.xpose.msra.mxu0 0.0
        %1584 = vmatprep.subr.mxu0 0.0
        %1585 = vmatpush1.xpose.msra.mxu0 0.0
        %1586 = vmatprep.subr.mxu0 0.0
        %1587 = vmatpush1.xpose.msra.mxu0 0.0
        %1588 = vmatprep.subr.mxu0 0.0
        %1589 = vmatpush1.xpose.msra.mxu0 0.0
        %1590 = vmatprep.subr.mxu0 0.0
        %1591 = vmatpush1.xpose.msra.mxu0 0.0
        %1592 = vmatprep.subr.mxu0 0.0
        %1593 = vmatpush1.xpose.msra.mxu0 0.0
        %1594 = vmatprep.subr.mxu0 0.0
        %1595 = vmatpush1.xpose.msra.mxu0 0.0
        %1596 = vmatprep.subr.mxu0 0.0
        %1597 = vmatpush1.xpose.msra.mxu0 0.0
        %1598 = vmatprep.subr.mxu0 0.0
        %1599 = vmatpush1.xpose.msra.mxu0 0.0
        %1600 = vmatprep.subr.mxu0 0.0
        %1601 = vmatpush1.xpose.msra.mxu0 0.0
        %1602 = vmatprep.subr.mxu0 0.0
        %1603 = vmatpush1.xpose.msra.mxu0 0.0
        %1604 = vmatprep.subr.mxu0 0.0
        %1605 = vmatpush1.xpose.msra.mxu0 0.0
        %1606 = vmatprep.subr.mxu0 0.0
        %1607 = vmatpush1.xpose.msra.mxu0 0.0
        %1608 = vmatprep.subr.mxu0 0.0
        %1609 = vmatpush1.xpose.msra.mxu0 0.0
        %1610 = vmatprep.subr.mxu0 0.0
        %1611 = vmatpush1.xpose.msra.mxu0 0.0
        %1612 = vmatprep.subr.mxu0 0.0
        %1613 = vmatpush1.xpose.msra.mxu0 0.0
        %1614 = vmatprep.subr.mxu0 0.0
        %1615 = vmatpush1.xpose.msra.mxu0 0.0
        %1616 = vmatprep.subr.mxu0 0.0
        %1617 = vmatpush1.xpose.msra.mxu0 0.0
        %1618 = vmatprep.subr.mxu0 0.0
        %1619 = vmatpush1.xpose.msra.mxu0 0.0
        %1620 = vmatprep.subr.mxu0 0.0
        %1621 = vmatpush1.xpose.msra.mxu0 0.0
        %1622 = vmatprep.subr.mxu0 0.0
        %1623 = vmatpush1.xpose.msra.mxu0 0.0
        %1624 = vmatprep.subr.mxu0 0.0
        %1625 = vmatpush1.xpose.msra.mxu0 0.0
        %1626 = vmatprep.subr.mxu0 0.0
        %1627 = vmatpush1.xpose.msra.mxu0 0.0
        %1628 = vmatprep.subr.mxu0 0.0
        %1629 = vmatpush1.xpose.msra.mxu0 0.0
        %1630 = vmatprep.subr.mxu0 0.0
        %1631 = vmatpush1.xpose.msra.mxu0 0.0
        %1632 = vmatprep.subr.mxu0 0.0
        %1633 = vmatpush1.xpose.msra.mxu0 0.0
        %1634 = vmatprep.mubr.f32.mxu0 0.0
        %1635 = vmatmul.mubr.f32.gmra.mrb[0].mxu0 %v1239
        %v1636 = vpop.f32.mrb[0].mxu0
        %v1637 = vadd.f32 0.0, %v1636
        %v1638 = vpop.f32.mrb[0].mxu0
        %1639 = vdwg.mxu0
        %v1640 = vcombine.low %v1143, %v1145
        %v1642 = vunpack.c.l.s4 1983009808
        %v1643 = vunpack.c.0.s8 %v1642
        %v1644 = vlaneseq
        %v1645 = vshrl.u32 %v1644, 7
        %v1646 = vsub.s32 %v1643, %v1645
        %v1647 = vrot.slane %v1640, %v1646
        %v1649 = vunpack.c.l.s4 1983009808
        %v1650 = vunpack.c.0.s8 %v1649
        %v1651 = vlaneseq
        %v1652 = vshrl.u32 %v1651, 7
        %v1653 = vsub.s32 %v1650, %v1652
        %v1654 = vrot.slane %v1153, %v1653
        %v1655 = vcombine.low %v1647, %v1654
        %v1656 = vsel %vm1163, %v1655, 0
        %1658 = vmatprep.subr.mxu0 0.0
        %1659 = vmatpush1.xpose.msra.mxu0 %v1656
        %1660 = vmatprep.subr.mxu0 0.0
        %1661 = vmatpush1.xpose.msra.mxu0 0.0
        %1662 = vmatprep.subr.mxu0 0.0
        %1663 = vmatpush1.xpose.msra.mxu0 0.0
        %1664 = vmatprep.subr.mxu0 0.0
        %1665 = vmatpush1.xpose.msra.mxu0 0.0
        %1666 = vmatprep.subr.mxu0 0.0
        %1667 = vmatpush1.xpose.msra.mxu0 0.0
        %1668 = vmatprep.subr.mxu0 0.0
        %1669 = vmatpush1.xpose.msra.mxu0 0.0
        %1670 = vmatprep.subr.mxu0 0.0
        %1671 = vmatpush1.xpose.msra.mxu0 0.0
        %1672 = vmatprep.subr.mxu0 0.0
        %1673 = vmatpush1.xpose.msra.mxu0 0.0
        %1674 = vmatprep.subr.mxu0 0.0
        %1675 = vmatpush1.xpose.msra.mxu0 0.0
        %1676 = vmatprep.subr.mxu0 0.0
        %1677 = vmatpush1.xpose.msra.mxu0 0.0
        %1678 = vmatprep.subr.mxu0 0.0
        %1679 = vmatpush1.xpose.msra.mxu0 0.0
        %1680 = vmatprep.subr.mxu0 0.0
        %1681 = vmatpush1.xpose.msra.mxu0 0.0
        %1682 = vmatprep.subr.mxu0 0.0
        %1683 = vmatpush1.xpose.msra.mxu0 0.0
        %1684 = vmatprep.subr.mxu0 0.0
        %1685 = vmatpush1.xpose.msra.mxu0 0.0
        %1686 = vmatprep.subr.mxu0 0.0
        %1687 = vmatpush1.xpose.msra.mxu0 0.0
        %1688 = vmatprep.subr.mxu0 0.0
        %1689 = vmatpush1.xpose.msra.mxu0 0.0
        %1690 = vmatprep.subr.mxu0 0.0
        %1691 = vmatpush1.xpose.msra.mxu0 0.0
        %1692 = vmatprep.subr.mxu0 0.0
        %1693 = vmatpush1.xpose.msra.mxu0 0.0
        %1694 = vmatprep.subr.mxu0 0.0
        %1695 = vmatpush1.xpose.msra.mxu0 0.0
        %1696 = vmatprep.subr.mxu0 0.0
        %1697 = vmatpush1.xpose.msra.mxu0 0.0
        %1698 = vmatprep.subr.mxu0 0.0
        %1699 = vmatpush1.xpose.msra.mxu0 0.0
        %1700 = vmatprep.subr.mxu0 0.0
        %1701 = vmatpush1.xpose.msra.mxu0 0.0
        %1702 = vmatprep.subr.mxu0 0.0
        %1703 = vmatpush1.xpose.msra.mxu0 0.0
        %1704 = vmatprep.subr.mxu0 0.0
        %1705 = vmatpush1.xpose.msra.mxu0 0.0
        %1706 = vmatprep.subr.mxu0 0.0
        %1707 = vmatpush1.xpose.msra.mxu0 0.0
        %1708 = vmatprep.subr.mxu0 0.0
        %1709 = vmatpush1.xpose.msra.mxu0 0.0
        %1710 = vmatprep.subr.mxu0 0.0
        %1711 = vmatpush1.xpose.msra.mxu0 0.0
        %1712 = vmatprep.subr.mxu0 0.0
        %1713 = vmatpush1.xpose.msra.mxu0 0.0
        %1714 = vmatprep.subr.mxu0 0.0
        %1715 = vmatpush1.xpose.msra.mxu0 0.0
        %1716 = vmatprep.subr.mxu0 0.0
        %1717 = vmatpush1.xpose.msra.mxu0 0.0
        %1718 = vmatprep.subr.mxu0 0.0
        %1719 = vmatpush1.xpose.msra.mxu0 0.0
        %1720 = vmatprep.subr.mxu0 0.0
        %1721 = vmatpush1.xpose.msra.mxu0 0.0
        %1722 = vmatprep.mubr.f32.mxu0 0.0
        %1723 = vmatmul.mubr.f32.gmra.mrb[0].mxu0 %v1314
        %v1724 = vpop.f32.mrb[0].mxu0
        %v1725 = vadd.f32 0.0, %v1724
        %v1726 = vpop.f32.mrb[0].mxu0
        %1727 = vdwg.mxu0
        %v1728 = vcombine.low %v1161, %v1160
        %v1730 = vunpack.c.l.s4 1983009808
        %v1731 = vunpack.c.0.s8 %v1730
        %v1732 = vlaneseq
        %v1733 = vshrl.u32 %v1732, 7
        %v1734 = vsub.s32 %v1731, %v1733
        %v1735 = vrot.slane %v1728, %v1734
        %v1737 = vunpack.c.l.s4 1983009808
        %v1738 = vunpack.c.0.s8 %v1737
        %v1739 = vlaneseq
        %v1740 = vshrl.u32 %v1739, 7
        %v1741 = vsub.s32 %v1738, %v1740
        %v1742 = vrot.slane %v1162, %v1741
        %v1743 = vcombine.low %v1735, %v1742
        %v1744 = vsel %vm1163, %v1743, 0
        %1746 = vmatprep.subr.mxu0 0.0
        %1747 = vmatpush1.xpose.msra.mxu0 %v1744
        %1748 = vmatprep.subr.mxu0 0.0
        %1749 = vmatpush1.xpose.msra.mxu0 0.0
        %1750 = vmatprep.subr.mxu0 0.0
        %1751 = vmatpush1.xpose.msra.mxu0 0.0
        %1752 = vmatprep.subr.mxu0 0.0
        %1753 = vmatpush1.xpose.msra.mxu0 0.0
        %1754 = vmatprep.subr.mxu0 0.0
        %1755 = vmatpush1.xpose.msra.mxu0 0.0
        %1756 = vmatprep.subr.mxu0 0.0
        %1757 = vmatpush1.xpose.msra.mxu0 0.0
        %1758 = vmatprep.subr.mxu0 0.0
        %1759 = vmatpush1.xpose.msra.mxu0 0.0
        %1760 = vmatprep.subr.mxu0 0.0
        %1761 = vmatpush1.xpose.msra.mxu0 0.0
        %1762 = vmatprep.subr.mxu0 0.0
        %1763 = vmatpush1.xpose.msra.mxu0 0.0
        %1764 = vmatprep.subr.mxu0 0.0
        %1765 = vmatpush1.xpose.msra.mxu0 0.0
        %1766 = vmatprep.subr.mxu0 0.0
        %1767 = vmatpush1.xpose.msra.mxu0 0.0
        %1768 = vmatprep.subr.mxu0 0.0
        %1769 = vmatpush1.xpose.msra.mxu0 0.0
        %1770 = vmatprep.subr.mxu0 0.0
        %1771 = vmatpush1.xpose.msra.mxu0 0.0
        %1772 = vmatprep.subr.mxu0 0.0
        %1773 = vmatpush1.xpose.msra.mxu0 0.0
        %1774 = vmatprep.subr.mxu0 0.0
        %1775 = vmatpush1.xpose.msra.mxu0 0.0
        %1776 = vmatprep.subr.mxu0 0.0
        %1777 = vmatpush1.xpose.msra.mxu0 0.0
        %1778 = vmatprep.subr.mxu0 0.0
        %1779 = vmatpush1.xpose.msra.mxu0 0.0
        %1780 = vmatprep.subr.mxu0 0.0
        %1781 = vmatpush1.xpose.msra.mxu0 0.0
        %1782 = vmatprep.subr.mxu0 0.0
        %1783 = vmatpush1.xpose.msra.mxu0 0.0
        %1784 = vmatprep.subr.mxu0 0.0
        %1785 = vmatpush1.xpose.msra.mxu0 0.0
        %1786 = vmatprep.subr.mxu0 0.0
        %1787 = vmatpush1.xpose.msra.mxu0 0.0
        %1788 = vmatprep.subr.mxu0 0.0
        %1789 = vmatpush1.xpose.msra.mxu0 0.0
        %1790 = vmatprep.subr.mxu0 0.0
        %1791 = vmatpush1.xpose.msra.mxu0 0.0
        %1792 = vmatprep.subr.mxu0 0.0
        %1793 = vmatpush1.xpose.msra.mxu0 0.0
        %1794 = vmatprep.subr.mxu0 0.0
        %1795 = vmatpush1.xpose.msra.mxu0 0.0
        %1796 = vmatprep.subr.mxu0 0.0
        %1797 = vmatpush1.xpose.msra.mxu0 0.0
        %1798 = vmatprep.subr.mxu0 0.0
        %1799 = vmatpush1.xpose.msra.mxu0 0.0
        %1800 = vmatprep.subr.mxu0 0.0
        %1801 = vmatpush1.xpose.msra.mxu0 0.0
        %1802 = vmatprep.subr.mxu0 0.0
        %1803 = vmatpush1.xpose.msra.mxu0 0.0
        %1804 = vmatprep.subr.mxu0 0.0
        %1805 = vmatpush1.xpose.msra.mxu0 0.0
        %1806 = vmatprep.subr.mxu0 0.0
        %1807 = vmatpush1.xpose.msra.mxu0 0.0
        %1808 = vmatprep.subr.mxu0 0.0
        %1809 = vmatpush1.xpose.msra.mxu0 0.0
        %1810 = vmatprep.mubr.f32.mxu0 0.0
        %1811 = vmatmul.mubr.f32.gmra.mrb[0].mxu0 %v1389
        %v1812 = vpop.f32.mrb[0].mxu0
        %v1813 = vadd.f32 0.0, %v1812
        %v1814 = vpop.f32.mrb[0].mxu0
        %1815 = vdwg.mxu0
        %vm1816 = vcmask 60416
        %v1817 = vsel %vm1816, %v1236, -inf
        %1818 = vmax.xlane.f32.xlu0 %v1817
        %v1819 = vpop.xlane.xlu0 %1818
        %v1820 = vsel %vm1816, %v1311, -inf
        %1821 = vmax.xlane.f32.xlu0 %v1820
        %v1822 = vpop.xlane.xlu0 %1821
        %v1823 = vsel %vm1816, %v1386, -inf
        %1824 = vmax.xlane.f32.xlu0 %v1823
        %v1825 = vpop.xlane.xlu0 %1824
        %v1826 = vsel %vm1816, %v1461, -inf
        %1827 = vmax.xlane.f32.xlu0 %v1826
        %v1828 = vpop.xlane.xlu0 %1827
        %v1829 = vsub.f32 %v1236, %v1819
        %v1830 = vsub.f32 %v1311, %v1822
        %v1831 = vsub.f32 %v1386, %v1825
        %v1832 = vsub.f32 %v1461, %v1828
        %v1833 = vmul.f32 %v1829, 1.442695
        %v1834 = vpow.pop %v1833
        %v1835 = vmul.f32 %v1830, 1.442695
        %v1836 = vpow.pop %v1835
        %v1837 = vmul.f32 %v1831, 1.442695
        %v1838 = vpow.pop %v1837
        %v1839 = vmul.f32 %v1832, 1.442695
        %v1840 = vpow.pop %v1839
        %vm1841 = vcmask 44032
        %v1842 = vsel %vm1841, %v1549, -inf
        %1843 = vmax.xlane.f32.xlu0 %v1842
        %v1844 = vpop.xlane.xlu0 %1843
        %v1845 = vsel %vm1841, %v1637, -inf
        %1846 = vmax.xlane.f32.xlu0 %v1845
        %v1847 = vpop.xlane.xlu0 %1846
        %v1848 = vsel %vm1841, %v1725, -inf
        %1849 = vmax.xlane.f32.xlu0 %v1848
        %v1850 = vpop.xlane.xlu0 %1849
        %v1851 = vsel %vm1841, %v1813, -inf
        %1852 = vmax.xlane.f32.xlu0 %v1851
        %v1853 = vpop.xlane.xlu0 %1852
        %v1854 = vsub.f32 %v1549, %v1844
        %v1855 = vsub.f32 %v1637, %v1847
        %v1856 = vsub.f32 %v1725, %v1850
        %v1857 = vsub.f32 %v1813, %v1853
        %v1858 = vmul.f32 %v1854, 1.442695
        %v1859 = vpow.pop %v1858
        %v1860 = vmul.f32 %v1855, 1.442695
        %v1861 = vpow.pop %v1860
        %v1862 = vmul.f32 %v1856, 1.442695
        %v1863 = vpow.pop %v1862
        %v1864 = vmul.f32 %v1857, 1.442695
        %v1865 = vpow.pop %v1864
        %v1866 = vsel %vm1816, %v1834, 0.0
        %1867 = vadd.xlane.f32.xlu0 %v1866
        %v1868 = vpop.xlane.xlu0 %1867
        %v1869 = vsel %vm1816, %v1836, 0.0
        %1870 = vadd.xlane.f32.xlu0 %v1869
        %v1871 = vpop.xlane.xlu0 %1870
        %v1872 = vsel %vm1816, %v1838, 0.0
        %1873 = vadd.xlane.f32.xlu0 %v1872
        %v1874 = vpop.xlane.xlu0 %1873
        %v1875 = vsel %vm1816, %v1840, 0.0
        %1876 = vadd.xlane.f32.xlu0 %v1875
        %v1877 = vpop.xlane.xlu0 %1876
        %v1878 = vsel %vm1841, %v1859, 0.0
        %1879 = vadd.xlane.f32.xlu0 %v1878
        %v1880 = vpop.xlane.xlu0 %1879
        %v1881 = vsel %vm1841, %v1861, 0.0
        %1882 = vadd.xlane.f32.xlu0 %v1881
        %v1883 = vpop.xlane.xlu0 %1882
        %v1884 = vsel %vm1841, %v1863, 0.0
        %1885 = vadd.xlane.f32.xlu0 %v1884
        %v1886 = vpop.xlane.xlu0 %1885
        %v1887 = vsel %vm1841, %v1865, 0.0
        %1888 = vadd.xlane.f32.xlu0 %v1887
        %v1889 = vpop.xlane.xlu0 %1888
        %v1890 = vmul.f32 %v1868, %v1880
        %v1891 = vmul.f32 %v1871, %v1883
        %v1892 = vmul.f32 %v1874, %v1886
        %v1893 = vmul.f32 %v1877, %v1889
        %v1894 = vld [vmem:[%s13] sm:$0xff]
        %v1899 = vcombine.low %v1834, %v1836
        %v1900 = vcombine.low %v1838, %v1840
        %vm1901 = vcmask 64512
        %v1902 = vsel %vm1901, %v1899, 0
        %v1904 = vsel %vm1901, %v1900, 0
        %1906 = vmatprep.subr.mxu0 0.0
        %1907 = vmatpush1.msra.mxu0 %v1894
        %1908 = vmatprep.subr.mxu0 0.0
        %1909 = vmatpush1.msra.mxu0 0.0
        %1910 = vmatprep.subr.mxu0 0.0
        %1911 = vmatpush1.msra.mxu0 0.0
        %1912 = vmatprep.subr.mxu0 0.0
        %1913 = vmatpush1.msra.mxu0 0.0
        %1914 = vmatprep.subr.mxu0 0.0
        %1915 = vmatpush1.msra.mxu0 0.0
        %1916 = vmatprep.subr.mxu0 0.0
        %1917 = vmatpush1.msra.mxu0 0.0
        %1918 = vmatprep.subr.mxu0 0.0
        %1919 = vmatpush1.msra.mxu0 0.0
        %1920 = vmatprep.subr.mxu0 0.0
        %1921 = vmatpush1.msra.mxu0 0.0
        %1922 = vmatprep.subr.mxu0 0.0
        %1923 = vmatpush1.msra.mxu0 0.0
        %1924 = vmatprep.subr.mxu0 0.0
        %1925 = vmatpush1.msra.mxu0 0.0
        %1926 = vmatprep.subr.mxu0 0.0
        %1927 = vmatpush1.msra.mxu0 0.0
        %1928 = vmatprep.subr.mxu0 0.0
        %1929 = vmatpush1.msra.mxu0 0.0
        %1930 = vmatprep.subr.mxu0 0.0
        %1931 = vmatpush1.msra.mxu0 0.0
        %1932 = vmatprep.subr.mxu0 0.0
        %1933 = vmatpush1.msra.mxu0 0.0
        %1934 = vmatprep.subr.mxu0 0.0
        %1935 = vmatpush1.msra.mxu0 0.0
        %1936 = vmatprep.subr.mxu0 0.0
        %1937 = vmatpush1.msra.mxu0 0.0
        %1938 = vmatprep.subr.mxu0 0.0
        %1939 = vmatpush1.msra.mxu0 0.0
        %1940 = vmatprep.subr.mxu0 0.0
        %1941 = vmatpush1.msra.mxu0 0.0
        %1942 = vmatprep.subr.mxu0 0.0
        %1943 = vmatpush1.msra.mxu0 0.0
        %1944 = vmatprep.subr.mxu0 0.0
        %1945 = vmatpush1.msra.mxu0 0.0
        %1946 = vmatprep.subr.mxu0 0.0
        %1947 = vmatpush1.msra.mxu0 0.0
        %1948 = vmatprep.subr.mxu0 0.0
        %1949 = vmatpush1.msra.mxu0 0.0
        %1950 = vmatprep.subr.mxu0 0.0
        %1951 = vmatpush1.msra.mxu0 0.0
        %1952 = vmatprep.subr.mxu0 0.0
        %1953 = vmatpush1.msra.mxu0 0.0
        %1954 = vmatprep.subr.mxu0 0.0
        %1955 = vmatpush1.msra.mxu0 0.0
        %1956 = vmatprep.subr.mxu0 0.0
        %1957 = vmatpush1.msra.mxu0 0.0
        %1958 = vmatprep.subr.mxu0 0.0
        %1959 = vmatpush1.msra.mxu0 0.0
        %1960 = vmatprep.subr.mxu0 0.0
        %1961 = vmatpush1.msra.mxu0 0.0
        %1962 = vmatprep.subr.mxu0 0.0
        %1963 = vmatpush1.msra.mxu0 0.0
        %1964 = vmatprep.subr.mxu0 0.0
        %1965 = vmatpush1.msra.mxu0 0.0
        %1966 = vmatprep.subr.mxu0 0.0
        %1967 = vmatpush1.msra.mxu0 0.0
        %1968 = vmatprep.subr.mxu0 0.0
        %1969 = vmatpush1.msra.mxu0 0.0
        %1970 = vmatprep.mubr.f32.mxu0 0.0
        %1971 = vmatmul.mubr.f32.gmra.mrb[0].mxu0 %v1902
        %v1972 = vpop.f32.mrb[0].mxu0
        %v1973 = vadd.f32 0.0, %v1972
        %v1974 = vpop.f32.mrb[0].mxu0
        %1975 = vmatprep.mubr.f32.mxu0 0.0
        %1976 = vmatmul.mubr.f32.gmra.mrb[0].mxu0 %v1904
        %v1977 = vpop.f32.mrb[0].mxu0
        %v1978 = vadd.f32 0.0, %v1977
        %v1979 = vpop.f32.mrb[0].mxu0
        %1980 = vdwg.mxu0
        %v1981 = vld [vmem:[%s14] sm:$0x3f]
        %v1986 = vcombine.low %v1859, %v1861
        %v1987 = vcombine.low %v1863, %v1865
        %vm1988 = vcmask 48128
        %v1989 = vsel %vm1988, %v1986, 0
        %v1991 = vsel %vm1988, %v1987, 0
        %vm1993 = vcmask 1045504
        %v1995 = vsel %vm1993, %v1981, 0
        %1997 = vmatprep.subr.mxu0 0.0
        %1998 = vmatpush1.msra.mxu0 %v1995
        %1999 = vmatprep.subr.mxu0 0.0
        %2000 = vmatpush1.msra.mxu0 0.0
        %2001 = vmatprep.subr.mxu0 0.0
        %2002 = vmatpush1.msra.mxu0 0.0
        %2003 = vmatprep.subr.mxu0 0.0
        %2004 = vmatpush1.msra.mxu0 0.0
        %2005 = vmatprep.subr.mxu0 0.0
        %2006 = vmatpush1.msra.mxu0 0.0
        %2007 = vmatprep.subr.mxu0 0.0
        %2008 = vmatpush1.msra.mxu0 0.0
        %2009 = vmatprep.subr.mxu0 0.0
        %2010 = vmatpush1.msra.mxu0 0.0
        %2011 = vmatprep.subr.mxu0 0.0
        %2012 = vmatpush1.msra.mxu0 0.0
        %2013 = vmatprep.subr.mxu0 0.0
        %2014 = vmatpush1.msra.mxu0 0.0
        %2015 = vmatprep.subr.mxu0 0.0
        %2016 = vmatpush1.msra.mxu0 0.0
        %2017 = vmatprep.subr.mxu0 0.0
        %2018 = vmatpush1.msra.mxu0 0.0
        %2019 = vmatprep.subr.mxu0 0.0
        %2020 = vmatpush1.msra.mxu0 0.0
        %2021 = vmatprep.subr.mxu0 0.0
        %2022 = vmatpush1.msra.mxu0 0.0
        %2023 = vmatprep.subr.mxu0 0.0
        %2024 = vmatpush1.msra.mxu0 0.0
        %2025 = vmatprep.subr.mxu0 0.0
        %2026 = vmatpush1.msra.mxu0 0.0
        %2027 = vmatprep.subr.mxu0 0.0
        %2028 = vmatpush1.msra.mxu0 0.0
        %2029 = vmatprep.subr.mxu0 0.0
        %2030 = vmatpush1.msra.mxu0 0.0
        %2031 = vmatprep.subr.mxu0 0.0
        %2032 = vmatpush1.msra.mxu0 0.0
        %2033 = vmatprep.subr.mxu0 0.0
        %2034 = vmatpush1.msra.mxu0 0.0
        %2035 = vmatprep.subr.mxu0 0.0
        %2036 = vmatpush1.msra.mxu0 0.0
        %2037 = vmatprep.subr.mxu0 0.0
        %2038 = vmatpush1.msra.mxu0 0.0
        %2039 = vmatprep.subr.mxu0 0.0
        %2040 = vmatpush1.msra.mxu0 0.0
        %2041 = vmatprep.subr.mxu0 0.0
        %2042 = vmatpush1.msra.mxu0 0.0
        %2043 = vmatprep.subr.mxu0 0.0
        %2044 = vmatpush1.msra.mxu0 0.0
        %2045 = vmatprep.subr.mxu0 0.0
        %2046 = vmatpush1.msra.mxu0 0.0
        %2047 = vmatprep.subr.mxu0 0.0
        %2048 = vmatpush1.msra.mxu0 0.0
        %2049 = vmatprep.subr.mxu0 0.0
        %2050 = vmatpush1.msra.mxu0 0.0
        %2051 = vmatprep.subr.mxu0 0.0
        %2052 = vmatpush1.msra.mxu0 0.0
        %2053 = vmatprep.subr.mxu0 0.0
        %2054 = vmatpush1.msra.mxu0 0.0
        %2055 = vmatprep.subr.mxu0 0.0
        %2056 = vmatpush1.msra.mxu0 0.0
        %2057 = vmatprep.subr.mxu0 0.0
        %2058 = vmatpush1.msra.mxu0 0.0
        %2059 = vmatprep.subr.mxu0 0.0
        %2060 = vmatpush1.msra.mxu0 0.0
        %2061 = vmatprep.mubr.f32.mxu0 0.0
        %2062 = vmatmul.mubr.f32.gmra.mrb[0].mxu0 %v1989
        %v2063 = vpop.f32.mrb[0].mxu0
        %v2064 = vadd.f32 0.0, %v2063
        %v2065 = vpop.f32.mrb[0].mxu0
        %2066 = vmatprep.mubr.f32.mxu0 0.0
        %2067 = vmatmul.mubr.f32.gmra.mrb[0].mxu0 %v1991
        %v2068 = vpop.f32.mrb[0].mxu0
        %v2069 = vadd.f32 0.0, %v2068
        %v2070 = vpop.f32.mrb[0].mxu0
        %2071 = vdwg.mxu0
        %v2072 = vmul.f32 %v1973, %v2064
        %v2073 = vmul.f32 %v1978, %v2069
        %v2074 = vld [vmem:[%s15] sm:$0xff]
        %v2075 = vld [vmem:[%s15 + $0x8] sm:$0xff]
        %v2076 = vld [vmem:[%s15 + $0x10] sm:$0xff]
        %v2077 = vld [vmem:[%s15 + $0x18] sm:$0xff]
        %v2078 = vld [vmem:[%s15 + $0x20] sm:$0xff]
        %v2079 = vld [vmem:[%s15 + $0x28] sm:$0xff]
        %vm2080 = vcmask 392192
        %v2082 = vsel %vm2080, %v2072, 0
        %v2085 = vsel %vm2080, %v2073, 0
        %2087 = vmatprep.subr.mxu0 0.0
        %2088 = vmatpush1.msra.mxu0 %v2074
        %2089 = vmatprep.subr.mxu0 0.0
        %2090 = vmatpush1.msra.mxu0 %v2075
        %2091 = vmatprep.subr.mxu0 0.0
        %2092 = vmatpush1.msra.mxu0 %v2076
        %2093 = vmatprep.subr.mxu0 0.0
        %2094 = vmatpush1.msra.mxu0 %v2077
        %2095 = vmatprep.subr.mxu0 0.0
        %2096 = vmatpush1.msra.mxu0 %v2078
        %2097 = vmatprep.subr.mxu0 0.0
        %2098 = vmatpush1.msra.mxu0 %v2079
        %2099 = vmatprep.subr.mxu0 0.0
        %2100 = vmatpush1.msra.mxu0 0.0
        %2101 = vmatprep.subr.mxu0 0.0
        %2102 = vmatpush1.msra.mxu0 0.0
        %2103 = vmatprep.subr.mxu0 0.0
        %2104 = vmatpush1.msra.mxu0 0.0
        %2105 = vmatprep.subr.mxu0 0.0
        %2106 = vmatpush1.msra.mxu0 0.0
        %2107 = vmatprep.subr.mxu0 0.0
        %2108 = vmatpush1.msra.mxu0 0.0
        %2109 = vmatprep.subr.mxu0 0.0
        %2110 = vmatpush1.msra.mxu0 0.0
        %2111 = vmatprep.subr.mxu0 0.0
        %2112 = vmatpush1.msra.mxu0 0.0
        %2113 = vmatprep.subr.mxu0 0.0
        %2114 = vmatpush1.msra.mxu0 0.0
        %2115 = vmatprep.subr.mxu0 0.0
        %2116 = vmatpush1.msra.mxu0 0.0
        %2117 = vmatprep.subr.mxu0 0.0
        %2118 = vmatpush1.msra.mxu0 0.0
        %2119 = vmatprep.subr.mxu0 0.0
        %2120 = vmatpush1.msra.mxu0 0.0
        %2121 = vmatprep.subr.mxu0 0.0
        %2122 = vmatpush1.msra.mxu0 0.0
        %2123 = vmatprep.subr.mxu0 0.0
        %2124 = vmatpush1.msra.mxu0 0.0
        %2125 = vmatprep.subr.mxu0 0.0
        %2126 = vmatpush1.msra.mxu0 0.0
        %2127 = vmatprep.subr.mxu0 0.0
        %2128 = vmatpush1.msra.mxu0 0.0
        %2129 = vmatprep.subr.mxu0 0.0
        %2130 = vmatpush1.msra.mxu0 0.0
        %2131 = vmatprep.subr.mxu0 0.0
        %2132 = vmatpush1.msra.mxu0 0.0
        %2133 = vmatprep.subr.mxu0 0.0
        %2134 = vmatpush1.msra.mxu0 0.0
        %2135 = vmatprep.subr.mxu0 0.0
        %2136 = vmatpush1.msra.mxu0 0.0
        %2137 = vmatprep.subr.mxu0 0.0
        %2138 = vmatpush1.msra.mxu0 0.0
        %2139 = vmatprep.subr.mxu0 0.0
        %2140 = vmatpush1.msra.mxu0 0.0
        %2141 = vmatprep.subr.mxu0 0.0
        %2142 = vmatpush1.msra.mxu0 0.0
        %2143 = vmatprep.subr.mxu0 0.0
        %2144 = vmatpush1.msra.mxu0 0.0
        %2145 = vmatprep.subr.mxu0 0.0
        %2146 = vmatpush1.msra.mxu0 0.0
        %2147 = vmatprep.subr.mxu0 0.0
        %2148 = vmatpush1.msra.mxu0 0.0
        %2149 = vmatprep.subr.mxu0 0.0
        %2150 = vmatpush1.msra.mxu0 0.0
        %2151 = vmatprep.mubr.f32.mxu0 0.0
        %2152 = vmatmul.mubr.f32.gmra.mrb[0].mxu0 %v2082
        %v2153 = vpop.f32.mrb[0].mxu0
        %v2154 = vadd.f32 0.0, %v2153
        %v2155 = vpop.f32.mrb[0].mxu0
        %2156 = vmatprep.mubr.f32.mxu0 0.0
        %2157 = vmatmul.mubr.f32.gmra.mrb[0].mxu0 %v2085
        %v2158 = vpop.f32.mrb[0].mxu0
        %v2159 = vadd.f32 0.0, %v2158
        %v2160 = vpop.f32.mrb[0].mxu0
        %2161 = vdwg.mxu0
        %v2164 = vcombine.high %v2154, %v2154
        %v2165 = vcombine.high %v2159, %v2159
        %v2168 = vld [vmem:[%s16] sm:$0xff]
        %v2169 = vld [vmem:[%s16 + $0x8] sm:$0xff]
        %v2170 = vld [vmem:[%s16 + $0x10] sm:$0xff]
        %v2171 = vld [vmem:[%s16 + $0x18] sm:$0xff]
        %v2172 = vld [vmem:[%s16 + $0x20] sm:$0xff]
        %v2173 = vld [vmem:[%s16 + $0x28] sm:$0xff]
        %2174 = vmatprep.subr.mxu0 0.0
        %2175 = vmatpush1.msra.mxu0 %v2168
        %2176 = vmatprep.subr.mxu0 0.0
        %2177 = vmatpush1.msra.mxu0 %v2169
        %2178 = vmatprep.subr.mxu0 0.0
        %2179 = vmatpush1.msra.mxu0 %v2170
        %2180 = vmatprep.subr.mxu0 0.0
        %2181 = vmatpush1.msra.mxu0 %v2171
        %2182 = vmatprep.subr.mxu0 0.0
        %2183 = vmatpush1.msra.mxu0 %v2172
        %2184 = vmatprep.subr.mxu0 0.0
        %2185 = vmatpush1.msra.mxu0 %v2173
        %2186 = vmatprep.subr.mxu0 0.0
        %2187 = vmatpush1.msra.mxu0 0.0
        %2188 = vmatprep.subr.mxu0 0.0
        %2189 = vmatpush1.msra.mxu0 0.0
        %2190 = vmatprep.subr.mxu0 0.0
        %2191 = vmatpush1.msra.mxu0 0.0
        %2192 = vmatprep.subr.mxu0 0.0
        %2193 = vmatpush1.msra.mxu0 0.0
        %2194 = vmatprep.subr.mxu0 0.0
        %2195 = vmatpush1.msra.mxu0 0.0
        %2196 = vmatprep.subr.mxu0 0.0
        %2197 = vmatpush1.msra.mxu0 0.0
        %2198 = vmatprep.subr.mxu0 0.0
        %2199 = vmatpush1.msra.mxu0 0.0
        %2200 = vmatprep.subr.mxu0 0.0
        %2201 = vmatpush1.msra.mxu0 0.0
        %2202 = vmatprep.subr.mxu0 0.0
        %2203 = vmatpush1.msra.mxu0 0.0
        %2204 = vmatprep.subr.mxu0 0.0
        %2205 = vmatpush1.msra.mxu0 0.0
        %2206 = vmatprep.subr.mxu0 0.0
        %2207 = vmatpush1.msra.mxu0 0.0
        %2208 = vmatprep.subr.mxu0 0.0
        %2209 = vmatpush1.msra.mxu0 0.0
        %2210 = vmatprep.subr.mxu0 0.0
        %2211 = vmatpush1.msra.mxu0 0.0
        %2212 = vmatprep.subr.mxu0 0.0
        %2213 = vmatpush1.msra.mxu0 0.0
        %2214 = vmatprep.subr.mxu0 0.0
        %2215 = vmatpush1.msra.mxu0 0.0
        %2216 = vmatprep.subr.mxu0 0.0
        %2217 = vmatpush1.msra.mxu0 0.0
        %2218 = vmatprep.subr.mxu0 0.0
        %2219 = vmatpush1.msra.mxu0 0.0
        %2220 = vmatprep.subr.mxu0 0.0
        %2221 = vmatpush1.msra.mxu0 0.0
        %2222 = vmatprep.subr.mxu0 0.0
        %2223 = vmatpush1.msra.mxu0 0.0
        %2224 = vmatprep.subr.mxu0 0.0
        %2225 = vmatpush1.msra.mxu0 0.0
        %2226 = vmatprep.subr.mxu0 0.0
        %2227 = vmatpush1.msra.mxu0 0.0
        %2228 = vmatprep.subr.mxu0 0.0
        %2229 = vmatpush1.msra.mxu0 0.0
        %2230 = vmatprep.subr.mxu0 0.0
        %2231 = vmatpush1.msra.mxu0 0.0
        %2232 = vmatprep.subr.mxu0 0.0
        %2233 = vmatpush1.msra.mxu0 0.0
        %2234 = vmatprep.subr.mxu0 0.0
        %2235 = vmatpush1.msra.mxu0 0.0
        %2236 = vmatprep.subr.mxu0 0.0
        %2237 = vmatpush1.msra.mxu0 0.0
        %2238 = vmatprep.mubr.f32.mxu0 0.0
        %2239 = vmatmul.mubr.f32.gmra.mrb[0].mxu0 %v2082
        %v2240 = vpop.f32.mrb[0].mxu0
        %v2241 = vadd.f32 0.0, %v2240
        %v2242 = vpop.f32.mrb[0].mxu0
        %2243 = vmatprep.mubr.f32.mxu0 0.0
        %2244 = vmatmul.mubr.f32.gmra.mrb[0].mxu0 %v2085
        %v2245 = vpop.f32.mrb[0].mxu0
        %v2246 = vadd.f32 0.0, %v2245
        %v2247 = vpop.f32.mrb[0].mxu0
        %2248 = vdwg.mxu0
        %v2251 = vcombine.high %v2241, %v2241
        %v2252 = vcombine.high %v2246, %v2246
        %v2255 = vrcp.pop %v1890
        %v2256 = vmul.f32 1.0, %v2255
        %v2257 = vrcp.pop %v1891
        %v2258 = vmul.f32 1.0, %v2257
        %v2259 = vrcp.pop %v1892
        %v2260 = vmul.f32 1.0, %v2259
        %v2261 = vrcp.pop %v1893
        %v2262 = vmul.f32 1.0, %v2261
        %v2263 = vmul.f32 %v2154, %v2256
        %v2264 = vmul.f32 %v2164, %v2258
        %v2265 = vmul.f32 %v2159, %v2260
        %v2266 = vmul.f32 %v2165, %v2262
        %v2267 = vmul.f32 %v2241, %v2256
        %v2268 = vmul.f32 %v2251, %v2258
        %v2269 = vmul.f32 %v2246, %v2260
        %v2270 = vmul.f32 %v2252, %v2262
        %2271 = vrot.lane.b32.xlu0 %v949, 96
        %v2272 = vpop.permute.xlu0 %2271
        %v2275 = vsel %vm1901, %v2263, 0
        %2277 = vmatprep.subr.mxu0 0.0
        %2278 = vmatpush1.msra.mxu0 %v2272
        %2279 = vmatprep.subr.mxu0 0.0
        %2280 = vmatpush1.msra.mxu0 0.0
        %2281 = vmatprep.subr.mxu0 0.0
        %2282 = vmatpush1.msra.mxu0 0.0
        %2283 = vmatprep.subr.mxu0 0.0
        %2284 = vmatpush1.msra.mxu0 0.0
        %2285 = vmatprep.subr.mxu0 0.0
        %2286 = vmatpush1.msra.mxu0 0.0
        %2287 = vmatprep.subr.mxu0 0.0
        %2288 = vmatpush1.msra.mxu0 0.0
        %2289 = vmatprep.subr.mxu0 0.0
        %2290 = vmatpush1.msra.mxu0 0.0
        %2291 = vmatprep.subr.mxu0 0.0
        %2292 = vmatpush1.msra.mxu0 0.0
        %2293 = vmatprep.subr.mxu0 0.0
        %2294 = vmatpush1.msra.mxu0 0.0
        %2295 = vmatprep.subr.mxu0 0.0
        %2296 = vmatpush1.msra.mxu0 0.0
        %2297 = vmatprep.subr.mxu0 0.0
        %2298 = vmatpush1.msra.mxu0 0.0
        %2299 = vmatprep.subr.mxu0 0.0
        %2300 = vmatpush1.msra.mxu0 0.0
        %2301 = vmatprep.subr.mxu0 0.0
        %2302 = vmatpush1.msra.mxu0 0.0
        %2303 = vmatprep.subr.mxu0 0.0
        %2304 = vmatpush1.msra.mxu0 0.0
        %2305 = vmatprep.subr.mxu0 0.0
        %2306 = vmatpush1.msra.mxu0 0.0
        %2307 = vmatprep.subr.mxu0 0.0
        %2308 = vmatpush1.msra.mxu0 0.0
        %2309 = vmatprep.subr.mxu0 0.0
        %2310 = vmatpush1.msra.mxu0 0.0
        %2311 = vmatprep.subr.mxu0 0.0
        %2312 = vmatpush1.msra.mxu0 0.0
        %2313 = vmatprep.subr.mxu0 0.0
        %2314 = vmatpush1.msra.mxu0 0.0
        %2315 = vmatprep.subr.mxu0 0.0
        %2316 = vmatpush1.msra.mxu0 0.0
        %2317 = vmatprep.subr.mxu0 0.0
        %2318 = vmatpush1.msra.mxu0 0.0
        %2319 = vmatprep.subr.mxu0 0.0
        %2320 = vmatpush1.msra.mxu0 0.0
        %2321 = vmatprep.subr.mxu0 0.0
        %2322 = vmatpush1.msra.mxu0 0.0
        %2323 = vmatprep.subr.mxu0 0.0
        %2324 = vmatpush1.msra.mxu0 0.0
        %2325 = vmatprep.subr.mxu0 0.0
        %2326 = vmatpush1.msra.mxu0 0.0
        %2327 = vmatprep.subr.mxu0 0.0
        %2328 = vmatpush1.msra.mxu0 0.0
        %2329 = vmatprep.subr.mxu0 0.0
        %2330 = vmatpush1.msra.mxu0 0.0
        %2331 = vmatprep.subr.mxu0 0.0
        %2332 = vmatpush1.msra.mxu0 0.0
        %2333 = vmatprep.subr.mxu0 0.0
        %2334 = vmatpush1.msra.mxu0 0.0
        %2335 = vmatprep.subr.mxu0 0.0
        %2336 = vmatpush1.msra.mxu0 0.0
        %2337 = vmatprep.subr.mxu0 0.0
        %2338 = vmatpush1.msra.mxu0 0.0
        %2339 = vmatprep.subr.mxu0 0.0
        %2340 = vmatpush1.msra.mxu0 0.0
        %2341 = vmatprep.mubr.f32.mxu0 0.0
        %2342 = vmatmul.mubr.f32.gmra.mrb[0].mxu0 %v2275
        %v2343 = vpop.f32.mrb[0].mxu0
        %v2344 = vadd.f32 0.0, %v2343
        %v2345 = vpop.f32.mrb[0].mxu0
        %2346 = vdwg.mxu0
        %2347 = vrot.lane.b32.xlu0 %v950, 96
        %v2348 = vpop.permute.xlu0 %2347
        %v2351 = vsel %vm1901, %v2264, 0
        %2353 = vmatprep.subr.mxu0 0.0
        %2354 = vmatpush1.msra.mxu0 %v2348
        %2355 = vmatprep.subr.mxu0 0.0
        %2356 = vmatpush1.msra.mxu0 0.0
        %2357 = vmatprep.subr.mxu0 0.0
        %2358 = vmatpush1.msra.mxu0 0.0
        %2359 = vmatprep.subr.mxu0 0.0
        %2360 = vmatpush1.msra.mxu0 0.0
        %2361 = vmatprep.subr.mxu0 0.0
        %2362 = vmatpush1.msra.mxu0 0.0
        %2363 = vmatprep.subr.mxu0 0.0
        %2364 = vmatpush1.msra.mxu0 0.0
        %2365 = vmatprep.subr.mxu0 0.0
        %2366 = vmatpush1.msra.mxu0 0.0
        %2367 = vmatprep.subr.mxu0 0.0
        %2368 = vmatpush1.msra.mxu0 0.0
        %2369 = vmatprep.subr.mxu0 0.0
        %2370 = vmatpush1.msra.mxu0 0.0
        %2371 = vmatprep.subr.mxu0 0.0
        %2372 = vmatpush1.msra.mxu0 0.0
        %2373 = vmatprep.subr.mxu0 0.0
        %2374 = vmatpush1.msra.mxu0 0.0
        %2375 = vmatprep.subr.mxu0 0.0
        %2376 = vmatpush1.msra.mxu0 0.0
        %2377 = vmatprep.subr.mxu0 0.0
        %2378 = vmatpush1.msra.mxu0 0.0
        %2379 = vmatprep.subr.mxu0 0.0
        %2380 = vmatpush1.msra.mxu0 0.0
        %2381 = vmatprep.subr.mxu0 0.0
        %2382 = vmatpush1.msra.mxu0 0.0
        %2383 = vmatprep.subr.mxu0 0.0
        %2384 = vmatpush1.msra.mxu0 0.0
        %2385 = vmatprep.subr.mxu0 0.0
        %2386 = vmatpush1.msra.mxu0 0.0
        %2387 = vmatprep.subr.mxu0 0.0
        %2388 = vmatpush1.msra.mxu0 0.0
        %2389 = vmatprep.subr.mxu0 0.0
        %2390 = vmatpush1.msra.mxu0 0.0
        %2391 = vmatprep.subr.mxu0 0.0
        %2392 = vmatpush1.msra.mxu0 0.0
        %2393 = vmatprep.subr.mxu0 0.0
        %2394 = vmatpush1.msra.mxu0 0.0
        %2395 = vmatprep.subr.mxu0 0.0
        %2396 = vmatpush1.msra.mxu0 0.0
        %2397 = vmatprep.subr.mxu0 0.0
        %2398 = vmatpush1.msra.mxu0 0.0
        %2399 = vmatprep.subr.mxu0 0.0
        %2400 = vmatpush1.msra.mxu0 0.0
        %2401 = vmatprep.subr.mxu0 0.0
        %2402 = vmatpush1.msra.mxu0 0.0
        %2403 = vmatprep.subr.mxu0 0.0
        %2404 = vmatpush1.msra.mxu0 0.0
        %2405 = vmatprep.subr.mxu0 0.0
        %2406 = vmatpush1.msra.mxu0 0.0
        %2407 = vmatprep.subr.mxu0 0.0
        %2408 = vmatpush1.msra.mxu0 0.0
        %2409 = vmatprep.subr.mxu0 0.0
        %2410 = vmatpush1.msra.mxu0 0.0
        %2411 = vmatprep.subr.mxu0 0.0
        %2412 = vmatpush1.msra.mxu0 0.0
        %2413 = vmatprep.subr.mxu0 0.0
        %2414 = vmatpush1.msra.mxu0 0.0
        %2415 = vmatprep.subr.mxu0 0.0
        %2416 = vmatpush1.msra.mxu0 0.0
        %2417 = vmatprep.mubr.f32.mxu0 0.0
        %2418 = vmatmul.mubr.f32.gmra.mrb[0].mxu0 %v2351
        %v2419 = vpop.f32.mrb[0].mxu0
        %v2420 = vadd.f32 0.0, %v2419
        %v2421 = vpop.f32.mrb[0].mxu0
        %2422 = vdwg.mxu0
        %2423 = vrot.lane.b32.xlu0 %v951, 96
        %v2424 = vpop.permute.xlu0 %2423
        %v2427 = vsel %vm1901, %v2265, 0
        %2429 = vmatprep.subr.mxu0 0.0
        %2430 = vmatpush1.msra.mxu0 %v2424
        %2431 = vmatprep.subr.mxu0 0.0
        %2432 = vmatpush1.msra.mxu0 0.0
        %2433 = vmatprep.subr.mxu0 0.0
        %2434 = vmatpush1.msra.mxu0 0.0
        %2435 = vmatprep.subr.mxu0 0.0
        %2436 = vmatpush1.msra.mxu0 0.0
        %2437 = vmatprep.subr.mxu0 0.0
        %2438 = vmatpush1.msra.mxu0 0.0
        %2439 = vmatprep.subr.mxu0 0.0
        %2440 = vmatpush1.msra.mxu0 0.0
        %2441 = vmatprep.subr.mxu0 0.0
        %2442 = vmatpush1.msra.mxu0 0.0
        %2443 = vmatprep.subr.mxu0 0.0
        %2444 = vmatpush1.msra.mxu0 0.0
        %2445 = vmatprep.subr.mxu0 0.0
        %2446 = vmatpush1.msra.mxu0 0.0
        %2447 = vmatprep.subr.mxu0 0.0
        %2448 = vmatpush1.msra.mxu0 0.0
        %2449 = vmatprep.subr.mxu0 0.0
        %2450 = vmatpush1.msra.mxu0 0.0
        %2451 = vmatprep.subr.mxu0 0.0
        %2452 = vmatpush1.msra.mxu0 0.0
        %2453 = vmatprep.subr.mxu0 0.0
        %2454 = vmatpush1.msra.mxu0 0.0
        %2455 = vmatprep.subr.mxu0 0.0
        %2456 = vmatpush1.msra.mxu0 0.0
        %2457 = vmatprep.subr.mxu0 0.0
        %2458 = vmatpush1.msra.mxu0 0.0
        %2459 = vmatprep.subr.mxu0 0.0
        %2460 = vmatpush1.msra.mxu0 0.0
        %2461 = vmatprep.subr.mxu0 0.0
        %2462 = vmatpush1.msra.mxu0 0.0
        %2463 = vmatprep.subr.mxu0 0.0
        %2464 = vmatpush1.msra.mxu0 0.0
        %2465 = vmatprep.subr.mxu0 0.0
        %2466 = vmatpush1.msra.mxu0 0.0
        %2467 = vmatprep.subr.mxu0 0.0
        %2468 = vmatpush1.msra.mxu0 0.0
        %2469 = vmatprep.subr.mxu0 0.0
        %2470 = vmatpush1.msra.mxu0 0.0
        %2471 = vmatprep.subr.mxu0 0.0
        %2472 = vmatpush1.msra.mxu0 0.0
        %2473 = vmatprep.subr.mxu0 0.0
        %2474 = vmatpush1.msra.mxu0 0.0
        %2475 = vmatprep.subr.mxu0 0.0
        %2476 = vmatpush1.msra.mxu0 0.0
        %2477 = vmatprep.subr.mxu0 0.0
        %2478 = vmatpush1.msra.mxu0 0.0
        %2479 = vmatprep.subr.mxu0 0.0
        %2480 = vmatpush1.msra.mxu0 0.0
        %2481 = vmatprep.subr.mxu0 0.0
        %2482 = vmatpush1.msra.mxu0 0.0
        %2483 = vmatprep.subr.mxu0 0.0
        %2484 = vmatpush1.msra.mxu0 0.0
        %2485 = vmatprep.subr.mxu0 0.0
        %2486 = vmatpush1.msra.mxu0 0.0
        %2487 = vmatprep.subr.mxu0 0.0
        %2488 = vmatpush1.msra.mxu0 0.0
        %2489 = vmatprep.subr.mxu0 0.0
        %2490 = vmatpush1.msra.mxu0 0.0
        %2491 = vmatprep.subr.mxu0 0.0
        %2492 = vmatpush1.msra.mxu0 0.0
        %2493 = vmatprep.mubr.f32.mxu0 0.0
        %2494 = vmatmul.mubr.f32.gmra.mrb[0].mxu0 %v2427
        %v2495 = vpop.f32.mrb[0].mxu0
        %v2496 = vadd.f32 0.0, %v2495
        %v2497 = vpop.f32.mrb[0].mxu0
        %2498 = vdwg.mxu0
        %2499 = vrot.lane.b32.xlu0 %v952, 96
        %v2500 = vpop.permute.xlu0 %2499
        %v2503 = vsel %vm1901, %v2266, 0
        %2505 = vmatprep.subr.mxu0 0.0
        %2506 = vmatpush1.msra.mxu0 %v2500
        %2507 = vmatprep.subr.mxu0 0.0
        %2508 = vmatpush1.msra.mxu0 0.0
        %2509 = vmatprep.subr.mxu0 0.0
        %2510 = vmatpush1.msra.mxu0 0.0
        %2511 = vmatprep.subr.mxu0 0.0
        %2512 = vmatpush1.msra.mxu0 0.0
        %2513 = vmatprep.subr.mxu0 0.0
        %2514 = vmatpush1.msra.mxu0 0.0
        %2515 = vmatprep.subr.mxu0 0.0
        %2516 = vmatpush1.msra.mxu0 0.0
        %2517 = vmatprep.subr.mxu0 0.0
        %2518 = vmatpush1.msra.mxu0 0.0
        %2519 = vmatprep.subr.mxu0 0.0
        %2520 = vmatpush1.msra.mxu0 0.0
        %2521 = vmatprep.subr.mxu0 0.0
        %2522 = vmatpush1.msra.mxu0 0.0
        %2523 = vmatprep.subr.mxu0 0.0
        %2524 = vmatpush1.msra.mxu0 0.0
        %2525 = vmatprep.subr.mxu0 0.0
        %2526 = vmatpush1.msra.mxu0 0.0
        %2527 = vmatprep.subr.mxu0 0.0
        %2528 = vmatpush1.msra.mxu0 0.0
        %2529 = vmatprep.subr.mxu0 0.0
        %2530 = vmatpush1.msra.mxu0 0.0
        %2531 = vmatprep.subr.mxu0 0.0
        %2532 = vmatpush1.msra.mxu0 0.0
        %2533 = vmatprep.subr.mxu0 0.0
        %2534 = vmatpush1.msra.mxu0 0.0
        %2535 = vmatprep.subr.mxu0 0.0
        %2536 = vmatpush1.msra.mxu0 0.0
        %2537 = vmatprep.subr.mxu0 0.0
        %2538 = vmatpush1.msra.mxu0 0.0
        %2539 = vmatprep.subr.mxu0 0.0
        %2540 = vmatpush1.msra.mxu0 0.0
        %2541 = vmatprep.subr.mxu0 0.0
        %2542 = vmatpush1.msra.mxu0 0.0
        %2543 = vmatprep.subr.mxu0 0.0
        %2544 = vmatpush1.msra.mxu0 0.0
        %2545 = vmatprep.subr.mxu0 0.0
        %2546 = vmatpush1.msra.mxu0 0.0
        %2547 = vmatprep.subr.mxu0 0.0
        %2548 = vmatpush1.msra.mxu0 0.0
        %2549 = vmatprep.subr.mxu0 0.0
        %2550 = vmatpush1.msra.mxu0 0.0
        %2551 = vmatprep.subr.mxu0 0.0
        %2552 = vmatpush1.msra.mxu0 0.0
        %2553 = vmatprep.subr.mxu0 0.0
        %2554 = vmatpush1.msra.mxu0 0.0
        %2555 = vmatprep.subr.mxu0 0.0
        %2556 = vmatpush1.msra.mxu0 0.0
        %2557 = vmatprep.subr.mxu0 0.0
        %2558 = vmatpush1.msra.mxu0 0.0
        %2559 = vmatprep.subr.mxu0 0.0
        %2560 = vmatpush1.msra.mxu0 0.0
        %2561 = vmatprep.subr.mxu0 0.0
        %2562 = vmatpush1.msra.mxu0 0.0
        %2563 = vmatprep.subr.mxu0 0.0
        %2564 = vmatpush1.msra.mxu0 0.0
        %2565 = vmatprep.subr.mxu0 0.0
        %2566 = vmatpush1.msra.mxu0 0.0
        %2567 = vmatprep.subr.mxu0 0.0
        %2568 = vmatpush1.msra.mxu0 0.0
        %2569 = vmatprep.mubr.f32.mxu0 0.0
        %2570 = vmatmul.mubr.f32.gmra.mrb[0].mxu0 %v2503
        %v2571 = vpop.f32.mrb[0].mxu0
        %v2572 = vadd.f32 0.0, %v2571
        %v2573 = vpop.f32.mrb[0].mxu0
        %2574 = vdwg.mxu0
        %2575 = vrot.lane.b32.xlu0 %v1479, 96
        %v2576 = vpop.permute.xlu0 %2575
        %v2578 = vsel %vm1988, %v2267, 0
        %v2580 = vsel %vm1993, %v2576, 0
        %2582 = vmatprep.subr.mxu0 0.0
        %2583 = vmatpush1.msra.mxu0 %v2580
        %2584 = vmatprep.subr.mxu0 0.0
        %2585 = vmatpush1.msra.mxu0 0.0
        %2586 = vmatprep.subr.mxu0 0.0
        %2587 = vmatpush1.msra.mxu0 0.0
        %2588 = vmatprep.subr.mxu0 0.0
        %2589 = vmatpush1.msra.mxu0 0.0
        %2590 = vmatprep.subr.mxu0 0.0
        %2591 = vmatpush1.msra.mxu0 0.0
        %2592 = vmatprep.subr.mxu0 0.0
        %2593 = vmatpush1.msra.mxu0 0.0
        %2594 = vmatprep.subr.mxu0 0.0
        %2595 = vmatpush1.msra.mxu0 0.0
        %2596 = vmatprep.subr.mxu0 0.0
        %2597 = vmatpush1.msra.mxu0 0.0
        %2598 = vmatprep.subr.mxu0 0.0
        %2599 = vmatpush1.msra.mxu0 0.0
        %2600 = vmatprep.subr.mxu0 0.0
        %2601 = vmatpush1.msra.mxu0 0.0
        %2602 = vmatprep.subr.mxu0 0.0
        %2603 = vmatpush1.msra.mxu0 0.0
        %2604 = vmatprep.subr.mxu0 0.0
        %2605 = vmatpush1.msra.mxu0 0.0
        %2606 = vmatprep.subr.mxu0 0.0
        %2607 = vmatpush1.msra.mxu0 0.0
        %2608 = vmatprep.subr.mxu0 0.0
        %2609 = vmatpush1.msra.mxu0 0.0
        %2610 = vmatprep.subr.mxu0 0.0
        %2611 = vmatpush1.msra.mxu0 0.0
        %2612 = vmatprep.subr.mxu0 0.0
        %2613 = vmatpush1.msra.mxu0 0.0
        %2614 = vmatprep.subr.mxu0 0.0
        %2615 = vmatpush1.msra.mxu0 0.0
        %2616 = vmatprep.subr.mxu0 0.0
        %2617 = vmatpush1.msra.mxu0 0.0
        %2618 = vmatprep.subr.mxu0 0.0
        %2619 = vmatpush1.msra.mxu0 0.0
        %2620 = vmatprep.subr.mxu0 0.0
        %2621 = vmatpush1.msra.mxu0 0.0
        %2622 = vmatprep.subr.mxu0 0.0
        %2623 = vmatpush1.msra.mxu0 0.0
        %2624 = vmatprep.subr.mxu0 0.0
        %2625 = vmatpush1.msra.mxu0 0.0
        %2626 = vmatprep.subr.mxu0 0.0
        %2627 = vmatpush1.msra.mxu0 0.0
        %2628 = vmatprep.subr.mxu0 0.0
        %2629 = vmatpush1.msra.mxu0 0.0
        %2630 = vmatprep.subr.mxu0 0.0
        %2631 = vmatpush1.msra.mxu0 0.0
        %2632 = vmatprep.subr.mxu0 0.0
        %2633 = vmatpush1.msra.mxu0 0.0
        %2634 = vmatprep.subr.mxu0 0.0
        %2635 = vmatpush1.msra.mxu0 0.0
        %2636 = vmatprep.subr.mxu0 0.0
        %2637 = vmatpush1.msra.mxu0 0.0
        %2638 = vmatprep.subr.mxu0 0.0
        %2639 = vmatpush1.msra.mxu0 0.0
        %2640 = vmatprep.subr.mxu0 0.0
        %2641 = vmatpush1.msra.mxu0 0.0
        %2642 = vmatprep.subr.mxu0 0.0
        %2643 = vmatpush1.msra.mxu0 0.0
        %2644 = vmatprep.subr.mxu0 0.0
        %2645 = vmatpush1.msra.mxu0 0.0
        %2646 = vmatprep.mubr.f32.mxu0 0.0
        %2647 = vmatmul.mubr.f32.gmra.mrb[0].mxu0 %v2578
        %v2648 = vpop.f32.mrb[0].mxu0
        %v2649 = vadd.f32 0.0, %v2648
        %v2650 = vpop.f32.mrb[0].mxu0
        %2651 = vdwg.mxu0
        %2652 = vrot.lane.b32.xlu0 %v1567, 96
        %v2653 = vpop.permute.xlu0 %2652
        %v2655 = vsel %vm1988, %v2268, 0
        %v2657 = vsel %vm1993, %v2653, 0
        %2659 = vmatprep.subr.mxu0 0.0
        %2660 = vmatpush1.msra.mxu0 %v2657
        %2661 = vmatprep.subr.mxu0 0.0
        %2662 = vmatpush1.msra.mxu0 0.0
        %2663 = vmatprep.subr.mxu0 0.0
        %2664 = vmatpush1.msra.mxu0 0.0
        %2665 = vmatprep.subr.mxu0 0.0
        %2666 = vmatpush1.msra.mxu0 0.0
        %2667 = vmatprep.subr.mxu0 0.0
        %2668 = vmatpush1.msra.mxu0 0.0
        %2669 = vmatprep.subr.mxu0 0.0
        %2670 = vmatpush1.msra.mxu0 0.0
        %2671 = vmatprep.subr.mxu0 0.0
        %2672 = vmatpush1.msra.mxu0 0.0
        %2673 = vmatprep.subr.mxu0 0.0
        %2674 = vmatpush1.msra.mxu0 0.0
        %2675 = vmatprep.subr.mxu0 0.0
        %2676 = vmatpush1.msra.mxu0 0.0
        %2677 = vmatprep.subr.mxu0 0.0
        %2678 = vmatpush1.msra.mxu0 0.0
        %2679 = vmatprep.subr.mxu0 0.0
        %2680 = vmatpush1.msra.mxu0 0.0
        %2681 = vmatprep.subr.mxu0 0.0
        %2682 = vmatpush1.msra.mxu0 0.0
        %2683 = vmatprep.subr.mxu0 0.0
        %2684 = vmatpush1.msra.mxu0 0.0
        %2685 = vmatprep.subr.mxu0 0.0
        %2686 = vmatpush1.msra.mxu0 0.0
        %2687 = vmatprep.subr.mxu0 0.0
        %2688 = vmatpush1.msra.mxu0 0.0
        %2689 = vmatprep.subr.mxu0 0.0
        %2690 = vmatpush1.msra.mxu0 0.0
        %2691 = vmatprep.subr.mxu0 0.0
        %2692 = vmatpush1.msra.mxu0 0.0
        %2693 = vmatprep.subr.mxu0 0.0
        %2694 = vmatpush1.msra.mxu0 0.0
        %2695 = vmatprep.subr.mxu0 0.0
        %2696 = vmatpush1.msra.mxu0 0.0
        %2697 = vmatprep.subr.mxu0 0.0
        %2698 = vmatpush1.msra.mxu0 0.0
        %2699 = vmatprep.subr.mxu0 0.0
        %2700 = vmatpush1.msra.mxu0 0.0
        %2701 = vmatprep.subr.mxu0 0.0
        %2702 = vmatpush1.msra.mxu0 0.0
        %2703 = vmatprep.subr.mxu0 0.0
        %2704 = vmatpush1.msra.mxu0 0.0
        %2705 = vmatprep.subr.mxu0 0.0
        %2706 = vmatpush1.msra.mxu0 0.0
        %2707 = vmatprep.subr.mxu0 0.0
        %2708 = vmatpush1.msra.mxu0 0.0
        %2709 = vmatprep.subr.mxu0 0.0
        %2710 = vmatpush1.msra.mxu0 0.0
        %2711 = vmatprep.subr.mxu0 0.0
        %2712 = vmatpush1.msra.mxu0 0.0
        %2713 = vmatprep.subr.mxu0 0.0
        %2714 = vmatpush1.msra.mxu0 0.0
        %2715 = vmatprep.subr.mxu0 0.0
        %2716 = vmatpush1.msra.mxu0 0.0
        %2717 = vmatprep.subr.mxu0 0.0
        %2718 = vmatpush1.msra.mxu0 0.0
        %2719 = vmatprep.subr.mxu0 0.0
        %2720 = vmatpush1.msra.mxu0 0.0
        %2721 = vmatprep.subr.mxu0 0.0
        %2722 = vmatpush1.msra.mxu0 0.0
        %2723 = vmatprep.mubr.f32.mxu0 0.0
        %2724 = vmatmul.mubr.f32.gmra.mrb[0].mxu0 %v2655
        %v2725 = vpop.f32.mrb[0].mxu0
        %v2726 = vadd.f32 0.0, %v2725
        %v2727 = vpop.f32.mrb[0].mxu0
        %2728 = vdwg.mxu0
        %2729 = vrot.lane.b32.xlu0 %v1655, 96
        %v2730 = vpop.permute.xlu0 %2729
        %v2732 = vsel %vm1988, %v2269, 0
        %v2734 = vsel %vm1993, %v2730, 0
        %2736 = vmatprep.subr.mxu0 0.0
        %2737 = vmatpush1.msra.mxu0 %v2734
        %2738 = vmatprep.subr.mxu0 0.0
        %2739 = vmatpush1.msra.mxu0 0.0
        %2740 = vmatprep.subr.mxu0 0.0
        %2741 = vmatpush1.msra.mxu0 0.0
        %2742 = vmatprep.subr.mxu0 0.0
        %2743 = vmatpush1.msra.mxu0 0.0
        %2744 = vmatprep.subr.mxu0 0.0
        %2745 = vmatpush1.msra.mxu0 0.0
        %2746 = vmatprep.subr.mxu0 0.0
        %2747 = vmatpush1.msra.mxu0 0.0
        %2748 = vmatprep.subr.mxu0 0.0
        %2749 = vmatpush1.msra.mxu0 0.0
        %2750 = vmatprep.subr.mxu0 0.0
        %2751 = vmatpush1.msra.mxu0 0.0
        %2752 = vmatprep.subr.mxu0 0.0
        %2753 = vmatpush1.msra.mxu0 0.0
        %2754 = vmatprep.subr.mxu0 0.0
        %2755 = vmatpush1.msra.mxu0 0.0
        %2756 = vmatprep.subr.mxu0 0.0
        %2757 = vmatpush1.msra.mxu0 0.0
        %2758 = vmatprep.subr.mxu0 0.0
        %2759 = vmatpush1.msra.mxu0 0.0
        %2760 = vmatprep.subr.mxu0 0.0
        %2761 = vmatpush1.msra.mxu0 0.0
        %2762 = vmatprep.subr.mxu0 0.0
        %2763 = vmatpush1.msra.mxu0 0.0
        %2764 = vmatprep.subr.mxu0 0.0
        %2765 = vmatpush1.msra.mxu0 0.0
        %2766 = vmatprep.subr.mxu0 0.0
        %2767 = vmatpush1.msra.mxu0 0.0
        %2768 = vmatprep.subr.mxu0 0.0
        %2769 = vmatpush1.msra.mxu0 0.0
        %2770 = vmatprep.subr.mxu0 0.0
        %2771 = vmatpush1.msra.mxu0 0.0
        %2772 = vmatprep.subr.mxu0 0.0
        %2773 = vmatpush1.msra.mxu0 0.0
        %2774 = vmatprep.subr.mxu0 0.0
        %2775 = vmatpush1.msra.mxu0 0.0
        %2776 = vmatprep.subr.mxu0 0.0
        %2777 = vmatpush1.msra.mxu0 0.0
        %2778 = vmatprep.subr.mxu0 0.0
        %2779 = vmatpush1.msra.mxu0 0.0
        %2780 = vmatprep.subr.mxu0 0.0
        %2781 = vmatpush1.msra.mxu0 0.0
        %2782 = vmatprep.subr.mxu0 0.0
        %2783 = vmatpush1.msra.mxu0 0.0
        %2784 = vmatprep.subr.mxu0 0.0
        %2785 = vmatpush1.msra.mxu0 0.0
        %2786 = vmatprep.subr.mxu0 0.0
        %2787 = vmatpush1.msra.mxu0 0.0
        %2788 = vmatprep.subr.mxu0 0.0
        %2789 = vmatpush1.msra.mxu0 0.0
        %2790 = vmatprep.subr.mxu0 0.0
        %2791 = vmatpush1.msra.mxu0 0.0
        %2792 = vmatprep.subr.mxu0 0.0
        %2793 = vmatpush1.msra.mxu0 0.0
        %2794 = vmatprep.subr.mxu0 0.0
        %2795 = vmatpush1.msra.mxu0 0.0
        %2796 = vmatprep.subr.mxu0 0.0
        %2797 = vmatpush1.msra.mxu0 0.0
        %2798 = vmatprep.subr.mxu0 0.0
        %2799 = vmatpush1.msra.mxu0 0.0
        %2800 = vmatprep.mubr.f32.mxu0 0.0
        %2801 = vmatmul.mubr.f32.gmra.mrb[0].mxu0 %v2732
        %v2802 = vpop.f32.mrb[0].mxu0
        %v2803 = vadd.f32 0.0, %v2802
        %v2804 = vpop.f32.mrb[0].mxu0
        %2805 = vdwg.mxu0
        %2806 = vrot.lane.b32.xlu0 %v1743, 96
        %v2807 = vpop.permute.xlu0 %2806
        %v2809 = vsel %vm1988, %v2270, 0
        %v2811 = vsel %vm1993, %v2807, 0
        %2813 = vmatprep.subr.mxu0 0.0
        %2814 = vmatpush1.msra.mxu0 %v2811
        %2815 = vmatprep.subr.mxu0 0.0
        %2816 = vmatpush1.msra.mxu0 0.0
        %2817 = vmatprep.subr.mxu0 0.0
        %2818 = vmatpush1.msra.mxu0 0.0
        %2819 = vmatprep.subr.mxu0 0.0
        %2820 = vmatpush1.msra.mxu0 0.0
        %2821 = vmatprep.subr.mxu0 0.0
        %2822 = vmatpush1.msra.mxu0 0.0
        %2823 = vmatprep.subr.mxu0 0.0
        %2824 = vmatpush1.msra.mxu0 0.0
        %2825 = vmatprep.subr.mxu0 0.0
        %2826 = vmatpush1.msra.mxu0 0.0
        %2827 = vmatprep.subr.mxu0 0.0
        %2828 = vmatpush1.msra.mxu0 0.0
        %2829 = vmatprep.subr.mxu0 0.0
        %2830 = vmatpush1.msra.mxu0 0.0
        %2831 = vmatprep.subr.mxu0 0.0
        %2832 = vmatpush1.msra.mxu0 0.0
        %2833 = vmatprep.subr.mxu0 0.0
        %2834 = vmatpush1.msra.mxu0 0.0
        %2835 = vmatprep.subr.mxu0 0.0
        %2836 = vmatpush1.msra.mxu0 0.0
        %2837 = vmatprep.subr.mxu0 0.0
        %2838 = vmatpush1.msra.mxu0 0.0
        %2839 = vmatprep.subr.mxu0 0.0
        %2840 = vmatpush1.msra.mxu0 0.0
        %2841 = vmatprep.subr.mxu0 0.0
        %2842 = vmatpush1.msra.mxu0 0.0
        %2843 = vmatprep.subr.mxu0 0.0
        %2844 = vmatpush1.msra.mxu0 0.0
        %2845 = vmatprep.subr.mxu0 0.0
        %2846 = vmatpush1.msra.mxu0 0.0
        %2847 = vmatprep.subr.mxu0 0.0
        %2848 = vmatpush1.msra.mxu0 0.0
        %2849 = vmatprep.subr.mxu0 0.0
        %2850 = vmatpush1.msra.mxu0 0.0
        %2851 = vmatprep.subr.mxu0 0.0
        %2852 = vmatpush1.msra.mxu0 0.0
        %2853 = vmatprep.subr.mxu0 0.0
        %2854 = vmatpush1.msra.mxu0 0.0
        %2855 = vmatprep.subr.mxu0 0.0
        %2856 = vmatpush1.msra.mxu0 0.0
        %2857 = vmatprep.subr.mxu0 0.0
        %2858 = vmatpush1.msra.mxu0 0.0
        %2859 = vmatprep.subr.mxu0 0.0
        %2860 = vmatpush1.msra.mxu0 0.0
        %2861 = vmatprep.subr.mxu0 0.0
        %2862 = vmatpush1.msra.mxu0 0.0
        %2863 = vmatprep.subr.mxu0 0.0
        %2864 = vmatpush1.msra.mxu0 0.0
        %2865 = vmatprep.subr.mxu0 0.0
        %2866 = vmatpush1.msra.mxu0 0.0
        %2867 = vmatprep.subr.mxu0 0.0
        %2868 = vmatpush1.msra.mxu0 0.0
        %2869 = vmatprep.subr.mxu0 0.0
        %2870 = vmatpush1.msra.mxu0 0.0
        %2871 = vmatprep.subr.mxu0 0.0
        %2872 = vmatpush1.msra.mxu0 0.0
        %2873 = vmatprep.subr.mxu0 0.0
        %2874 = vmatpush1.msra.mxu0 0.0
        %2875 = vmatprep.subr.mxu0 0.0
        %2876 = vmatpush1.msra.mxu0 0.0
        %2877 = vmatprep.mubr.f32.mxu0 0.0
        %2878 = vmatmul.mubr.f32.gmra.mrb[0].mxu0 %v2809
        %v2879 = vpop.f32.mrb[0].mxu0
        %v2880 = vadd.f32 0.0, %v2879
        %v2881 = vpop.f32.mrb[0].mxu0
        %2882 = vdwg.mxu0
        %v2883 = vld [vmem:[%s9] sm:$0xff]
        %v2884 = vld [vmem:[%s9 + $0x8] sm:$0xff]
        %v2885 = vld [vmem:[%s10] sm:$0xff]
        %v2886 = vld [vmem:[%s10 + $0x8] sm:$0xff]
        %v2887 = vld [vmem:[%s10 + $0x10] sm:$0xff]
        %v2888 = vld [vmem:[%s10 + $0x18] sm:$0xff]
        %v2893 = vcombine.low %v2344, %v2420
        %v2894 = vcombine.low %v2496, %v2572
        %v2895 = vsel %vm1163, %v2893, 0
        %v2897 = vsel %vm1163, %v2894, 0
        %2899 = vmatprep.subr.mxu0 0.0
        %2900 = vmatpush1.msra.mxu0 %v2885
        %2901 = vmatprep.subr.mxu0 0.0
        %2902 = vmatpush1.msra.mxu0 %v2886
        %2903 = vmatprep.subr.mxu0 0.0
        %2904 = vmatpush1.msra.mxu0 %v2887
        %2905 = vmatprep.subr.mxu0 0.0
        %2906 = vmatpush1.msra.mxu0 %v2888
        %2907 = vmatprep.subr.mxu0 0.0
        %2908 = vmatpush1.msra.mxu0 0.0
        %2909 = vmatprep.subr.mxu0 0.0
        %2910 = vmatpush1.msra.mxu0 0.0
        %2911 = vmatprep.subr.mxu0 0.0
        %2912 = vmatpush1.msra.mxu0 0.0
        %2913 = vmatprep.subr.mxu0 0.0
        %2914 = vmatpush1.msra.mxu0 0.0
        %2915 = vmatprep.subr.mxu0 0.0
        %2916 = vmatpush1.msra.mxu0 0.0
        %2917 = vmatprep.subr.mxu0 0.0
        %2918 = vmatpush1.msra.mxu0 0.0
        %2919 = vmatprep.subr.mxu0 0.0
        %2920 = vmatpush1.msra.mxu0 0.0
        %2921 = vmatprep.subr.mxu0 0.0
        %2922 = vmatpush1.msra.mxu0 0.0
        %2923 = vmatprep.subr.mxu0 0.0
        %2924 = vmatpush1.msra.mxu0 0.0
        %2925 = vmatprep.subr.mxu0 0.0
        %2926 = vmatpush1.msra.mxu0 0.0
        %2927 = vmatprep.subr.mxu0 0.0
        %2928 = vmatpush1.msra.mxu0 0.0
        %2929 = vmatprep.subr.mxu0 0.0
        %2930 = vmatpush1.msra.mxu0 0.0
        %2931 = vmatprep.subr.mxu0 0.0
        %2932 = vmatpush1.msra.mxu0 0.0
        %2933 = vmatprep.subr.mxu0 0.0
        %2934 = vmatpush1.msra.mxu0 0.0
        %2935 = vmatprep.subr.mxu0 0.0
        %2936 = vmatpush1.msra.mxu0 0.0
        %2937 = vmatprep.subr.mxu0 0.0
        %2938 = vmatpush1.msra.mxu0 0.0
        %2939 = vmatprep.subr.mxu0 0.0
        %2940 = vmatpush1.msra.mxu0 0.0
        %2941 = vmatprep.subr.mxu0 0.0
        %2942 = vmatpush1.msra.mxu0 0.0
        %2943 = vmatprep.subr.mxu0 0.0
        %2944 = vmatpush1.msra.mxu0 0.0
        %2945 = vmatprep.subr.mxu0 0.0
        %2946 = vmatpush1.msra.mxu0 0.0
        %2947 = vmatprep.subr.mxu0 0.0
        %2948 = vmatpush1.msra.mxu0 0.0
        %2949 = vmatprep.subr.mxu0 0.0
        %2950 = vmatpush1.msra.mxu0 0.0
        %2951 = vmatprep.subr.mxu0 0.0
        %2952 = vmatpush1.msra.mxu0 0.0
        %2953 = vmatprep.subr.mxu0 0.0
        %2954 = vmatpush1.msra.mxu0 0.0
        %2955 = vmatprep.subr.mxu0 0.0
        %2956 = vmatpush1.msra.mxu0 0.0
        %2957 = vmatprep.subr.mxu0 0.0
        %2958 = vmatpush1.msra.mxu0 0.0
        %2959 = vmatprep.subr.mxu0 0.0
        %2960 = vmatpush1.msra.mxu0 0.0
        %2961 = vmatprep.subr.mxu0 0.0
        %2962 = vmatpush1.msra.mxu0 0.0
        %2963 = vmatprep.mubr.f32.mxu0 0.0
        %2964 = vmatmul.mubr.f32.gmra.mrb[0].mxu0 %v2895
        %v2965 = vpop.f32.mrb[0].mxu0
        %v2966 = vadd.f32 0.0, %v2965
        %v2967 = vpop.f32.mrb[0].mxu0
        %2968 = vmatprep.mubr.f32.mxu0 0.0
        %2969 = vmatmul.mubr.f32.gmra.mrb[0].mxu0 %v2897
        %v2970 = vpop.f32.mrb[0].mxu0
        %v2971 = vadd.f32 0.0, %v2970
        %v2972 = vpop.f32.mrb[0].mxu0
        %2973 = vdwg.mxu0
        %2974 = vmatprep.subr.mxu0 0.0
        %2975 = vmatpush1.msra.mxu0 %v2883
        %2976 = vmatprep.subr.mxu0 0.0
        %2977 = vmatpush1.msra.mxu0 %v2884
        %2978 = vmatprep.subr.mxu0 0.0
        %2979 = vmatpush1.msra.mxu0 0.0
        %2980 = vmatprep.subr.mxu0 0.0
        %2981 = vmatpush1.msra.mxu0 0.0
        %2982 = vmatprep.subr.mxu0 0.0
        %2983 = vmatpush1.msra.mxu0 0.0
        %2984 = vmatprep.subr.mxu0 0.0
        %2985 = vmatpush1.msra.mxu0 0.0
        %2986 = vmatprep.subr.mxu0 0.0
        %2987 = vmatpush1.msra.mxu0 0.0
        %2988 = vmatprep.subr.mxu0 0.0
        %2989 = vmatpush1.msra.mxu0 0.0
        %2990 = vmatprep.subr.mxu0 0.0
        %2991 = vmatpush1.msra.mxu0 0.0
        %2992 = vmatprep.subr.mxu0 0.0
        %2993 = vmatpush1.msra.mxu0 0.0
        %2994 = vmatprep.subr.mxu0 0.0
        %2995 = vmatpush1.msra.mxu0 0.0
        %2996 = vmatprep.subr.mxu0 0.0
        %2997 = vmatpush1.msra.mxu0 0.0
        %2998 = vmatprep.subr.mxu0 0.0
        %2999 = vmatpush1.msra.mxu0 0.0
        %3000 = vmatprep.subr.mxu0 0.0
        %3001 = vmatpush1.msra.mxu0 0.0
        %3002 = vmatprep.subr.mxu0 0.0
        %3003 = vmatpush1.msra.mxu0 0.0
        %3004 = vmatprep.subr.mxu0 0.0
        %3005 = vmatpush1.msra.mxu0 0.0
        %3006 = vmatprep.subr.mxu0 0.0
        %3007 = vmatpush1.msra.mxu0 0.0
        %3008 = vmatprep.subr.mxu0 0.0
        %3009 = vmatpush1.msra.mxu0 0.0
        %3010 = vmatprep.subr.mxu0 0.0
        %3011 = vmatpush1.msra.mxu0 0.0
        %3012 = vmatprep.subr.mxu0 0.0
        %3013 = vmatpush1.msra.mxu0 0.0
        %3014 = vmatprep.subr.mxu0 0.0
        %3015 = vmatpush1.msra.mxu0 0.0
        %3016 = vmatprep.subr.mxu0 0.0
        %3017 = vmatpush1.msra.mxu0 0.0
        %3018 = vmatprep.subr.mxu0 0.0
        %3019 = vmatpush1.msra.mxu0 0.0
        %3020 = vmatprep.subr.mxu0 0.0
        %3021 = vmatpush1.msra.mxu0 0.0
        %3022 = vmatprep.subr.mxu0 0.0
        %3023 = vmatpush1.msra.mxu0 0.0
        %3024 = vmatprep.subr.mxu0 0.0
        %3025 = vmatpush1.msra.mxu0 0.0
        %3026 = vmatprep.subr.mxu0 0.0
        %3027 = vmatpush1.msra.mxu0 0.0
        %3028 = vmatprep.subr.mxu0 0.0
        %3029 = vmatpush1.msra.mxu0 0.0
        %3030 = vmatprep.subr.mxu0 0.0
        %3031 = vmatpush1.msra.mxu0 0.0
        %3032 = vmatprep.subr.mxu0 0.0
        %3033 = vmatpush1.msra.mxu0 0.0
        %3034 = vmatprep.subr.mxu0 0.0
        %3035 = vmatpush1.msra.mxu0 0.0
        %3036 = vmatprep.subr.mxu0 0.0
        %3037 = vmatpush1.msra.mxu0 0.0
        %3038 = vmatprep.mubr.f32.mxu0 0.0
        %3039 = vmatmul.mubr.f32.gmra.mrb[0].mxu0 %v755
        %v3040 = vpop.f32.mrb[0].mxu0
        %v3041 = vadd.f32 %v2966, %v3040
        %v3042 = vpop.f32.mrb[0].mxu0
        %3043 = vmatprep.mubr.f32.mxu0 0.0
        %3044 = vmatmul.mubr.f32.gmra.mrb[0].mxu0 %v757
        %v3045 = vpop.f32.mrb[0].mxu0
        %v3046 = vadd.f32 %v2971, %v3045
        %v3047 = vpop.f32.mrb[0].mxu0
        %3048 = vdwg.mxu0
        %v3049 = vld [vmem:[%s11] sm:$0xff]
        %v3050 = vld [vmem:[%s11 + $0x8] sm:$0xff]
        %v3051 = vld [vmem:[%s11 + $0x10] sm:$0xff]
        %v3052 = vld [vmem:[%s11 + $0x18] sm:$0xff]
        %v3057 = vcombine.low %v2649, %v2726
        %v3058 = vcombine.low %v2803, %v2880
        %v3059 = vsel %vm1163, %v3057, 0
        %v3061 = vsel %vm1163, %v3058, 0
        %3063 = vmatprep.subr.mxu0 0.0
        %3064 = vmatpush1.msra.mxu0 %v3049
        %3065 = vmatprep.subr.mxu0 0.0
        %3066 = vmatpush1.msra.mxu0 %v3050
        %3067 = vmatprep.subr.mxu0 0.0
        %3068 = vmatpush1.msra.mxu0 %v3051
        %3069 = vmatprep.subr.mxu0 0.0
        %3070 = vmatpush1.msra.mxu0 %v3052
        %3071 = vmatprep.subr.mxu0 0.0
        %3072 = vmatpush1.msra.mxu0 0.0
        %3073 = vmatprep.subr.mxu0 0.0
        %3074 = vmatpush1.msra.mxu0 0.0
        %3075 = vmatprep.subr.mxu0 0.0
        %3076 = vmatpush1.msra.mxu0 0.0
        %3077 = vmatprep.subr.mxu0 0.0
        %3078 = vmatpush1.msra.mxu0 0.0
        %3079 = vmatprep.subr.mxu0 0.0
        %3080 = vmatpush1.msra.mxu0 0.0
        %3081 = vmatprep.subr.mxu0 0.0
        %3082 = vmatpush1.msra.mxu0 0.0
        %3083 = vmatprep.subr.mxu0 0.0
        %3084 = vmatpush1.msra.mxu0 0.0
        %3085 = vmatprep.subr.mxu0 0.0
        %3086 = vmatpush1.msra.mxu0 0.0
        %3087 = vmatprep.subr.mxu0 0.0
        %3088 = vmatpush1.msra.mxu0 0.0
        %3089 = vmatprep.subr.mxu0 0.0
        %3090 = vmatpush1.msra.mxu0 0.0
        %3091 = vmatprep.subr.mxu0 0.0
        %3092 = vmatpush1.msra.mxu0 0.0
        %3093 = vmatprep.subr.mxu0 0.0
        %3094 = vmatpush1.msra.mxu0 0.0
        %3095 = vmatprep.subr.mxu0 0.0
        %3096 = vmatpush1.msra.mxu0 0.0
        %3097 = vmatprep.subr.mxu0 0.0
        %3098 = vmatpush1.msra.mxu0 0.0
        %3099 = vmatprep.subr.mxu0 0.0
        %3100 = vmatpush1.msra.mxu0 0.0
        %3101 = vmatprep.subr.mxu0 0.0
        %3102 = vmatpush1.msra.mxu0 0.0
        %3103 = vmatprep.subr.mxu0 0.0
        %3104 = vmatpush1.msra.mxu0 0.0
        %3105 = vmatprep.subr.mxu0 0.0
        %3106 = vmatpush1.msra.mxu0 0.0
        %3107 = vmatprep.subr.mxu0 0.0
        %3108 = vmatpush1.msra.mxu0 0.0
        %3109 = vmatprep.subr.mxu0 0.0
        %3110 = vmatpush1.msra.mxu0 0.0
        %3111 = vmatprep.subr.mxu0 0.0
        %3112 = vmatpush1.msra.mxu0 0.0
        %3113 = vmatprep.subr.mxu0 0.0
        %3114 = vmatpush1.msra.mxu0 0.0
        %3115 = vmatprep.subr.mxu0 0.0
        %3116 = vmatpush1.msra.mxu0 0.0
        %3117 = vmatprep.subr.mxu0 0.0
        %3118 = vmatpush1.msra.mxu0 0.0
        %3119 = vmatprep.subr.mxu0 0.0
        %3120 = vmatpush1.msra.mxu0 0.0
        %3121 = vmatprep.subr.mxu0 0.0
        %3122 = vmatpush1.msra.mxu0 0.0
        %3123 = vmatprep.subr.mxu0 0.0
        %3124 = vmatpush1.msra.mxu0 0.0
        %3125 = vmatprep.subr.mxu0 0.0
        %3126 = vmatpush1.msra.mxu0 0.0
        %3127 = vmatprep.mubr.f32.mxu0 0.0
        %3128 = vmatmul.mubr.f32.gmra.mrb[0].mxu0 %v3059
        %v3129 = vpop.f32.mrb[0].mxu0
        %v3130 = vadd.f32 0.0, %v3129
        %v3131 = vpop.f32.mrb[0].mxu0
        %3132 = vmatprep.mubr.f32.mxu0 0.0
        %3133 = vmatmul.mubr.f32.gmra.mrb[0].mxu0 %v3061
        %v3134 = vpop.f32.mrb[0].mxu0
        %v3135 = vadd.f32 0.0, %v3134
        %v3136 = vpop.f32.mrb[0].mxu0
        %3137 = vdwg.mxu0
        %v3138 = vadd.f32 %v3041, %v3130
        %v3139 = vadd.f32 %v3046, %v3135
        %v3140 = vld [vmem:[#allocation10] sm:$0x1]
        %v3142 = vlaneseq
        %v3143 = vshrl.u32 %v3142, 7
        %v3144 = vsub.s32 0, %v3143
        %v3145 = vrot.slane %v3140, %v3144
        %v3147 = vadd.f32 %v3138, %v3145
        %v3148 = vadd.f32 %v3139, %v3145
        %v3149 = vmax.f32 %v3147, 0.0
        %v3150 = vmax.f32 %v3148, 0.0
        %v3153 = vcombine.high %v3149, %v3149
        %v3154 = vcombine.high %v3150, %v3150
        %vm3157 = vcmask 257024
        %3158 = vst.msk [vmem:[%s639] sm:$0xf] %vm3157, %v3149
        %3159 = vst.msk [vmem:[%s639 + $0x4] sm:$0xf] %vm3157, %v3153
        %3160 = vst.msk [vmem:[%s639 + $0x8] sm:$0xf] %vm3157, %v3150
        %3161 = vst.msk [vmem:[%s639 + $0xc] sm:$0xf] %vm3157, %v3154
        %s3162 = sand.u32 %s414, 1
        %s3163 = scalar_lea.sflag [#allocation4], %s3162
        %s3164 = sand.u32 %s414, 1
        %s3165 = smul.addr %s3164, 16
        %s3166 = scalar_lea.vmem [#allocation11], %s3165
        // Predicated region
        $region109: #{tpu_custom_call.1} parent=87 // pred_check
          %p3167 = pneg %p424
        $region110: #{tpu_custom_call.1} parent=87 // pred_check_branch
          %3169 = sbr.rel (%p3167) target = $region112
        $region111: #{tpu_custom_call.1} parent=87 // pred_region
          %s3170 = smul.u32 4, %s34
          %s3172 = ssub.s32 256, 256
          %3173 = vsyncadd %s3163, %s3172
          %s3174 = smul.addr %s3170, 64
          %s3175 = scalar_lea.hbm %s17, %s3174
          %s3176 = sshll.u32 %s3166, 4
          %s3177 = int_to_ptr.vmem [resolvable:$true] %s3176
          %3182 = dma.vmem_to_hbm [thread:$0]  %s3177, 256, %s3175, %s3163, 64, 64, 4
        $region112: #{tpu_custom_call.1} parent=87 // pred_fallthru
          _
      $region88: #{tpu_custom_call.1} parent=5 // pred_fallthru
        _
      %p3183 = scmp.le.s32.totalorder 2, %s29
      // Predicated region
      $region113: #{tpu_custom_call.1} parent=5 // pred_check
        %p3184 = pneg %p3183
      $region114: #{tpu_custom_call.1} parent=5 // pred_check_branch
        %3186 = sbr.rel (%p3184) target = $region116
      $region115: #{tpu_custom_call.1} parent=5 // pred_region
        %s3187 = ssub.s32 %s29, 2
        // Predicated region
        $region117: #{tpu_custom_call.1} parent=115 // pred_check
          %p3188 = pneg %p430
        $region118: #{tpu_custom_call.1} parent=115 // pred_check_branch
          %3190 = sbr.rel (%p3188) target = $region120
        $region119: #{tpu_custom_call.1} parent=115 // pred_region
          %s3191 = sand.u32 %s415, 1
          %s3192 = scalar_lea.sflag [#allocation4], %s3191
          %s3193 = sand.u32 %s415, 1
          %s3194 = smul.addr %s3193, 16
          %s3195 = scalar_lea.vmem [#allocation11], %s3194
          %3196 = dma.done %s3192, 256
        $region120: #{tpu_custom_call.1} parent=115 // pred_fallthru
          _
      $region116: #{tpu_custom_call.1} parent=5 // pred_fallthru
        _
    $region6: #{tpu_custom_call.1} parent=1 // loop_footer
      %s33 = sadd.s32 1, %s29
    $region7: #{tpu_custom_call.1} parent=1 // loop_footer_branch
      %28 = sbr.rel target = $region3
    $region8: #{tpu_custom_call.1} parent=1 // loop_exit
      _
    %3197 = vsyncpa [#allocation3], 1
    %s3198 = scalar_lea.sflag [#allocation3], 1
    %3199 = vsyncpa %s3198, 1
    %3200 = vsyncpa [#allocation6], 1
    %3201 = vsyncpa [#allocation9], 1
    %3202 = vsyncpa [#allocation4], 1
    %s3203 = scalar_lea.sflag [#allocation4], 1
    %3204 = vsyncpa %s3203, 1

</llo_original>
